<compile_context>
chip_gen: v5e
topology: v5e:2x2
jax: 0.10.0
libtpu: 0.0.40
codegen_flags: <defaults>
</compile_context>

<pallas_src>
import jax
import jax.numpy as jnp
from jax import lax
from jax.experimental import pallas as pl
from jax.experimental.pallas import tpu as pltpu


def _make_resblock_kernel(H, W, cin, cout, skip_is_conv):
    HW = H * W
    cmax = max(cin, cout)

    def kernel(x_ref, w1_ref, b1_ref, w2_ref, b2_ref, *rest):
        if skip_is_conv:
            ws_ref, bs_ref, o_ref, pad_ref = rest
        else:
            o_ref, pad_ref = rest

        # Re-zero only the 1-pixel halo; the interior is always overwritten
        # before each conv reads it (safe under megacore grid sharding).
        pad_ref[:, 0:1, :] = jnp.zeros((cmax, 1, W + 2), jnp.float32)
        pad_ref[:, H + 1:H + 2, :] = jnp.zeros((cmax, 1, W + 2), jnp.float32)
        pad_ref[:, :, 0:1] = jnp.zeros((cmax, H + 2, 1), jnp.float32)
        pad_ref[:, :, W + 1:W + 2] = jnp.zeros((cmax, H + 2, 1), jnp.float32)

        x = x_ref[0].astype(jnp.float32)                       # (cin, H, W)

        def conv3x3(w_ref, b_ref, c_used):
            # im2col: stack the 9 shifted (c_used, H*W) windows along the
            # contraction axis -> a single MXU dot with K = 9*c_used and a
            # lane-dense (cout, H*W) result.
            p = pad_ref[...][:c_used]                          # (c_used, H+2, W+2)
            taps = [p[:, ky:ky + H, kx:kx + W].reshape(c_used, HW)
                    for ky in range(3) for kx in range(3)]
            patches = jnp.concatenate(taps, axis=0)            # (9*c_used, HW)
            acc = jnp.dot(w_ref[...], patches,
                          preferred_element_type=jnp.float32)  # (cout, HW)
            return acc + b_ref[...]                            # bias is (cout, 1)

        # r = conv1(relu(x))
        pad_ref[0:cin, 1:H + 1, 1:W + 1] = jnp.maximum(x, 0.0)
        r = conv3x3(w1_ref, b1_ref, cin)                       # (cout, HW)

        # r = conv2(relu(r))  -- same pad scratch, reused.
        pad_ref[0:cout, 1:H + 1, 1:W + 1] = jnp.maximum(r, 0.0).reshape(cout, H, W)
        r = conv3x3(w2_ref, b2_ref, cout)                      # (cout, HW)

        # skip path
        if skip_is_conv:
            pad_ref[0:cin, 1:H + 1, 1:W + 1] = x               # no relu on skip
            s = conv3x3(ws_ref, bs_ref, cin)                   # (cout, HW)
        else:
            s = x.reshape(cin, HW)                             # identity (cin == cout)

        o_ref[0] = (s + r).astype(o_ref.dtype)                 # lane-dense store

    return kernel


def _im2col_weight(w_oihw):
    # PyTorch OIHW (Cout, Cin, 3, 3) -> (Cout, 9*Cin) with row order (ky, kx, ci),
    # matching the im2col patch order used in the kernel.
    co, ci, kh, kw = w_oihw.shape
    return jnp.transpose(w_oihw, (0, 2, 3, 1)).reshape(co, kh * kw * ci)


def resblock_forward(x, params):
    """ResBlock.forward.  x: (B, Cin, H, W) NCHW.

    params: {"conv1": (w OIHW, b), "conv2": (w, b)[, "skip": (w, b)]}.
    "skip" absent -> identity skip (requires Cin == Cout), matching the module.
    """
    w1, b1 = params["conv1"]
    w2, b2 = params["conv2"]
    skip = params.get("skip")
    skip_is_conv = skip is not None

    B, cin, H, W = x.shape
    cout = w1.shape[0]
    cmax = max(cin, cout)
    HW = H * W
    if not skip_is_conv:
        assert cin == cout, "identity skip requires indim == outdim"

    inputs = [x,
              _im2col_weight(w1), b1.reshape(cout, 1),
              _im2col_weight(w2), b2.reshape(cout, 1)]
    in_specs = [
        pl.BlockSpec((1, cin, H, W), lambda b: (b, 0, 0, 0)),
        pl.BlockSpec((cout, 9 * cin), lambda b: (0, 0)),
        pl.BlockSpec((cout, 1), lambda b: (0, 0)),
        pl.BlockSpec((cout, 9 * cout), lambda b: (0, 0)),
        pl.BlockSpec((cout, 1), lambda b: (0, 0)),
    ]
    if skip_is_conv:
        ws, bs = skip
        inputs += [_im2col_weight(ws), bs.reshape(cout, 1)]
        in_specs += [
            pl.BlockSpec((cout, 9 * cin), lambda b: (0, 0)),
            pl.BlockSpec((cout, 1), lambda b: (0, 0)),
        ]

    # Explicit VMEM budget: double-buffered in/out blocks + weights + pad scratch,
    # with 2x headroom (floored at 8 MiB, capped at 64 MiB for v7x).
    itemsize = 4
    block_bytes = (cin * HW + cout * HW) * itemsize
    weight_bytes = sum(int(a.size) for a in inputs[1:]) * itemsize
    pad_bytes = cmax * (H + 2) * (W + 2) * itemsize
    vmem_limit = int(min(64 * 2**20,
                         max(8 * 2**20,
                             2 * (2 * (block_bytes + weight_bytes) + pad_bytes))))

    out = pl.pallas_call(
        _make_resblock_kernel(H, W, cin, cout, skip_is_conv),
        out_shape=jax.ShapeDtypeStruct((B, cout, HW), x.dtype),
        grid_spec=pltpu.PrefetchScalarGridSpec(
            num_scalar_prefetch=0,
            grid=(B,),
            in_specs=in_specs,
            out_specs=pl.BlockSpec((1, cout, HW), lambda b: (b, 0, 0)),
            scratch_shapes=[pltpu.VMEM((cmax, H + 2, W + 2), jnp.float32)],
        ),
        compiler_params=pltpu.CompilerParams(
            dimension_semantics=("parallel",),
            vmem_limit_bytes=vmem_limit),
    )(*inputs)
    return out.reshape(B, cout, H, W)


# ---------------- pure-JAX reference (for verification) ----------------
def _conv3x3_ref(x_nchw, w_oihw, b):
    y = lax.conv_general_dilated(
        x_nchw, w_oihw, window_strides=(1, 1), padding=((1, 1), (1, 1)),
        dimension_numbers=("NCHW", "OIHW", "NCHW"))
    return y + b.reshape(1, -1, 1, 1)


def resblock_forward_ref(x, params):
    w1, b1 = params["conv1"]
    w2, b2 = params["conv2"]
    skip = params.get("skip")
    r = _conv3x3_ref(jax.nn.relu(x), w1, b1)
    r = _conv3x3_ref(jax.nn.relu(r), w2, b2)
    s = x if skip is None else _conv3x3_ref(x, skip[0], skip[1])
    return s + r


if __name__ == "__main__":
    key = jax.random.PRNGKey(0)
    B, H, W = 2, 16, 16

    def make_params(k, indim, outdim):
        ks = jax.random.split(k, 6)
        p = {
            "conv1": (jax.random.normal(ks[0], (outdim, indim, 3, 3), jnp.float32) * 0.1,
                      jax.random.normal(ks[1], (outdim,), jnp.float32) * 0.1),
            "conv2": (jax.random.normal(ks[2], (outdim, outdim, 3, 3), jnp.float32) * 0.1,
                      jax.random.normal(ks[3], (outdim,), jnp.float32) * 0.1),
        }
        if indim != outdim:
            p["skip"] = (jax.random.normal(ks[4], (outdim, indim, 3, 3), jnp.float32) * 0.1,
                         jax.random.normal(ks[5], (outdim,), jnp.float32) * 0.1)
        return p

    k_x, k_p1, k_p2 = jax.random.split(key, 3)
    x = jax.random.normal(k_x, (B, 4, H, W), jnp.float32)

    # Case 1: indim == outdim == 4 -> identity skip.
    params_id = make_params(k_p1, 4, 4)
    out1 = jax.block_until_ready(jax.jit(resblock_forward)(x, params_id))
    ref1 = resblock_forward_ref(x, params_id)
    assert out1.shape == (B, 4, H, W)
    assert jnp.allclose(out1, ref1, atol=1e-4, rtol=1e-4)

    # Case 2: indim=4, outdim=8 -> 3x3 conv skip.
    params_cv = make_params(k_p2, 4, 8)
    out2 = jax.block_until_ready(jax.jit(resblock_forward)(x, params_cv))
    ref2 = resblock_forward_ref(x, params_cv)
    assert out2.shape == (B, 8, H, W)
    assert jnp.allclose(out2, ref2, atol=1e-4, rtol=1e-4)

    print("KERNEL_OK")
</pallas_src>

<mosaic_0001>
module attributes {stable_mosaic.version = 11 : i64} {
  func.func @kernel(%arg0: i32, %arg1: memref<1x4x16x16xf32, #tpu.memory_space<vmem>>, %arg2: memref<4x36xf32, #tpu.memory_space<vmem>>, %arg3: memref<4x1xf32, #tpu.memory_space<vmem>>, %arg4: memref<4x36xf32, #tpu.memory_space<vmem>>, %arg5: memref<4x1xf32, #tpu.memory_space<vmem>>, %arg6: memref<1x4x256xf32, #tpu.memory_space<vmem>>, %arg7: memref<4x18x18xf32, #tpu.memory_space<vmem>>) attributes {dimension_semantics = [#tpu.dimension_semantics<parallel>], iteration_bounds = array<i64: 2>, scalar_prefetch = 0 : i64, scratch_operands = 1 : i64, tpu.core_type = #tpu.core_type<tc>, window_params = [{transform_indices = @transform_0, window_bounds = array<i64: 1, 4, 16, 16>}, {pipeline_mode = #tpu.pipeline_mode<synchronous>, transform_indices = @transform_1, window_bounds = array<i64: 4, 36>}, {pipeline_mode = #tpu.pipeline_mode<synchronous>, transform_indices = @transform_2, window_bounds = array<i64: 4, 1>}, {pipeline_mode = #tpu.pipeline_mode<synchronous>, transform_indices = @transform_3, window_bounds = array<i64: 4, 36>}, {pipeline_mode = #tpu.pipeline_mode<synchronous>, transform_indices = @transform_4, window_bounds = array<i64: 4, 1>}, {transform_indices = @transform_5, window_bounds = array<i64: 1, 4, 256>}]} {
    %cst = arith.constant 0.000000e+00 : f32
    %0 = vector.broadcast %cst : f32 to vector<4x1x18xf32>
    %c0 = arith.constant 0 : index
    %c0_0 = arith.constant 0 : index
    %c0_1 = arith.constant 0 : index
    %1 = vector.load %arg7[%c0, %c0_0, %c0_1] : memref<4x18x18xf32, #tpu.memory_space<vmem>>, vector<4x1x18xf32>
    tpu.vector_store %arg7[%c0, %c0_0, %c0_1], %0 {strides = array<i32>} : memref<4x18x18xf32, #tpu.memory_space<vmem>>, vector<4x1x18xf32>,
    %cst_2 = arith.constant 0.000000e+00 : f32
    %2 = vector.broadcast %cst_2 : f32 to vector<4x1x18xf32>
    %c0_3 = arith.constant 0 : index
    %c17 = arith.constant 17 : index
    %c0_4 = arith.constant 0 : index
    %3 = vector.load %arg7[%c0_3, %c17, %c0_4] : memref<4x18x18xf32, #tpu.memory_space<vmem>>, vector<4x1x18xf32>
    tpu.vector_store %arg7[%c0_3, %c17, %c0_4], %2 {strides = array<i32>} : memref<4x18x18xf32, #tpu.memory_space<vmem>>, vector<4x1x18xf32>,
    %cst_5 = arith.constant 0.000000e+00 : f32
    %4 = vector.broadcast %cst_5 : f32 to vector<4x18x1xf32>
    %c0_6 = arith.constant 0 : index
    %c0_7 = arith.constant 0 : index
    %c0_8 = arith.constant 0 : index
    %5 = vector.load %arg7[%c0_6, %c0_7, %c0_8] : memref<4x18x18xf32, #tpu.memory_space<vmem>>, vector<4x18x1xf32>
    tpu.vector_store %arg7[%c0_6, %c0_7, %c0_8], %4 {strides = array<i32>} : memref<4x18x18xf32, #tpu.memory_space<vmem>>, vector<4x18x1xf32>,
    %cst_9 = arith.constant 0.000000e+00 : f32
    %6 = vector.broadcast %cst_9 : f32 to vector<4x18x1xf32>
    %c0_10 = arith.constant 0 : index
    %c0_11 = arith.constant 0 : index
    %c17_12 = arith.constant 17 : index
    %7 = vector.load %arg7[%c0_10, %c0_11, %c17_12] : memref<4x18x18xf32, #tpu.memory_space<vmem>>, vector<4x18x1xf32>
    tpu.vector_store %arg7[%c0_10, %c0_11, %c17_12], %6 {strides = array<i32>} : memref<4x18x18xf32, #tpu.memory_space<vmem>>, vector<4x18x1xf32>,
    %c0_13 = arith.constant 0 : index
    %c0_14 = arith.constant 0 : index
    %c0_15 = arith.constant 0 : index
    %c0_16 = arith.constant 0 : index
    %8 = vector.load %arg1[%c0_13, %c0_14, %c0_15, %c0_16] : memref<1x4x16x16xf32, #tpu.memory_space<vmem>>, vector<1x4x16x16xf32>
    %9 = vector.shape_cast %8 : vector<1x4x16x16xf32> to vector<4x16x16xf32>
    %cst_17 = arith.constant 0.000000e+00 : f32
    %10 = vector.broadcast %cst_17 : f32 to vector<4x16x16xf32>
    %11 = arith.maximumf %9, %10 : vector<4x16x16xf32>
    %c0_18 = arith.constant 0 : index
    %c1 = arith.constant 1 : index
    %c1_19 = arith.constant 1 : index
    %12 = vector.load %arg7[%c0_18, %c1, %c1_19] : memref<4x18x18xf32, #tpu.memory_space<vmem>>, vector<4x16x16xf32>
    tpu.vector_store %arg7[%c0_18, %c1, %c1_19], %11 {strides = array<i32>} : memref<4x18x18xf32, #tpu.memory_space<vmem>>, vector<4x16x16xf32>,
    %c0_20 = arith.constant 0 : index
    %c0_21 = arith.constant 0 : index
    %c0_22 = arith.constant 0 : index
    %13 = vector.load %arg7[%c0_20, %c0_21, %c0_22] : memref<4x18x18xf32, #tpu.memory_space<vmem>>, vector<4x18x18xf32>
    %14 = vector.extract_strided_slice %13 {offsets = [0, 0, 0], sizes = [4, 16, 16], strides = [1, 1, 1]} : vector<4x18x18xf32> to vector<4x16x16xf32>
    %15 = vector.shape_cast %14 : vector<4x16x16xf32> to vector<4x256xf32>
    %16 = vector.extract_strided_slice %13 {offsets = [0, 0, 1], sizes = [4, 16, 16], strides = [1, 1, 1]} : vector<4x18x18xf32> to vector<4x16x16xf32>
    %17 = vector.shape_cast %16 : vector<4x16x16xf32> to vector<4x256xf32>
    %18 = vector.extract_strided_slice %13 {offsets = [0, 0, 2], sizes = [4, 16, 16], strides = [1, 1, 1]} : vector<4x18x18xf32> to vector<4x16x16xf32>
    %19 = vector.shape_cast %18 : vector<4x16x16xf32> to vector<4x256xf32>
    %20 = vector.extract_strided_slice %13 {offsets = [0, 1, 0], sizes = [4, 16, 16], strides = [1, 1, 1]} : vector<4x18x18xf32> to vector<4x16x16xf32>
    %21 = vector.shape_cast %20 : vector<4x16x16xf32> to vector<4x256xf32>
    %22 = vector.extract_strided_slice %13 {offsets = [0, 1, 1], sizes = [4, 16, 16], strides = [1, 1, 1]} : vector<4x18x18xf32> to vector<4x16x16xf32>
    %23 = vector.shape_cast %22 : vector<4x16x16xf32> to vector<4x256xf32>
    %24 = vector.extract_strided_slice %13 {offsets = [0, 1, 2], sizes = [4, 16, 16], strides = [1, 1, 1]} : vector<4x18x18xf32> to vector<4x16x16xf32>
    %25 = vector.shape_cast %24 : vector<4x16x16xf32> to vector<4x256xf32>
    %26 = vector.extract_strided_slice %13 {offsets = [0, 2, 0], sizes = [4, 16, 16], strides = [1, 1, 1]} : vector<4x18x18xf32> to vector<4x16x16xf32>
    %27 = vector.shape_cast %26 : vector<4x16x16xf32> to vector<4x256xf32>
    %28 = vector.extract_strided_slice %13 {offsets = [0, 2, 1], sizes = [4, 16, 16], strides = [1, 1, 1]} : vector<4x18x18xf32> to vector<4x16x16xf32>
    %29 = vector.shape_cast %28 : vector<4x16x16xf32> to vector<4x256xf32>
    %30 = vector.extract_strided_slice %13 {offsets = [0, 2, 2], sizes = [4, 16, 16], strides = [1, 1, 1]} : vector<4x18x18xf32> to vector<4x16x16xf32>
    %31 = vector.shape_cast %30 : vector<4x16x16xf32> to vector<4x256xf32>
    %32 = tpu.concatenate %15, %17, %19, %21, %23, %25, %27, %29, %31 in 0 : vector<4x256xf32>, vector<4x256xf32>, vector<4x256xf32>, vector<4x256xf32>, vector<4x256xf32>, vector<4x256xf32>, vector<4x256xf32>, vector<4x256xf32>, vector<4x256xf32> -> vector<36x256xf32>
    %c0_23 = arith.constant 0 : index
    %c0_24 = arith.constant 0 : index
    %33 = vector.load %arg2[%c0_23, %c0_24] : memref<4x36xf32, #tpu.memory_space<vmem>>, vector<4x36xf32>
    %cst_25 = arith.constant dense<0.000000e+00> : vector<4x256xf32>
    %34 = tpu.matmul %33, %32, %cst_25 {dimension_numbers = #tpu.dot_dimension_numbers<[1], [0], [0], [1], [0, 0, 1, 1], [], []>} : vector<4x36xf32>, vector<36x256xf32>, vector<4x256xf32> -> vector<4x256xf32>
    %c0_26 = arith.constant 0 : index
    %c0_27 = arith.constant 0 : index
    %35 = vector.load %arg3[%c0_26, %c0_27] : memref<4x1xf32, #tpu.memory_space<vmem>>, vector<4x1xf32>
    %36 = vector.broadcast %35 : vector<4x1xf32> to vector<4x256xf32>
    %37 = arith.addf %34, %36 : vector<4x256xf32>
    %cst_28 = arith.constant 0.000000e+00 : f32
    %38 = vector.broadcast %cst_28 : f32 to vector<4x256xf32>
    %39 = arith.maximumf %37, %38 : vector<4x256xf32>
    %40 = vector.shape_cast %39 : vector<4x256xf32> to vector<4x16x16xf32>
    %c0_29 = arith.constant 0 : index
    %c1_30 = arith.constant 1 : index
    %c1_31 = arith.constant 1 : index
    %41 = vector.load %arg7[%c0_29, %c1_30, %c1_31] : memref<4x18x18xf32, #tpu.memory_space<vmem>>, vector<4x16x16xf32>
    tpu.vector_store %arg7[%c0_29, %c1_30, %c1_31], %40 {strides = array<i32>} : memref<4x18x18xf32, #tpu.memory_space<vmem>>, vector<4x16x16xf32>,
    %c0_32 = arith.constant 0 : index
    %c0_33 = arith.constant 0 : index
    %c0_34 = arith.constant 0 : index
    %42 = vector.load %arg7[%c0_32, %c0_33, %c0_34] : memref<4x18x18xf32, #tpu.memory_space<vmem>>, vector<4x18x18xf32>
    %43 = vector.extract_strided_slice %42 {offsets = [0, 0, 0], sizes = [4, 16, 16], strides = [1, 1, 1]} : vector<4x18x18xf32> to vector<4x16x16xf32>
    %44 = vector.shape_cast %43 : vector<4x16x16xf32> to vector<4x256xf32>
    %45 = vector.extract_strided_slice %42 {offsets = [0, 0, 1], sizes = [4, 16, 16], strides = [1, 1, 1]} : vector<4x18x18xf32> to vector<4x16x16xf32>
    %46 = vector.shape_cast %45 : vector<4x16x16xf32> to vector<4x256xf32>
    %47 = vector.extract_strided_slice %42 {offsets = [0, 0, 2], sizes = [4, 16, 16], strides = [1, 1, 1]} : vector<4x18x18xf32> to vector<4x16x16xf32>
    %48 = vector.shape_cast %47 : vector<4x16x16xf32> to vector<4x256xf32>
    %49 = vector.extract_strided_slice %42 {offsets = [0, 1, 0], sizes = [4, 16, 16], strides = [1, 1, 1]} : vector<4x18x18xf32> to vector<4x16x16xf32>
    %50 = vector.shape_cast %49 : vector<4x16x16xf32> to vector<4x256xf32>
    %51 = vector.extract_strided_slice %42 {offsets = [0, 1, 1], sizes = [4, 16, 16], strides = [1, 1, 1]} : vector<4x18x18xf32> to vector<4x16x16xf32>
    %52 = vector.shape_cast %51 : vector<4x16x16xf32> to vector<4x256xf32>
    %53 = vector.extract_strided_slice %42 {offsets = [0, 1, 2], sizes = [4, 16, 16], strides = [1, 1, 1]} : vector<4x18x18xf32> to vector<4x16x16xf32>
    %54 = vector.shape_cast %53 : vector<4x16x16xf32> to vector<4x256xf32>
    %55 = vector.extract_strided_slice %42 {offsets = [0, 2, 0], sizes = [4, 16, 16], strides = [1, 1, 1]} : vector<4x18x18xf32> to vector<4x16x16xf32>
    %56 = vector.shape_cast %55 : vector<4x16x16xf32> to vector<4x256xf32>
    %57 = vector.extract_strided_slice %42 {offsets = [0, 2, 1], sizes = [4, 16, 16], strides = [1, 1, 1]} : vector<4x18x18xf32> to vector<4x16x16xf32>
    %58 = vector.shape_cast %57 : vector<4x16x16xf32> to vector<4x256xf32>
    %59 = vector.extract_strided_slice %42 {offsets = [0, 2, 2], sizes = [4, 16, 16], strides = [1, 1, 1]} : vector<4x18x18xf32> to vector<4x16x16xf32>
    %60 = vector.shape_cast %59 : vector<4x16x16xf32> to vector<4x256xf32>
    %61 = tpu.concatenate %44, %46, %48, %50, %52, %54, %56, %58, %60 in 0 : vector<4x256xf32>, vector<4x256xf32>, vector<4x256xf32>, vector<4x256xf32>, vector<4x256xf32>, vector<4x256xf32>, vector<4x256xf32>, vector<4x256xf32>, vector<4x256xf32> -> vector<36x256xf32>
    %c0_35 = arith.constant 0 : index
    %c0_36 = arith.constant 0 : index
    %62 = vector.load %arg4[%c0_35, %c0_36] : memref<4x36xf32, #tpu.memory_space<vmem>>, vector<4x36xf32>
    %cst_37 = arith.constant dense<0.000000e+00> : vector<4x256xf32>
    %63 = tpu.matmul %62, %61, %cst_37 {dimension_numbers = #tpu.dot_dimension_numbers<[1], [0], [0], [1], [0, 0, 1, 1], [], []>} : vector<4x36xf32>, vector<36x256xf32>, vector<4x256xf32> -> vector<4x256xf32>
    %c0_38 = arith.constant 0 : index
    %c0_39 = arith.constant 0 : index
    %64 = vector.load %arg5[%c0_38, %c0_39] : memref<4x1xf32, #tpu.memory_space<vmem>>, vector<4x1xf32>
    %65 = vector.broadcast %64 : vector<4x1xf32> to vector<4x256xf32>
    %66 = arith.addf %63, %65 : vector<4x256xf32>
    %67 = vector.shape_cast %9 : vector<4x16x16xf32> to vector<4x256xf32>
    %68 = arith.addf %67, %66 : vector<4x256xf32>
    %c0_40 = arith.constant 0 : index
    %c0_41 = arith.constant 0 : index
    %c0_42 = arith.constant 0 : index
    %69 = vector.load %arg6[%c0_40, %c0_41, %c0_42] : memref<1x4x256xf32, #tpu.memory_space<vmem>>, vector<1x4x256xf32>
    %70 = vector.shape_cast %69 : vector<1x4x256xf32> to vector<4x256xf32>
    %71 = vector.shape_cast %68 : vector<4x256xf32> to vector<1x4x256xf32>
    tpu.vector_store %arg6[%c0_40, %c0_41, %c0_42], %71 {strides = array<i32>} : memref<1x4x256xf32, #tpu.memory_space<vmem>>, vector<1x4x256xf32>,
    return
  }
  func.func @transform_0(%arg0: i32) -> (i32, i32, i32, i32) {
    %c0_i32 = arith.constant 0 : i32
    %c0_i32_0 = arith.constant 0 : i32
    %c0_i32_1 = arith.constant 0 : i32
    %c0_i32_2 = arith.constant 0 : i32
    return %arg0, %c0_i32, %c0_i32_0, %c0_i32_1 : i32, i32, i32, i32
  }
  func.func @transform_1(%arg0: i32) -> (i32, i32) {
    %c0_i32 = arith.constant 0 : i32
    %c0_i32_0 = arith.constant 0 : i32
    %c0_i32_1 = arith.constant 0 : i32
    return %c0_i32, %c0_i32_0 : i32, i32
  }
  func.func @transform_2(%arg0: i32) -> (i32, i32) {
    %c0_i32 = arith.constant 0 : i32
    %c0_i32_0 = arith.constant 0 : i32
    %c0_i32_1 = arith.constant 0 : i32
    return %c0_i32, %c0_i32_0 : i32, i32
  }
  func.func @transform_3(%arg0: i32) -> (i32, i32) {
    %c0_i32 = arith.constant 0 : i32
    %c0_i32_0 = arith.constant 0 : i32
    %c0_i32_1 = arith.constant 0 : i32
    return %c0_i32, %c0_i32_0 : i32, i32
  }
  func.func @transform_4(%arg0: i32) -> (i32, i32) {
    %c0_i32 = arith.constant 0 : i32
    %c0_i32_0 = arith.constant 0 : i32
    %c0_i32_1 = arith.constant 0 : i32
    return %c0_i32, %c0_i32_0 : i32, i32
  }
  func.func @transform_5(%arg0: i32) -> (i32, i32, i32) {
    %c0_i32 = arith.constant 0 : i32
    %c0_i32_0 = arith.constant 0 : i32
    %c0_i32_1 = arith.constant 0 : i32
    return %arg0, %c0_i32, %c0_i32_0 : i32, i32, i32
  }
}

</mosaic_0001>

<llo_original>
// kernel: resblock_forward.1
$region0: #{resblock_forward.1}
  #allocation0 [shape = 'u32[]', space=smem, size = 0x4, offset = 0x4, fixed_abs, tag = 'smem constant byte address 0x4 - core index']
  #allocation1 [shape = 'u32[72,128]{1,0:T(1,128)}', space=vmem, size = 0x9000, scoped, tag = 'internal scratch']
  #allocation2 [shape = 'f32[4,18,18]{2,1,0:T(8,128)}', space=vmem, size = 0xc000, scoped, tag = 'scratch operand']
  %s0 = inlined_call_operand.vmem [shape: f32[2,4,16,16], index: 0, kind: input, shape index: {}]
  %s1 = inlined_call_operand.vmem [shape: f32[4,36], index: 1, kind: input, shape index: {}]
  %s2 = inlined_call_operand.vmem [shape: f32[4,1], index: 2, kind: input, shape index: {}]
  %s3 = inlined_call_operand.vmem [shape: f32[4,36], index: 3, kind: input, shape index: {}]
  %s4 = inlined_call_operand.vmem [shape: f32[4,1], index: 4, kind: input, shape index: {}]
  %s5 = inlined_call_operand.vmem [shape: f32[2,4,256], index: 5, kind: output, shape index: {}]
  %s6 = sld [smem:[#allocation0]]
  $region53: #{resblock_forward.1} parent=0
    _
  %s8 = ssub.s32 1, %s6
  %s9 = scalar_select 0, %s8, %s6
  loop: start=0, step=1, limit=4
  $region2: #{resblock_forward.1} parent=0 // loop_pre_header
    _
  $region3: #{resblock_forward.1} parent=0 // loop_header
    %s11 = sphi 0, %s15
    %p12 = scmp.ge.s32.totalorder %s11, 4
    %s21 = sphi 0, %s23
    %s24 = sphi 0, %s21
    %s25 = sphi 0, %s24
    %s41 = sphi 0, %s25
    %s45 = sphi 0, %s45
    %s47 = sphi 0, %s45
    %s48 = sphi 0, %s47
    %s62 = sphi 0, %s48
    %s66 = sphi 0, %s66
    %s68 = sphi 0, %s66
    %s69 = sphi 0, %s68
    %s83 = sphi 0, %s69
    %s87 = sphi 0, %s87
    %s89 = sphi 0, %s87
    %s90 = sphi 0, %s89
    %s104 = sphi 0, %s90
    %s108 = sphi 0, %s108
    %s110 = sphi 0, %s108
    %s111 = sphi 0, %s110
    %s125 = sphi 0, %s111
    %s131 = sphi 0, %s133
    %s134 = sphi 0, %s131
    %s135 = sphi 0, %s134
    %s151 = sphi 0, %s135
  $region4: #{resblock_forward.1} parent=0 // loop_header_branch
    %14 = sbr.rel (%p12) target = $region8
  $region5: #{resblock_forward.1} parent=0 // loop_body
    %s16 = ssub.s32 %s11, 1
    %s17 = ssub.s32 %s11, 2
    %s18 = sadd.s32 %s11, 1
    %s19 = ssub.s32 %s11, %s18
    %p20 = scmp.eq.s32.totalorder %s19, 0
    %s22 = sadd.s32 %s21, 1
    %s23 = scalar_select %p20, %s21, %s22
    %p26 = pneg %p20
    %p27 = scmp.eq.s32.totalorder %s11, 1
    %p28 = por %p26, %p27
    %p29 = scmp.ne.s32.totalorder %s21, %s24
    %p30 = scmp.eq.s32.totalorder %s11, 0
    %p31 = por %p29, %p30
    %p32 = scmp.ne.s32.totalorder %s21, %s24
    %p33 = scmp.eq.s32.totalorder %s16, 1
    %p34 = por %p32, %p33
    %p35 = scmp.ne.s32.totalorder %s24, %s25
    %p36 = scmp.eq.s32.totalorder %s16, 0
    %p37 = por %p35, %p36
    %p38 = scmp.ne.s32.totalorder %s24, %s25
    %p39 = scmp.eq.s32.totalorder %s17, 1
    %p40 = por %p38, %p39
    %p42 = scmp.ne.s32.totalorder %s25, %s41
    %p43 = scmp.eq.s32.totalorder %s17, 0
    %p44 = por %p42, %p43
    %s46 = sadd.s32 %s45, 1
    %p49 = scmp.eq.s32.totalorder %s11, 1
    %p50 = scmp.ne.s32.totalorder %s45, %s47
    %p51 = scmp.eq.s32.totalorder %s11, 0
    %p52 = por %p50, %p51
    %p53 = scmp.ne.s32.totalorder %s45, %s47
    %p54 = scmp.eq.s32.totalorder %s16, 1
    %p55 = por %p53, %p54
    %p56 = scmp.ne.s32.totalorder %s47, %s48
    %p57 = scmp.eq.s32.totalorder %s16, 0
    %p58 = por %p56, %p57
    %p59 = scmp.ne.s32.totalorder %s47, %s48
    %p60 = scmp.eq.s32.totalorder %s17, 1
    %p61 = por %p59, %p60
    %p63 = scmp.ne.s32.totalorder %s48, %s62
    %p64 = scmp.eq.s32.totalorder %s17, 0
    %p65 = por %p63, %p64
    %s67 = sadd.s32 %s66, 1
    %p70 = scmp.eq.s32.totalorder %s11, 1
    %p71 = scmp.ne.s32.totalorder %s66, %s68
    %p72 = scmp.eq.s32.totalorder %s11, 0
    %p73 = por %p71, %p72
    %p74 = scmp.ne.s32.totalorder %s66, %s68
    %p75 = scmp.eq.s32.totalorder %s16, 1
    %p76 = por %p74, %p75
    %p77 = scmp.ne.s32.totalorder %s68, %s69
    %p78 = scmp.eq.s32.totalorder %s16, 0
    %p79 = por %p77, %p78
    %p80 = scmp.ne.s32.totalorder %s68, %s69
    %p81 = scmp.eq.s32.totalorder %s17, 1
    %p82 = por %p80, %p81
    %p84 = scmp.ne.s32.totalorder %s69, %s83
    %p85 = scmp.eq.s32.totalorder %s17, 0
    %p86 = por %p84, %p85
    %s88 = sadd.s32 %s87, 1
    %p91 = scmp.eq.s32.totalorder %s11, 1
    %p92 = scmp.ne.s32.totalorder %s87, %s89
    %p93 = scmp.eq.s32.totalorder %s11, 0
    %p94 = por %p92, %p93
    %p95 = scmp.ne.s32.totalorder %s87, %s89
    %p96 = scmp.eq.s32.totalorder %s16, 1
    %p97 = por %p95, %p96
    %p98 = scmp.ne.s32.totalorder %s89, %s90
    %p99 = scmp.eq.s32.totalorder %s16, 0
    %p100 = por %p98, %p99
    %p101 = scmp.ne.s32.totalorder %s89, %s90
    %p102 = scmp.eq.s32.totalorder %s17, 1
    %p103 = por %p101, %p102
    %p105 = scmp.ne.s32.totalorder %s90, %s104
    %p106 = scmp.eq.s32.totalorder %s17, 0
    %p107 = por %p105, %p106
    %s109 = sadd.s32 %s108, 1
    %p112 = scmp.eq.s32.totalorder %s11, 1
    %p113 = scmp.ne.s32.totalorder %s108, %s110
    %p114 = scmp.eq.s32.totalorder %s11, 0
    %p115 = por %p113, %p114
    %p116 = scmp.ne.s32.totalorder %s108, %s110
    %p117 = scmp.eq.s32.totalorder %s16, 1
    %p118 = por %p116, %p117
    %p119 = scmp.ne.s32.totalorder %s110, %s111
    %p120 = scmp.eq.s32.totalorder %s16, 0
    %p121 = por %p119, %p120
    %p122 = scmp.ne.s32.totalorder %s110, %s111
    %p123 = scmp.eq.s32.totalorder %s17, 1
    %p124 = por %p122, %p123
    %p126 = scmp.ne.s32.totalorder %s111, %s125
    %p127 = scmp.eq.s32.totalorder %s17, 0
    %p128 = por %p126, %p127
    %s129 = ssub.s32 %s11, %s18
    %p130 = scmp.eq.s32.totalorder %s129, 0
    %s132 = sadd.s32 %s131, 1
    %s133 = scalar_select %p130, %s131, %s132
    %p136 = pneg %p130
    %p137 = scmp.eq.s32.totalorder %s11, 1
    %p138 = por %p136, %p137
    %p139 = scmp.ne.s32.totalorder %s131, %s134
    %p140 = scmp.eq.s32.totalorder %s11, 0
    %p141 = por %p139, %p140
    %p142 = scmp.ne.s32.totalorder %s131, %s134
    %p143 = scmp.eq.s32.totalorder %s16, 1
    %p144 = por %p142, %p143
    %p145 = scmp.ne.s32.totalorder %s134, %s135
    %p146 = scmp.eq.s32.totalorder %s16, 0
    %p147 = por %p145, %p146
    %p148 = scmp.ne.s32.totalorder %s134, %s135
    %p149 = scmp.eq.s32.totalorder %s17, 1
    %p150 = por %p148, %p149
    %p152 = scmp.ne.s32.totalorder %s135, %s151
    %p153 = scmp.eq.s32.totalorder %s17, 0
    %p154 = por %p152, %p153
    %p155 = scmp.le.s32.totalorder 1, %s11
    %p156 = scmp.lt.s32.totalorder %s11, 3
    %p157 = pnand %p155, %p156
    %p158 = pneg %p157
    // Predicated region
    $region9: #{resblock_forward.1} parent=5 // pred_check
      _
    $region10: #{resblock_forward.1} parent=5 // pred_check_branch
      %160 = sbr.rel (%p157) target = $region12
    $region11: #{resblock_forward.1} parent=5 // pred_region
      %s161 = ssub.s32 %s11, 1
      // Predicated region
      $region13: #{resblock_forward.1} parent=11 // pred_check
        %p162 = pneg %p58
      $region14: #{resblock_forward.1} parent=11 // pred_check_branch
        %164 = sbr.rel (%p162) target = $region16
      $region15: #{resblock_forward.1} parent=11 // pred_region
        _
      $region16: #{resblock_forward.1} parent=11 // pred_fallthru
        _
      // Predicated region
      $region17: #{resblock_forward.1} parent=11 // pred_check
        %p165 = pneg %p79
      $region18: #{resblock_forward.1} parent=11 // pred_check_branch
        %167 = sbr.rel (%p165) target = $region20
      $region19: #{resblock_forward.1} parent=11 // pred_region
        _
      $region20: #{resblock_forward.1} parent=11 // pred_fallthru
        _
      // Predicated region
      $region21: #{resblock_forward.1} parent=11 // pred_check
        %p168 = pneg %p100
      $region22: #{resblock_forward.1} parent=11 // pred_check_branch
        %170 = sbr.rel (%p168) target = $region24
      $region23: #{resblock_forward.1} parent=11 // pred_region
        _
      $region24: #{resblock_forward.1} parent=11 // pred_fallthru
        _
      // Predicated region
      $region25: #{resblock_forward.1} parent=11 // pred_check
        %p171 = pneg %p121
      $region26: #{resblock_forward.1} parent=11 // pred_check_branch
        %173 = sbr.rel (%p171) target = $region28
      $region27: #{resblock_forward.1} parent=11 // pred_region
        _
      $region28: #{resblock_forward.1} parent=11 // pred_fallthru
        _
    $region12: #{resblock_forward.1} parent=5 // pred_fallthru
      _
    %p174 = scmp.lt.s32.totalorder %s11, 2
    // Predicated region
    $region29: #{resblock_forward.1} parent=5 // pred_check
      %p175 = pneg %p174
    $region30: #{resblock_forward.1} parent=5 // pred_check_branch
      %177 = sbr.rel (%p175) target = $region32
    $region31: #{resblock_forward.1} parent=5 // pred_region
      // Predicated region
      $region33: #{resblock_forward.1} parent=31 // pred_check
        %p178 = pneg %p31
      $region34: #{resblock_forward.1} parent=31 // pred_check_branch
        %180 = sbr.rel (%p178) target = $region36
      $region35: #{resblock_forward.1} parent=31 // pred_region
        %p181 = scmp.lt.s32.totalorder %s11, 1
        %s182 = scalar_select %p181, %s11, 1
        %s183 = smul.addr %s182, 8
        %s184 = smul.addr %s183, 8
        %s185 = scalar_lea.vmem %s0, %s184
      $region36: #{resblock_forward.1} parent=31 // pred_fallthru
        _
    $region32: #{resblock_forward.1} parent=5 // pred_fallthru
      _
    %p186 = scmp.le.s32.totalorder 1, %s11
    %p187 = scmp.lt.s32.totalorder %s11, 3
    %p188 = pnand %p186, %p187
    %p189 = pneg %p188
    // Predicated region
    $region37: #{resblock_forward.1} parent=5 // pred_check
      _
    $region38: #{resblock_forward.1} parent=5 // pred_check_branch
      %191 = sbr.rel (%p188) target = $region40
    $region39: #{resblock_forward.1} parent=5 // pred_region
      %s192 = ssub.s32 %s11, 1
      %p193 = scmp.lt.s32.totalorder %s16, 1
      %s194 = scalar_select %p193, %s16, 1
      %s195 = smul.addr %s194, 8
      %s196 = smul.addr %s195, 8
      %s197 = scalar_lea.vmem %s0, %s196
      %p198 = pneg %p37
      %p199 = pneg %p34
      %p200 = pneg %p58
      %p201 = pneg %p55
      %p202 = pneg %p79
      %p203 = pneg %p76
      %p204 = pneg %p100
      %p205 = pneg %p97
      %p206 = pneg %p121
      %p207 = pneg %p118
      %p208 = pneg %p147
      %p209 = pneg %p144
      %p210 = scmp.lt.s32.totalorder %s16, 1
      %s211 = scalar_select %p210, %s16, 1
      %s212 = smul.addr %s211, 2
      %s213 = smul.addr %s212, 4
      %s214 = scalar_lea.vmem %s5, %s213
      %p215 = scmp.lt.s32.totalorder %s16, 1
      %s216 = scalar_select %p215, %s16, 1
      %s217 = smul.addr %s216, 8
      %s218 = smul.addr %s217, 8
      %s219 = scalar_lea.vmem %s0, %s218
      %p220 = scmp.lt.s32.totalorder %s16, 1
      %s221 = scalar_select %p220, %s16, 1
      %s222 = smul.addr %s221, 2
      %s223 = smul.addr %s222, 4
      %s224 = scalar_lea.vmem %s5, %s223
      %vm225 = vcmask 139264
      %226 = vst.msk [vmem:[#allocation2] sm:$0x1] %vm225, 0.0
      %227 = vst.msk [vmem:[#allocation2 + $0x18] sm:$0x1] %vm225, 0.0
      %228 = vst.msk [vmem:[#allocation2 + $0x30] sm:$0x1] %vm225, 0.0
      %229 = vst.msk [vmem:[#allocation2 + $0x48] sm:$0x1] %vm225, 0.0
      %230 = vst.msk [vmem:[#allocation2 + $0x11] sm:$0x1] %vm225, 0.0
      %231 = vst.msk [vmem:[#allocation2 + $0x29] sm:$0x1] %vm225, 0.0
      %232 = vst.msk [vmem:[#allocation2 + $0x41] sm:$0x1] %vm225, 0.0
      %233 = vst.msk [vmem:[#allocation2 + $0x59] sm:$0x1] %vm225, 0.0
      %vm234 = vcmask 7168
      %235 = vst.msk [vmem:[#allocation2] sm:$0xff] %vm234, 0.0
      %236 = vst.msk [vmem:[#allocation2 + $0x8] sm:$0xff] %vm234, 0.0
      %vm237 = vcmask 1024
      %238 = vst.msk [vmem:[#allocation2 + $0x10] sm:$0x3] %vm237, 0.0
      %239 = vst.msk [vmem:[#allocation2 + $0x18] sm:$0xff] %vm234, 0.0
      %240 = vst.msk [vmem:[#allocation2 + $0x20] sm:$0xff] %vm234, 0.0
      %241 = vst.msk [vmem:[#allocation2 + $0x28] sm:$0x3] %vm237, 0.0
      %242 = vst.msk [vmem:[#allocation2 + $0x30] sm:$0xff] %vm234, 0.0
      %243 = vst.msk [vmem:[#allocation2 + $0x38] sm:$0xff] %vm234, 0.0
      %244 = vst.msk [vmem:[#allocation2 + $0x40] sm:$0x3] %vm237, 0.0
      %245 = vst.msk [vmem:[#allocation2 + $0x48] sm:$0xff] %vm234, 0.0
      %246 = vst.msk [vmem:[#allocation2 + $0x50] sm:$0xff] %vm234, 0.0
      %247 = vst.msk [vmem:[#allocation2 + $0x58] sm:$0x3] %vm237, 0.0
      %vm248 = vcmask 146568
      %249 = vst.msk [vmem:[#allocation2] sm:$0xff] %vm248, 0.0
      %250 = vst.msk [vmem:[#allocation2 + $0x8] sm:$0xff] %vm248, 0.0
      %vm251 = vcmask 140424
      %252 = vst.msk [vmem:[#allocation2 + $0x10] sm:$0x3] %vm251, 0.0
      %253 = vst.msk [vmem:[#allocation2 + $0x18] sm:$0xff] %vm248, 0.0
      %254 = vst.msk [vmem:[#allocation2 + $0x20] sm:$0xff] %vm248, 0.0
      %255 = vst.msk [vmem:[#allocation2 + $0x28] sm:$0x3] %vm251, 0.0
      %256 = vst.msk [vmem:[#allocation2 + $0x30] sm:$0xff] %vm248, 0.0
      %257 = vst.msk [vmem:[#allocation2 + $0x38] sm:$0xff] %vm248, 0.0
      %258 = vst.msk [vmem:[#allocation2 + $0x40] sm:$0x3] %vm251, 0.0
      %259 = vst.msk [vmem:[#allocation2 + $0x48] sm:$0xff] %vm248, 0.0
      %260 = vst.msk [vmem:[#allocation2 + $0x50] sm:$0xff] %vm248, 0.0
      %261 = vst.msk [vmem:[#allocation2 + $0x58] sm:$0x3] %vm251, 0.0
      %v262 = vld [vmem:[%s219] sm:$0xff]
      %v263 = vld [vmem:[%s219 + $0x8] sm:$0xff]
      %v264 = vld [vmem:[%s219 + $0x10] sm:$0xff]
      %v265 = vld [vmem:[%s219 + $0x18] sm:$0xff]
      %v266 = vld [vmem:[%s219 + $0x20] sm:$0xff]
      %v267 = vld [vmem:[%s219 + $0x28] sm:$0xff]
      %v268 = vld [vmem:[%s219 + $0x30] sm:$0xff]
      %v269 = vld [vmem:[%s219 + $0x38] sm:$0xff]
      %v270 = vmax.f32 %v262, 0.0
      %v271 = vmax.f32 %v263, 0.0
      %v272 = vmax.f32 %v264, 0.0
      %v273 = vmax.f32 %v265, 0.0
      %v274 = vmax.f32 %v266, 0.0
      %v275 = vmax.f32 %v267, 0.0
      %v276 = vmax.f32 %v268, 0.0
      %v277 = vmax.f32 %v269, 0.0
      %286 = vrot.lane.b32.xlu0 %v270, 1
      %v287 = vpop.permute.xlu0 %286
      %288 = vrot.lane.b32.xlu0 %v271, 1
      %v289 = vpop.permute.xlu0 %288
      %290 = vrot.lane.b32.xlu0 %v272, 1
      %v291 = vpop.permute.xlu0 %290
      %292 = vrot.lane.b32.xlu0 %v273, 1
      %v293 = vpop.permute.xlu0 %292
      %294 = vrot.lane.b32.xlu0 %v274, 1
      %v295 = vpop.permute.xlu0 %294
      %296 = vrot.lane.b32.xlu0 %v275, 1
      %v297 = vpop.permute.xlu0 %296
      %298 = vrot.lane.b32.xlu0 %v276, 1
      %v299 = vpop.permute.xlu0 %298
      %300 = vrot.lane.b32.xlu0 %v277, 1
      %v301 = vpop.permute.xlu0 %300
      %vm310 = vcmask 138248
      %311 = vst.msk [vmem:[#allocation2 + $0x1] sm:$0xff] %vm310, %v287
      %312 = vst.msk [vmem:[#allocation2 + $0x9] sm:$0xff] %vm310, %v289
      %313 = vst.msk [vmem:[#allocation2 + $0x19] sm:$0xff] %vm310, %v291
      %314 = vst.msk [vmem:[#allocation2 + $0x21] sm:$0xff] %vm310, %v293
      %315 = vst.msk [vmem:[#allocation2 + $0x31] sm:$0xff] %vm310, %v295
      %316 = vst.msk [vmem:[#allocation2 + $0x39] sm:$0xff] %vm310, %v297
      %317 = vst.msk [vmem:[#allocation2 + $0x49] sm:$0xff] %vm310, %v299
      %318 = vst.msk [vmem:[#allocation2 + $0x51] sm:$0xff] %vm310, %v301
      %v319 = vld [vmem:[#allocation2] sm:$0xff]
      %v320 = vld [vmem:[#allocation2 + $0x8] sm:$0xff]
      %v321 = vld [vmem:[#allocation2 + $0x10] sm:$0x3]
      %v322 = vld [vmem:[#allocation2 + $0x18] sm:$0xff]
      %v323 = vld [vmem:[#allocation2 + $0x20] sm:$0xff]
      %v324 = vld [vmem:[#allocation2 + $0x28] sm:$0x3]
      %v325 = vld [vmem:[#allocation2 + $0x30] sm:$0xff]
      %v326 = vld [vmem:[#allocation2 + $0x38] sm:$0xff]
      %v327 = vld [vmem:[#allocation2 + $0x40] sm:$0x3]
      %v328 = vld [vmem:[#allocation2 + $0x48] sm:$0xff]
      %v329 = vld [vmem:[#allocation2 + $0x50] sm:$0xff]
      %v330 = vld [vmem:[#allocation2 + $0x58] sm:$0x3]
      %v331 = vrot.slane %v325, 4
      %vm332 = vcmask 1047556
      %v333 = vsel %vm332, %v331, %v319
      %v334 = vrot.slane %v319, 4
      %v335 = vsel %vm332, %v325, %v334
      %v337 = vunpack.c.l.s4 1983009808
      %v338 = vunpack.c.0.s8 %v337
      %v339 = vperm.slane %v333, %v338
      %v341 = vunpack.c.l.s4 1983009808
      %v342 = vunpack.c.0.s8 %v341
      %v343 = vperm.slane %v335, %v342
      %v344 = vrot.slane %v328, 4
      %v345 = vsel %vm332, %v344, %v322
      %v346 = vrot.slane %v322, 4
      %v347 = vsel %vm332, %v328, %v346
      %v349 = vunpack.c.l.s4 1983009808
      %v350 = vunpack.c.0.s8 %v349
      %v351 = vperm.slane %v345, %v350
      %v353 = vunpack.c.l.s4 1983009808
      %v354 = vunpack.c.0.s8 %v353
      %v355 = vperm.slane %v347, %v354
      %v356 = vrot.slane %v351, 4
      %v357 = vsel %vm332, %v356, %v339
      %v358 = vrot.slane %v339, 4
      %v359 = vsel %vm332, %v351, %v358
      %v361 = vunpack.c.l.s4 1934713408
      %v362 = vunpack.c.0.s8 %v361
      %v363 = vperm.slane %v357, %v362
      %v365 = vunpack.c.l.s4 1934713408
      %v366 = vunpack.c.0.s8 %v365
      %v367 = vperm.slane %v359, %v366
      %v368 = vrot.slane %v355, 4
      %v369 = vsel %vm332, %v368, %v343
      %v370 = vrot.slane %v343, 4
      %v371 = vsel %vm332, %v355, %v370
      %v373 = vunpack.c.l.s4 1934713408
      %v374 = vunpack.c.0.s8 %v373
      %v375 = vperm.slane %v369, %v374
      %v377 = vunpack.c.l.s4 1934713408
      %v378 = vunpack.c.0.s8 %v377
      %v379 = vperm.slane %v371, %v378
      %v380 = vrot.slane %v363, 4
      %v381 = vsel %vm332, 0.0, %v380
      %v382 = vrot.slane %v367, 4
      %v383 = vsel %vm332, 0.0, %v382
      %v384 = vrot.slane %v375, 4
      %v385 = vsel %vm332, 0.0, %v384
      %v386 = vrot.slane %v379, 4
      %v387 = vsel %vm332, 0.0, %v386
      %v388 = vrot.slane %v326, 4
      %v389 = vsel %vm332, %v388, %v320
      %v390 = vrot.slane %v320, 4
      %v391 = vsel %vm332, %v326, %v390
      %v393 = vunpack.c.l.s4 1983009808
      %v394 = vunpack.c.0.s8 %v393
      %v395 = vperm.slane %v389, %v394
      %v397 = vunpack.c.l.s4 1983009808
      %v398 = vunpack.c.0.s8 %v397
      %v399 = vperm.slane %v391, %v398
      %v400 = vrot.slane %v329, 4
      %v401 = vsel %vm332, %v400, %v323
      %v402 = vrot.slane %v323, 4
      %v403 = vsel %vm332, %v329, %v402
      %v405 = vunpack.c.l.s4 1983009808
      %v406 = vunpack.c.0.s8 %v405
      %v407 = vperm.slane %v401, %v406
      %v409 = vunpack.c.l.s4 1983009808
      %v410 = vunpack.c.0.s8 %v409
      %v411 = vperm.slane %v403, %v410
      %v412 = vrot.slane %v407, 4
      %v413 = vsel %vm332, %v412, %v395
      %v414 = vrot.slane %v395, 4
      %v415 = vsel %vm332, %v407, %v414
      %v417 = vunpack.c.l.s4 1934713408
      %v418 = vunpack.c.0.s8 %v417
      %v419 = vperm.slane %v413, %v418
      %v421 = vunpack.c.l.s4 1934713408
      %v422 = vunpack.c.0.s8 %v421
      %v423 = vperm.slane %v415, %v422
      %v424 = vrot.slane %v411, 4
      %v425 = vsel %vm332, %v424, %v399
      %v426 = vrot.slane %v399, 4
      %v427 = vsel %vm332, %v411, %v426
      %v429 = vunpack.c.l.s4 1934713408
      %v430 = vunpack.c.0.s8 %v429
      %v431 = vperm.slane %v425, %v430
      %v433 = vunpack.c.l.s4 1934713408
      %v434 = vunpack.c.0.s8 %v433
      %v435 = vperm.slane %v427, %v434
      %v436 = vrot.slane %v419, 4
      %v437 = vsel %vm332, 0.0, %v436
      %v438 = vrot.slane %v423, 4
      %v439 = vsel %vm332, 0.0, %v438
      %v440 = vrot.slane %v431, 4
      %v441 = vsel %vm332, 0.0, %v440
      %v442 = vrot.slane %v435, 4
      %v443 = vsel %vm332, 0.0, %v442
      %445 = vrot.lane.b32.xlu0 %v381, 16
      %v446 = vpop.permute.xlu0 %445
      %449 = vrot.lane.b32.xlu0 %v367, 32
      %v450 = vpop.permute.xlu0 %449
      %453 = vrot.lane.b32.xlu0 %v383, 48
      %v454 = vpop.permute.xlu0 %453
      %457 = vrot.lane.b32.xlu0 %v375, 64
      %v458 = vpop.permute.xlu0 %457
      %461 = vrot.lane.b32.xlu0 %v385, 80
      %v462 = vpop.permute.xlu0 %461
      %465 = vrot.lane.b32.xlu0 %v379, 96
      %v466 = vpop.permute.xlu0 %465
      %469 = vrot.lane.b32.xlu0 %v387, 112
      %v470 = vpop.permute.xlu0 %469
      %473 = vrot.lane.b32.xlu0 %v437, 16
      %v474 = vpop.permute.xlu0 %473
      %477 = vrot.lane.b32.xlu0 %v423, 32
      %v478 = vpop.permute.xlu0 %477
      %481 = vrot.lane.b32.xlu0 %v439, 48
      %v482 = vpop.permute.xlu0 %481
      %485 = vrot.lane.b32.xlu0 %v431, 64
      %v486 = vpop.permute.xlu0 %485
      %489 = vrot.lane.b32.xlu0 %v441, 80
      %v490 = vpop.permute.xlu0 %489
      %493 = vrot.lane.b32.xlu0 %v435, 96
      %v494 = vpop.permute.xlu0 %493
      %497 = vrot.lane.b32.xlu0 %v443, 112
      %v498 = vpop.permute.xlu0 %497
      %vm500 = vcmask 130048
      %v501 = vsel %vm500, %v363, %v446
      %vm502 = vcmask 261120
      %v503 = vsel %vm502, %v501, %v450
      %vm504 = vcmask 392192
      %v505 = vsel %vm504, %v503, %v454
      %vm506 = vcmask 523264
      %v507 = vsel %vm506, %v505, %v458
      %vm508 = vcmask 654336
      %v509 = vsel %vm508, %v507, %v462
      %vm510 = vcmask 785408
      %v511 = vsel %vm510, %v509, %v466
      %vm512 = vcmask 916480
      %v513 = vsel %vm512, %v511, %v470
      %v514 = vsel %vm500, %v419, %v474
      %v515 = vsel %vm502, %v514, %v478
      %v516 = vsel %vm504, %v515, %v482
      %v517 = vsel %vm506, %v516, %v486
      %v518 = vsel %vm508, %v517, %v490
      %v519 = vsel %vm510, %v518, %v494
      %v520 = vsel %vm512, %v519, %v498
      %529 = vrot.lane.b32.xlu0 %v319, 127
      %v530 = vpop.permute.xlu0 %529
      %531 = vrot.lane.b32.xlu0 %v320, 127
      %v532 = vpop.permute.xlu0 %531
      %533 = vrot.lane.b32.xlu0 %v322, 127
      %v534 = vpop.permute.xlu0 %533
      %535 = vrot.lane.b32.xlu0 %v323, 127
      %v536 = vpop.permute.xlu0 %535
      %537 = vrot.lane.b32.xlu0 %v325, 127
      %v538 = vpop.permute.xlu0 %537
      %539 = vrot.lane.b32.xlu0 %v326, 127
      %v540 = vpop.permute.xlu0 %539
      %541 = vrot.lane.b32.xlu0 %v328, 127
      %v542 = vpop.permute.xlu0 %541
      %543 = vrot.lane.b32.xlu0 %v329, 127
      %v544 = vpop.permute.xlu0 %543
      %v553 = vrot.slane %v538, 4
      %v554 = vsel %vm332, %v553, %v530
      %v555 = vrot.slane %v530, 4
      %v556 = vsel %vm332, %v538, %v555
      %v558 = vunpack.c.l.s4 1983009808
      %v559 = vunpack.c.0.s8 %v558
      %v560 = vperm.slane %v554, %v559
      %v562 = vunpack.c.l.s4 1983009808
      %v563 = vunpack.c.0.s8 %v562
      %v564 = vperm.slane %v556, %v563
      %v565 = vrot.slane %v542, 4
      %v566 = vsel %vm332, %v565, %v534
      %v567 = vrot.slane %v534, 4
      %v568 = vsel %vm332, %v542, %v567
      %v570 = vunpack.c.l.s4 1983009808
      %v571 = vunpack.c.0.s8 %v570
      %v572 = vperm.slane %v566, %v571
      %v574 = vunpack.c.l.s4 1983009808
      %v575 = vunpack.c.0.s8 %v574
      %v576 = vperm.slane %v568, %v575
      %v577 = vrot.slane %v572, 4
      %v578 = vsel %vm332, %v577, %v560
      %v579 = vrot.slane %v560, 4
      %v580 = vsel %vm332, %v572, %v579
      %v582 = vunpack.c.l.s4 1934713408
      %v583 = vunpack.c.0.s8 %v582
      %v584 = vperm.slane %v578, %v583
      %v586 = vunpack.c.l.s4 1934713408
      %v587 = vunpack.c.0.s8 %v586
      %v588 = vperm.slane %v580, %v587
      %v589 = vrot.slane %v576, 4
      %v590 = vsel %vm332, %v589, %v564
      %v591 = vrot.slane %v564, 4
      %v592 = vsel %vm332, %v576, %v591
      %v594 = vunpack.c.l.s4 1934713408
      %v595 = vunpack.c.0.s8 %v594
      %v596 = vperm.slane %v590, %v595
      %v598 = vunpack.c.l.s4 1934713408
      %v599 = vunpack.c.0.s8 %v598
      %v600 = vperm.slane %v592, %v599
      %v601 = vrot.slane %v584, 4
      %v602 = vsel %vm332, 0.0, %v601
      %v603 = vrot.slane %v588, 4
      %v604 = vsel %vm332, 0.0, %v603
      %v605 = vrot.slane %v596, 4
      %v606 = vsel %vm332, 0.0, %v605
      %v607 = vrot.slane %v600, 4
      %v608 = vsel %vm332, 0.0, %v607
      %v609 = vrot.slane %v540, 4
      %v610 = vsel %vm332, %v609, %v532
      %v611 = vrot.slane %v532, 4
      %v612 = vsel %vm332, %v540, %v611
      %v614 = vunpack.c.l.s4 1983009808
      %v615 = vunpack.c.0.s8 %v614
      %v616 = vperm.slane %v610, %v615
      %v618 = vunpack.c.l.s4 1983009808
      %v619 = vunpack.c.0.s8 %v618
      %v620 = vperm.slane %v612, %v619
      %v621 = vrot.slane %v544, 4
      %v622 = vsel %vm332, %v621, %v536
      %v623 = vrot.slane %v536, 4
      %v624 = vsel %vm332, %v544, %v623
      %v626 = vunpack.c.l.s4 1983009808
      %v627 = vunpack.c.0.s8 %v626
      %v628 = vperm.slane %v622, %v627
      %v630 = vunpack.c.l.s4 1983009808
      %v631 = vunpack.c.0.s8 %v630
      %v632 = vperm.slane %v624, %v631
      %v633 = vrot.slane %v628, 4
      %v634 = vsel %vm332, %v633, %v616
      %v635 = vrot.slane %v616, 4
      %v636 = vsel %vm332, %v628, %v635
      %v638 = vunpack.c.l.s4 1934713408
      %v639 = vunpack.c.0.s8 %v638
      %v640 = vperm.slane %v634, %v639
      %v642 = vunpack.c.l.s4 1934713408
      %v643 = vunpack.c.0.s8 %v642
      %v644 = vperm.slane %v636, %v643
      %v645 = vrot.slane %v632, 4
      %v646 = vsel %vm332, %v645, %v620
      %v647 = vrot.slane %v620, 4
      %v648 = vsel %vm332, %v632, %v647
      %v650 = vunpack.c.l.s4 1934713408
      %v651 = vunpack.c.0.s8 %v650
      %v652 = vperm.slane %v646, %v651
      %v654 = vunpack.c.l.s4 1934713408
      %v655 = vunpack.c.0.s8 %v654
      %v656 = vperm.slane %v648, %v655
      %v657 = vrot.slane %v640, 4
      %v658 = vsel %vm332, 0.0, %v657
      %v659 = vrot.slane %v644, 4
      %v660 = vsel %vm332, 0.0, %v659
      %v661 = vrot.slane %v652, 4
      %v662 = vsel %vm332, 0.0, %v661
      %v663 = vrot.slane %v656, 4
      %v664 = vsel %vm332, 0.0, %v663
      %666 = vrot.lane.b32.xlu0 %v602, 16
      %v667 = vpop.permute.xlu0 %666
      %670 = vrot.lane.b32.xlu0 %v588, 32
      %v671 = vpop.permute.xlu0 %670
      %674 = vrot.lane.b32.xlu0 %v604, 48
      %v675 = vpop.permute.xlu0 %674
      %678 = vrot.lane.b32.xlu0 %v596, 64
      %v679 = vpop.permute.xlu0 %678
      %682 = vrot.lane.b32.xlu0 %v606, 80
      %v683 = vpop.permute.xlu0 %682
      %686 = vrot.lane.b32.xlu0 %v600, 96
      %v687 = vpop.permute.xlu0 %686
      %690 = vrot.lane.b32.xlu0 %v608, 112
      %v691 = vpop.permute.xlu0 %690
      %694 = vrot.lane.b32.xlu0 %v658, 16
      %v695 = vpop.permute.xlu0 %694
      %698 = vrot.lane.b32.xlu0 %v644, 32
      %v699 = vpop.permute.xlu0 %698
      %702 = vrot.lane.b32.xlu0 %v660, 48
      %v703 = vpop.permute.xlu0 %702
      %706 = vrot.lane.b32.xlu0 %v652, 64
      %v707 = vpop.permute.xlu0 %706
      %710 = vrot.lane.b32.xlu0 %v662, 80
      %v711 = vpop.permute.xlu0 %710
      %714 = vrot.lane.b32.xlu0 %v656, 96
      %v715 = vpop.permute.xlu0 %714
      %718 = vrot.lane.b32.xlu0 %v664, 112
      %v719 = vpop.permute.xlu0 %718
      %v721 = vsel %vm500, %v584, %v667
      %v722 = vsel %vm502, %v721, %v671
      %v723 = vsel %vm504, %v722, %v675
      %v724 = vsel %vm506, %v723, %v679
      %v725 = vsel %vm508, %v724, %v683
      %v726 = vsel %vm510, %v725, %v687
      %v727 = vsel %vm512, %v726, %v691
      %v728 = vsel %vm500, %v640, %v695
      %v729 = vsel %vm502, %v728, %v699
      %v730 = vsel %vm504, %v729, %v703
      %v731 = vsel %vm506, %v730, %v707
      %v732 = vsel %vm508, %v731, %v711
      %v733 = vsel %vm510, %v732, %v715
      %v734 = vsel %vm512, %v733, %v719
      %735 = vrot.lane.b32.xlu0 %v319, 126
      %v736 = vpop.permute.xlu0 %735
      %737 = vrot.lane.b32.xlu0 %v320, 126
      %v738 = vpop.permute.xlu0 %737
      %739 = vrot.lane.b32.xlu0 %v322, 126
      %v740 = vpop.permute.xlu0 %739
      %741 = vrot.lane.b32.xlu0 %v323, 126
      %v742 = vpop.permute.xlu0 %741
      %743 = vrot.lane.b32.xlu0 %v325, 126
      %v744 = vpop.permute.xlu0 %743
      %745 = vrot.lane.b32.xlu0 %v326, 126
      %v746 = vpop.permute.xlu0 %745
      %747 = vrot.lane.b32.xlu0 %v328, 126
      %v748 = vpop.permute.xlu0 %747
      %749 = vrot.lane.b32.xlu0 %v329, 126
      %v750 = vpop.permute.xlu0 %749
      %v759 = vrot.slane %v744, 4
      %v760 = vsel %vm332, %v759, %v736
      %v761 = vrot.slane %v736, 4
      %v762 = vsel %vm332, %v744, %v761
      %v764 = vunpack.c.l.s4 1983009808
      %v765 = vunpack.c.0.s8 %v764
      %v766 = vperm.slane %v760, %v765
      %v768 = vunpack.c.l.s4 1983009808
      %v769 = vunpack.c.0.s8 %v768
      %v770 = vperm.slane %v762, %v769
      %v771 = vrot.slane %v748, 4
      %v772 = vsel %vm332, %v771, %v740
      %v773 = vrot.slane %v740, 4
      %v774 = vsel %vm332, %v748, %v773
      %v776 = vunpack.c.l.s4 1983009808
      %v777 = vunpack.c.0.s8 %v776
      %v778 = vperm.slane %v772, %v777
      %v780 = vunpack.c.l.s4 1983009808
      %v781 = vunpack.c.0.s8 %v780
      %v782 = vperm.slane %v774, %v781
      %v783 = vrot.slane %v778, 4
      %v784 = vsel %vm332, %v783, %v766
      %v785 = vrot.slane %v766, 4
      %v786 = vsel %vm332, %v778, %v785
      %v788 = vunpack.c.l.s4 1934713408
      %v789 = vunpack.c.0.s8 %v788
      %v790 = vperm.slane %v784, %v789
      %v792 = vunpack.c.l.s4 1934713408
      %v793 = vunpack.c.0.s8 %v792
      %v794 = vperm.slane %v786, %v793
      %v795 = vrot.slane %v782, 4
      %v796 = vsel %vm332, %v795, %v770
      %v797 = vrot.slane %v770, 4
      %v798 = vsel %vm332, %v782, %v797
      %v800 = vunpack.c.l.s4 1934713408
      %v801 = vunpack.c.0.s8 %v800
      %v802 = vperm.slane %v796, %v801
      %v804 = vunpack.c.l.s4 1934713408
      %v805 = vunpack.c.0.s8 %v804
      %v806 = vperm.slane %v798, %v805
      %v807 = vrot.slane %v790, 4
      %v808 = vsel %vm332, 0.0, %v807
      %v809 = vrot.slane %v794, 4
      %v810 = vsel %vm332, 0.0, %v809
      %v811 = vrot.slane %v802, 4
      %v812 = vsel %vm332, 0.0, %v811
      %v813 = vrot.slane %v806, 4
      %v814 = vsel %vm332, 0.0, %v813
      %v815 = vrot.slane %v746, 4
      %v816 = vsel %vm332, %v815, %v738
      %v817 = vrot.slane %v738, 4
      %v818 = vsel %vm332, %v746, %v817
      %v820 = vunpack.c.l.s4 1983009808
      %v821 = vunpack.c.0.s8 %v820
      %v822 = vperm.slane %v816, %v821
      %v824 = vunpack.c.l.s4 1983009808
      %v825 = vunpack.c.0.s8 %v824
      %v826 = vperm.slane %v818, %v825
      %v827 = vrot.slane %v750, 4
      %v828 = vsel %vm332, %v827, %v742
      %v829 = vrot.slane %v742, 4
      %v830 = vsel %vm332, %v750, %v829
      %v832 = vunpack.c.l.s4 1983009808
      %v833 = vunpack.c.0.s8 %v832
      %v834 = vperm.slane %v828, %v833
      %v836 = vunpack.c.l.s4 1983009808
      %v837 = vunpack.c.0.s8 %v836
      %v838 = vperm.slane %v830, %v837
      %v839 = vrot.slane %v834, 4
      %v840 = vsel %vm332, %v839, %v822
      %v841 = vrot.slane %v822, 4
      %v842 = vsel %vm332, %v834, %v841
      %v844 = vunpack.c.l.s4 1934713408
      %v845 = vunpack.c.0.s8 %v844
      %v846 = vperm.slane %v840, %v845
      %v848 = vunpack.c.l.s4 1934713408
      %v849 = vunpack.c.0.s8 %v848
      %v850 = vperm.slane %v842, %v849
      %v851 = vrot.slane %v838, 4
      %v852 = vsel %vm332, %v851, %v826
      %v853 = vrot.slane %v826, 4
      %v854 = vsel %vm332, %v838, %v853
      %v856 = vunpack.c.l.s4 1934713408
      %v857 = vunpack.c.0.s8 %v856
      %v858 = vperm.slane %v852, %v857
      %v860 = vunpack.c.l.s4 1934713408
      %v861 = vunpack.c.0.s8 %v860
      %v862 = vperm.slane %v854, %v861
      %v863 = vrot.slane %v846, 4
      %v864 = vsel %vm332, 0.0, %v863
      %v865 = vrot.slane %v850, 4
      %v866 = vsel %vm332, 0.0, %v865
      %v867 = vrot.slane %v858, 4
      %v868 = vsel %vm332, 0.0, %v867
      %v869 = vrot.slane %v862, 4
      %v870 = vsel %vm332, 0.0, %v869
      %872 = vrot.lane.b32.xlu0 %v808, 16
      %v873 = vpop.permute.xlu0 %872
      %876 = vrot.lane.b32.xlu0 %v794, 32
      %v877 = vpop.permute.xlu0 %876
      %880 = vrot.lane.b32.xlu0 %v810, 48
      %v881 = vpop.permute.xlu0 %880
      %884 = vrot.lane.b32.xlu0 %v802, 64
      %v885 = vpop.permute.xlu0 %884
      %888 = vrot.lane.b32.xlu0 %v812, 80
      %v889 = vpop.permute.xlu0 %888
      %892 = vrot.lane.b32.xlu0 %v806, 96
      %v893 = vpop.permute.xlu0 %892
      %896 = vrot.lane.b32.xlu0 %v814, 112
      %v897 = vpop.permute.xlu0 %896
      %900 = vrot.lane.b32.xlu0 %v864, 16
      %v901 = vpop.permute.xlu0 %900
      %904 = vrot.lane.b32.xlu0 %v850, 32
      %v905 = vpop.permute.xlu0 %904
      %908 = vrot.lane.b32.xlu0 %v866, 48
      %v909 = vpop.permute.xlu0 %908
      %912 = vrot.lane.b32.xlu0 %v858, 64
      %v913 = vpop.permute.xlu0 %912
      %916 = vrot.lane.b32.xlu0 %v868, 80
      %v917 = vpop.permute.xlu0 %916
      %920 = vrot.lane.b32.xlu0 %v862, 96
      %v921 = vpop.permute.xlu0 %920
      %924 = vrot.lane.b32.xlu0 %v870, 112
      %v925 = vpop.permute.xlu0 %924
      %v927 = vsel %vm500, %v790, %v873
      %v928 = vsel %vm502, %v927, %v877
      %v929 = vsel %vm504, %v928, %v881
      %v930 = vsel %vm506, %v929, %v885
      %v931 = vsel %vm508, %v930, %v889
      %v932 = vsel %vm510, %v931, %v893
      %v933 = vsel %vm512, %v932, %v897
      %v934 = vsel %vm500, %v846, %v901
      %v935 = vsel %vm502, %v934, %v905
      %v936 = vsel %vm504, %v935, %v909
      %v937 = vsel %vm506, %v936, %v913
      %v938 = vsel %vm508, %v937, %v917
      %v939 = vsel %vm510, %v938, %v921
      %v940 = vsel %vm512, %v939, %v925
      %vm945 = vcmask 1046528
      %v946 = vrot.slane %v319, 1
      %v947 = vrot.slane %v320, 1
      %v948 = vsel %vm945, %v946, %v947
      %v949 = vrot.slane %v321, 1
      %v950 = vsel %vm945, %v947, %v949
      %v951 = vrot.slane %v322, 1
      %v952 = vrot.slane %v323, 1
      %v953 = vsel %vm945, %v951, %v952
      %v954 = vrot.slane %v324, 1
      %v955 = vsel %vm945, %v952, %v954
      %v956 = vrot.slane %v325, 1
      %v957 = vrot.slane %v326, 1
      %v958 = vsel %vm945, %v956, %v957
      %v959 = vrot.slane %v327, 1
      %v960 = vsel %vm945, %v957, %v959
      %v961 = vrot.slane %v328, 1
      %v962 = vrot.slane %v329, 1
      %v963 = vsel %vm945, %v961, %v962
      %v964 = vrot.slane %v330, 1
      %v965 = vsel %vm945, %v962, %v964
      %v974 = vrot.slane %v958, 4
      %v975 = vsel %vm332, %v974, %v948
      %v976 = vrot.slane %v948, 4
      %v977 = vsel %vm332, %v958, %v976
      %v979 = vunpack.c.l.s4 1983009808
      %v980 = vunpack.c.0.s8 %v979
      %v981 = vperm.slane %v975, %v980
      %v983 = vunpack.c.l.s4 1983009808
      %v984 = vunpack.c.0.s8 %v983
      %v985 = vperm.slane %v977, %v984
      %v986 = vrot.slane %v963, 4
      %v987 = vsel %vm332, %v986, %v953
      %v988 = vrot.slane %v953, 4
      %v989 = vsel %vm332, %v963, %v988
      %v991 = vunpack.c.l.s4 1983009808
      %v992 = vunpack.c.0.s8 %v991
      %v993 = vperm.slane %v987, %v992
      %v995 = vunpack.c.l.s4 1983009808
      %v996 = vunpack.c.0.s8 %v995
      %v997 = vperm.slane %v989, %v996
      %v998 = vrot.slane %v993, 4
      %v999 = vsel %vm332, %v998, %v981
      %v1000 = vrot.slane %v981, 4
      %v1001 = vsel %vm332, %v993, %v1000
      %v1003 = vunpack.c.l.s4 1934713408
      %v1004 = vunpack.c.0.s8 %v1003
      %v1005 = vperm.slane %v999, %v1004
      %v1007 = vunpack.c.l.s4 1934713408
      %v1008 = vunpack.c.0.s8 %v1007
      %v1009 = vperm.slane %v1001, %v1008
      %v1010 = vrot.slane %v997, 4
      %v1011 = vsel %vm332, %v1010, %v985
      %v1012 = vrot.slane %v985, 4
      %v1013 = vsel %vm332, %v997, %v1012
      %v1015 = vunpack.c.l.s4 1934713408
      %v1016 = vunpack.c.0.s8 %v1015
      %v1017 = vperm.slane %v1011, %v1016
      %v1019 = vunpack.c.l.s4 1934713408
      %v1020 = vunpack.c.0.s8 %v1019
      %v1021 = vperm.slane %v1013, %v1020
      %v1022 = vrot.slane %v1005, 4
      %v1023 = vsel %vm332, 0.0, %v1022
      %v1024 = vrot.slane %v1009, 4
      %v1025 = vsel %vm332, 0.0, %v1024
      %v1026 = vrot.slane %v1017, 4
      %v1027 = vsel %vm332, 0.0, %v1026
      %v1028 = vrot.slane %v1021, 4
      %v1029 = vsel %vm332, 0.0, %v1028
      %v1030 = vrot.slane %v960, 4
      %v1031 = vsel %vm332, %v1030, %v950
      %v1032 = vrot.slane %v950, 4
      %v1033 = vsel %vm332, %v960, %v1032
      %v1035 = vunpack.c.l.s4 1983009808
      %v1036 = vunpack.c.0.s8 %v1035
      %v1037 = vperm.slane %v1031, %v1036
      %v1039 = vunpack.c.l.s4 1983009808
      %v1040 = vunpack.c.0.s8 %v1039
      %v1041 = vperm.slane %v1033, %v1040
      %v1042 = vrot.slane %v965, 4
      %v1043 = vsel %vm332, %v1042, %v955
      %v1044 = vrot.slane %v955, 4
      %v1045 = vsel %vm332, %v965, %v1044
      %v1047 = vunpack.c.l.s4 1983009808
      %v1048 = vunpack.c.0.s8 %v1047
      %v1049 = vperm.slane %v1043, %v1048
      %v1051 = vunpack.c.l.s4 1983009808
      %v1052 = vunpack.c.0.s8 %v1051
      %v1053 = vperm.slane %v1045, %v1052
      %v1054 = vrot.slane %v1049, 4
      %v1055 = vsel %vm332, %v1054, %v1037
      %v1056 = vrot.slane %v1037, 4
      %v1057 = vsel %vm332, %v1049, %v1056
      %v1059 = vunpack.c.l.s4 1934713408
      %v1060 = vunpack.c.0.s8 %v1059
      %v1061 = vperm.slane %v1055, %v1060
      %v1063 = vunpack.c.l.s4 1934713408
      %v1064 = vunpack.c.0.s8 %v1063
      %v1065 = vperm.slane %v1057, %v1064
      %v1066 = vrot.slane %v1053, 4
      %v1067 = vsel %vm332, %v1066, %v1041
      %v1068 = vrot.slane %v1041, 4
      %v1069 = vsel %vm332, %v1053, %v1068
      %v1071 = vunpack.c.l.s4 1934713408
      %v1072 = vunpack.c.0.s8 %v1071
      %v1073 = vperm.slane %v1067, %v1072
      %v1075 = vunpack.c.l.s4 1934713408
      %v1076 = vunpack.c.0.s8 %v1075
      %v1077 = vperm.slane %v1069, %v1076
      %v1078 = vrot.slane %v1061, 4
      %v1079 = vsel %vm332, 0.0, %v1078
      %v1080 = vrot.slane %v1065, 4
      %v1081 = vsel %vm332, 0.0, %v1080
      %v1082 = vrot.slane %v1073, 4
      %v1083 = vsel %vm332, 0.0, %v1082
      %v1084 = vrot.slane %v1077, 4
      %v1085 = vsel %vm332, 0.0, %v1084
      %1087 = vrot.lane.b32.xlu0 %v1023, 16
      %v1088 = vpop.permute.xlu0 %1087
      %1091 = vrot.lane.b32.xlu0 %v1009, 32
      %v1092 = vpop.permute.xlu0 %1091
      %1095 = vrot.lane.b32.xlu0 %v1025, 48
      %v1096 = vpop.permute.xlu0 %1095
      %1099 = vrot.lane.b32.xlu0 %v1017, 64
      %v1100 = vpop.permute.xlu0 %1099
      %1103 = vrot.lane.b32.xlu0 %v1027, 80
      %v1104 = vpop.permute.xlu0 %1103
      %1107 = vrot.lane.b32.xlu0 %v1021, 96
      %v1108 = vpop.permute.xlu0 %1107
      %1111 = vrot.lane.b32.xlu0 %v1029, 112
      %v1112 = vpop.permute.xlu0 %1111
      %1115 = vrot.lane.b32.xlu0 %v1079, 16
      %v1116 = vpop.permute.xlu0 %1115
      %1119 = vrot.lane.b32.xlu0 %v1065, 32
      %v1120 = vpop.permute.xlu0 %1119
      %1123 = vrot.lane.b32.xlu0 %v1081, 48
      %v1124 = vpop.permute.xlu0 %1123
      %1127 = vrot.lane.b32.xlu0 %v1073, 64
      %v1128 = vpop.permute.xlu0 %1127
      %1131 = vrot.lane.b32.xlu0 %v1083, 80
      %v1132 = vpop.permute.xlu0 %1131
      %1135 = vrot.lane.b32.xlu0 %v1077, 96
      %v1136 = vpop.permute.xlu0 %1135
      %1139 = vrot.lane.b32.xlu0 %v1085, 112
      %v1140 = vpop.permute.xlu0 %1139
      %v1142 = vsel %vm500, %v1005, %v1088
      %v1143 = vsel %vm502, %v1142, %v1092
      %v1144 = vsel %vm504, %v1143, %v1096
      %v1145 = vsel %vm506, %v1144, %v1100
      %v1146 = vsel %vm508, %v1145, %v1104
      %v1147 = vsel %vm510, %v1146, %v1108
      %v1148 = vsel %vm512, %v1147, %v1112
      %v1149 = vsel %vm500, %v1061, %v1116
      %v1150 = vsel %vm502, %v1149, %v1120
      %v1151 = vsel %vm504, %v1150, %v1124
      %v1152 = vsel %vm506, %v1151, %v1128
      %v1153 = vsel %vm508, %v1152, %v1132
      %v1154 = vsel %vm510, %v1153, %v1136
      %v1155 = vsel %vm512, %v1154, %v1140
      %1156 = vrot.lane.b32.xlu0 %v948, 127
      %v1157 = vpop.permute.xlu0 %1156
      %1158 = vrot.lane.b32.xlu0 %v950, 127
      %v1159 = vpop.permute.xlu0 %1158
      %1160 = vrot.lane.b32.xlu0 %v953, 127
      %v1161 = vpop.permute.xlu0 %1160
      %1162 = vrot.lane.b32.xlu0 %v955, 127
      %v1163 = vpop.permute.xlu0 %1162
      %1164 = vrot.lane.b32.xlu0 %v958, 127
      %v1165 = vpop.permute.xlu0 %1164
      %1166 = vrot.lane.b32.xlu0 %v960, 127
      %v1167 = vpop.permute.xlu0 %1166
      %1168 = vrot.lane.b32.xlu0 %v963, 127
      %v1169 = vpop.permute.xlu0 %1168
      %1170 = vrot.lane.b32.xlu0 %v965, 127
      %v1171 = vpop.permute.xlu0 %1170
      %v1180 = vrot.slane %v1165, 4
      %v1181 = vsel %vm332, %v1180, %v1157
      %v1182 = vrot.slane %v1157, 4
      %v1183 = vsel %vm332, %v1165, %v1182
      %v1185 = vunpack.c.l.s4 1983009808
      %v1186 = vunpack.c.0.s8 %v1185
      %v1187 = vperm.slane %v1181, %v1186
      %v1189 = vunpack.c.l.s4 1983009808
      %v1190 = vunpack.c.0.s8 %v1189
      %v1191 = vperm.slane %v1183, %v1190
      %v1192 = vrot.slane %v1169, 4
      %v1193 = vsel %vm332, %v1192, %v1161
      %v1194 = vrot.slane %v1161, 4
      %v1195 = vsel %vm332, %v1169, %v1194
      %v1197 = vunpack.c.l.s4 1983009808
      %v1198 = vunpack.c.0.s8 %v1197
      %v1199 = vperm.slane %v1193, %v1198
      %v1201 = vunpack.c.l.s4 1983009808
      %v1202 = vunpack.c.0.s8 %v1201
      %v1203 = vperm.slane %v1195, %v1202
      %v1204 = vrot.slane %v1199, 4
      %v1205 = vsel %vm332, %v1204, %v1187
      %v1206 = vrot.slane %v1187, 4
      %v1207 = vsel %vm332, %v1199, %v1206
      %v1209 = vunpack.c.l.s4 1934713408
      %v1210 = vunpack.c.0.s8 %v1209
      %v1211 = vperm.slane %v1205, %v1210
      %v1213 = vunpack.c.l.s4 1934713408
      %v1214 = vunpack.c.0.s8 %v1213
      %v1215 = vperm.slane %v1207, %v1214
      %v1216 = vrot.slane %v1203, 4
      %v1217 = vsel %vm332, %v1216, %v1191
      %v1218 = vrot.slane %v1191, 4
      %v1219 = vsel %vm332, %v1203, %v1218
      %v1221 = vunpack.c.l.s4 1934713408
      %v1222 = vunpack.c.0.s8 %v1221
      %v1223 = vperm.slane %v1217, %v1222
      %v1225 = vunpack.c.l.s4 1934713408
      %v1226 = vunpack.c.0.s8 %v1225
      %v1227 = vperm.slane %v1219, %v1226
      %v1228 = vrot.slane %v1211, 4
      %v1229 = vsel %vm332, 0.0, %v1228
      %v1230 = vrot.slane %v1215, 4
      %v1231 = vsel %vm332, 0.0, %v1230
      %v1232 = vrot.slane %v1223, 4
      %v1233 = vsel %vm332, 0.0, %v1232
      %v1234 = vrot.slane %v1227, 4
      %v1235 = vsel %vm332, 0.0, %v1234
      %v1236 = vrot.slane %v1167, 4
      %v1237 = vsel %vm332, %v1236, %v1159
      %v1238 = vrot.slane %v1159, 4
      %v1239 = vsel %vm332, %v1167, %v1238
      %v1241 = vunpack.c.l.s4 1983009808
      %v1242 = vunpack.c.0.s8 %v1241
      %v1243 = vperm.slane %v1237, %v1242
      %v1245 = vunpack.c.l.s4 1983009808
      %v1246 = vunpack.c.0.s8 %v1245
      %v1247 = vperm.slane %v1239, %v1246
      %v1248 = vrot.slane %v1171, 4
      %v1249 = vsel %vm332, %v1248, %v1163
      %v1250 = vrot.slane %v1163, 4
      %v1251 = vsel %vm332, %v1171, %v1250
      %v1253 = vunpack.c.l.s4 1983009808
      %v1254 = vunpack.c.0.s8 %v1253
      %v1255 = vperm.slane %v1249, %v1254
      %v1257 = vunpack.c.l.s4 1983009808
      %v1258 = vunpack.c.0.s8 %v1257
      %v1259 = vperm.slane %v1251, %v1258
      %v1260 = vrot.slane %v1255, 4
      %v1261 = vsel %vm332, %v1260, %v1243
      %v1262 = vrot.slane %v1243, 4
      %v1263 = vsel %vm332, %v1255, %v1262
      %v1265 = vunpack.c.l.s4 1934713408
      %v1266 = vunpack.c.0.s8 %v1265
      %v1267 = vperm.slane %v1261, %v1266
      %v1269 = vunpack.c.l.s4 1934713408
      %v1270 = vunpack.c.0.s8 %v1269
      %v1271 = vperm.slane %v1263, %v1270
      %v1272 = vrot.slane %v1259, 4
      %v1273 = vsel %vm332, %v1272, %v1247
      %v1274 = vrot.slane %v1247, 4
      %v1275 = vsel %vm332, %v1259, %v1274
      %v1277 = vunpack.c.l.s4 1934713408
      %v1278 = vunpack.c.0.s8 %v1277
      %v1279 = vperm.slane %v1273, %v1278
      %v1281 = vunpack.c.l.s4 1934713408
      %v1282 = vunpack.c.0.s8 %v1281
      %v1283 = vperm.slane %v1275, %v1282
      %v1284 = vrot.slane %v1267, 4
      %v1285 = vsel %vm332, 0.0, %v1284
      %v1286 = vrot.slane %v1271, 4
      %v1287 = vsel %vm332, 0.0, %v1286
      %v1288 = vrot.slane %v1279, 4
      %v1289 = vsel %vm332, 0.0, %v1288
      %v1290 = vrot.slane %v1283, 4
      %v1291 = vsel %vm332, 0.0, %v1290
      %1293 = vrot.lane.b32.xlu0 %v1229, 16
      %v1294 = vpop.permute.xlu0 %1293
      %1297 = vrot.lane.b32.xlu0 %v1215, 32
      %v1298 = vpop.permute.xlu0 %1297
      %1301 = vrot.lane.b32.xlu0 %v1231, 48
      %v1302 = vpop.permute.xlu0 %1301
      %1305 = vrot.lane.b32.xlu0 %v1223, 64
      %v1306 = vpop.permute.xlu0 %1305
      %1309 = vrot.lane.b32.xlu0 %v1233, 80
      %v1310 = vpop.permute.xlu0 %1309
      %1313 = vrot.lane.b32.xlu0 %v1227, 96
      %v1314 = vpop.permute.xlu0 %1313
      %1317 = vrot.lane.b32.xlu0 %v1235, 112
      %v1318 = vpop.permute.xlu0 %1317
      %1321 = vrot.lane.b32.xlu0 %v1285, 16
      %v1322 = vpop.permute.xlu0 %1321
      %1325 = vrot.lane.b32.xlu0 %v1271, 32
      %v1326 = vpop.permute.xlu0 %1325
      %1329 = vrot.lane.b32.xlu0 %v1287, 48
      %v1330 = vpop.permute.xlu0 %1329
      %1333 = vrot.lane.b32.xlu0 %v1279, 64
      %v1334 = vpop.permute.xlu0 %1333
      %1337 = vrot.lane.b32.xlu0 %v1289, 80
      %v1338 = vpop.permute.xlu0 %1337
      %1341 = vrot.lane.b32.xlu0 %v1283, 96
      %v1342 = vpop.permute.xlu0 %1341
      %1345 = vrot.lane.b32.xlu0 %v1291, 112
      %v1346 = vpop.permute.xlu0 %1345
      %v1348 = vsel %vm500, %v1211, %v1294
      %v1349 = vsel %vm502, %v1348, %v1298
      %v1350 = vsel %vm504, %v1349, %v1302
      %v1351 = vsel %vm506, %v1350, %v1306
      %v1352 = vsel %vm508, %v1351, %v1310
      %v1353 = vsel %vm510, %v1352, %v1314
      %v1354 = vsel %vm512, %v1353, %v1318
      %v1355 = vsel %vm500, %v1267, %v1322
      %v1356 = vsel %vm502, %v1355, %v1326
      %v1357 = vsel %vm504, %v1356, %v1330
      %v1358 = vsel %vm506, %v1357, %v1334
      %v1359 = vsel %vm508, %v1358, %v1338
      %v1360 = vsel %vm510, %v1359, %v1342
      %v1361 = vsel %vm512, %v1360, %v1346
      %1362 = vrot.lane.b32.xlu0 %v948, 126
      %v1363 = vpop.permute.xlu0 %1362
      %1364 = vrot.lane.b32.xlu0 %v950, 126
      %v1365 = vpop.permute.xlu0 %1364
      %1366 = vrot.lane.b32.xlu0 %v953, 126
      %v1367 = vpop.permute.xlu0 %1366
      %1368 = vrot.lane.b32.xlu0 %v955, 126
      %v1369 = vpop.permute.xlu0 %1368
      %1370 = vrot.lane.b32.xlu0 %v958, 126
      %v1371 = vpop.permute.xlu0 %1370
      %1372 = vrot.lane.b32.xlu0 %v960, 126
      %v1373 = vpop.permute.xlu0 %1372
      %1374 = vrot.lane.b32.xlu0 %v963, 126
      %v1375 = vpop.permute.xlu0 %1374
      %1376 = vrot.lane.b32.xlu0 %v965, 126
      %v1377 = vpop.permute.xlu0 %1376
      %v1386 = vrot.slane %v1371, 4
      %v1387 = vsel %vm332, %v1386, %v1363
      %v1388 = vrot.slane %v1363, 4
      %v1389 = vsel %vm332, %v1371, %v1388
      %v1391 = vunpack.c.l.s4 1983009808
      %v1392 = vunpack.c.0.s8 %v1391
      %v1393 = vperm.slane %v1387, %v1392
      %v1395 = vunpack.c.l.s4 1983009808
      %v1396 = vunpack.c.0.s8 %v1395
      %v1397 = vperm.slane %v1389, %v1396
      %v1398 = vrot.slane %v1375, 4
      %v1399 = vsel %vm332, %v1398, %v1367
      %v1400 = vrot.slane %v1367, 4
      %v1401 = vsel %vm332, %v1375, %v1400
      %v1403 = vunpack.c.l.s4 1983009808
      %v1404 = vunpack.c.0.s8 %v1403
      %v1405 = vperm.slane %v1399, %v1404
      %v1407 = vunpack.c.l.s4 1983009808
      %v1408 = vunpack.c.0.s8 %v1407
      %v1409 = vperm.slane %v1401, %v1408
      %v1410 = vrot.slane %v1405, 4
      %v1411 = vsel %vm332, %v1410, %v1393
      %v1412 = vrot.slane %v1393, 4
      %v1413 = vsel %vm332, %v1405, %v1412
      %v1415 = vunpack.c.l.s4 1934713408
      %v1416 = vunpack.c.0.s8 %v1415
      %v1417 = vperm.slane %v1411, %v1416
      %v1419 = vunpack.c.l.s4 1934713408
      %v1420 = vunpack.c.0.s8 %v1419
      %v1421 = vperm.slane %v1413, %v1420
      %v1422 = vrot.slane %v1409, 4
      %v1423 = vsel %vm332, %v1422, %v1397
      %v1424 = vrot.slane %v1397, 4
      %v1425 = vsel %vm332, %v1409, %v1424
      %v1427 = vunpack.c.l.s4 1934713408
      %v1428 = vunpack.c.0.s8 %v1427
      %v1429 = vperm.slane %v1423, %v1428
      %v1431 = vunpack.c.l.s4 1934713408
      %v1432 = vunpack.c.0.s8 %v1431
      %v1433 = vperm.slane %v1425, %v1432
      %v1434 = vrot.slane %v1417, 4
      %v1435 = vsel %vm332, 0.0, %v1434
      %v1436 = vrot.slane %v1421, 4
      %v1437 = vsel %vm332, 0.0, %v1436
      %v1438 = vrot.slane %v1429, 4
      %v1439 = vsel %vm332, 0.0, %v1438
      %v1440 = vrot.slane %v1433, 4
      %v1441 = vsel %vm332, 0.0, %v1440
      %v1442 = vrot.slane %v1373, 4
      %v1443 = vsel %vm332, %v1442, %v1365
      %v1444 = vrot.slane %v1365, 4
      %v1445 = vsel %vm332, %v1373, %v1444
      %v1447 = vunpack.c.l.s4 1983009808
      %v1448 = vunpack.c.0.s8 %v1447
      %v1449 = vperm.slane %v1443, %v1448
      %v1451 = vunpack.c.l.s4 1983009808
      %v1452 = vunpack.c.0.s8 %v1451
      %v1453 = vperm.slane %v1445, %v1452
      %v1454 = vrot.slane %v1377, 4
      %v1455 = vsel %vm332, %v1454, %v1369
      %v1456 = vrot.slane %v1369, 4
      %v1457 = vsel %vm332, %v1377, %v1456
      %v1459 = vunpack.c.l.s4 1983009808
      %v1460 = vunpack.c.0.s8 %v1459
      %v1461 = vperm.slane %v1455, %v1460
      %v1463 = vunpack.c.l.s4 1983009808
      %v1464 = vunpack.c.0.s8 %v1463
      %v1465 = vperm.slane %v1457, %v1464
      %v1466 = vrot.slane %v1461, 4
      %v1467 = vsel %vm332, %v1466, %v1449
      %v1468 = vrot.slane %v1449, 4
      %v1469 = vsel %vm332, %v1461, %v1468
      %v1471 = vunpack.c.l.s4 1934713408
      %v1472 = vunpack.c.0.s8 %v1471
      %v1473 = vperm.slane %v1467, %v1472
      %v1475 = vunpack.c.l.s4 1934713408
      %v1476 = vunpack.c.0.s8 %v1475
      %v1477 = vperm.slane %v1469, %v1476
      %v1478 = vrot.slane %v1465, 4
      %v1479 = vsel %vm332, %v1478, %v1453
      %v1480 = vrot.slane %v1453, 4
      %v1481 = vsel %vm332, %v1465, %v1480
      %v1483 = vunpack.c.l.s4 1934713408
      %v1484 = vunpack.c.0.s8 %v1483
      %v1485 = vperm.slane %v1479, %v1484
      %v1487 = vunpack.c.l.s4 1934713408
      %v1488 = vunpack.c.0.s8 %v1487
      %v1489 = vperm.slane %v1481, %v1488
      %v1490 = vrot.slane %v1473, 4
      %v1491 = vsel %vm332, 0.0, %v1490
      %v1492 = vrot.slane %v1477, 4
      %v1493 = vsel %vm332, 0.0, %v1492
      %v1494 = vrot.slane %v1485, 4
      %v1495 = vsel %vm332, 0.0, %v1494
      %v1496 = vrot.slane %v1489, 4
      %v1497 = vsel %vm332, 0.0, %v1496
      %1499 = vrot.lane.b32.xlu0 %v1435, 16
      %v1500 = vpop.permute.xlu0 %1499
      %1503 = vrot.lane.b32.xlu0 %v1421, 32
      %v1504 = vpop.permute.xlu0 %1503
      %1507 = vrot.lane.b32.xlu0 %v1437, 48
      %v1508 = vpop.permute.xlu0 %1507
      %1511 = vrot.lane.b32.xlu0 %v1429, 64
      %v1512 = vpop.permute.xlu0 %1511
      %1515 = vrot.lane.b32.xlu0 %v1439, 80
      %v1516 = vpop.permute.xlu0 %1515
      %1519 = vrot.lane.b32.xlu0 %v1433, 96
      %v1520 = vpop.permute.xlu0 %1519
      %1523 = vrot.lane.b32.xlu0 %v1441, 112
      %v1524 = vpop.permute.xlu0 %1523
      %1527 = vrot.lane.b32.xlu0 %v1491, 16
      %v1528 = vpop.permute.xlu0 %1527
      %1531 = vrot.lane.b32.xlu0 %v1477, 32
      %v1532 = vpop.permute.xlu0 %1531
      %1535 = vrot.lane.b32.xlu0 %v1493, 48
      %v1536 = vpop.permute.xlu0 %1535
      %1539 = vrot.lane.b32.xlu0 %v1485, 64
      %v1540 = vpop.permute.xlu0 %1539
      %1543 = vrot.lane.b32.xlu0 %v1495, 80
      %v1544 = vpop.permute.xlu0 %1543
      %1547 = vrot.lane.b32.xlu0 %v1489, 96
      %v1548 = vpop.permute.xlu0 %1547
      %1551 = vrot.lane.b32.xlu0 %v1497, 112
      %v1552 = vpop.permute.xlu0 %1551
      %v1554 = vsel %vm500, %v1417, %v1500
      %v1555 = vsel %vm502, %v1554, %v1504
      %v1556 = vsel %vm504, %v1555, %v1508
      %v1557 = vsel %vm506, %v1556, %v1512
      %v1558 = vsel %vm508, %v1557, %v1516
      %v1559 = vsel %vm510, %v1558, %v1520
      %v1560 = vsel %vm512, %v1559, %v1524
      %v1561 = vsel %vm500, %v1473, %v1528
      %v1562 = vsel %vm502, %v1561, %v1532
      %v1563 = vsel %vm504, %v1562, %v1536
      %v1564 = vsel %vm506, %v1563, %v1540
      %v1565 = vsel %vm508, %v1564, %v1544
      %v1566 = vsel %vm510, %v1565, %v1548
      %v1567 = vsel %vm512, %v1566, %v1552
      %vm1568 = vcmask 1045504
      %v1569 = vrot.slane %v319, 2
      %v1570 = vrot.slane %v320, 2
      %v1571 = vsel %vm1568, %v1569, %v1570
      %v1572 = vrot.slane %v321, 2
      %v1573 = vsel %vm1568, %v1570, %v1572
      %v1574 = vrot.slane %v322, 2
      %v1575 = vrot.slane %v323, 2
      %v1576 = vsel %vm1568, %v1574, %v1575
      %v1577 = vrot.slane %v324, 2
      %v1578 = vsel %vm1568, %v1575, %v1577
      %v1579 = vrot.slane %v325, 2
      %v1580 = vrot.slane %v326, 2
      %v1581 = vsel %vm1568, %v1579, %v1580
      %v1582 = vrot.slane %v327, 2
      %v1583 = vsel %vm1568, %v1580, %v1582
      %v1584 = vrot.slane %v328, 2
      %v1585 = vrot.slane %v329, 2
      %v1586 = vsel %vm1568, %v1584, %v1585
      %v1587 = vrot.slane %v330, 2
      %v1588 = vsel %vm1568, %v1585, %v1587
      %v1597 = vrot.slane %v1581, 4
      %v1598 = vsel %vm332, %v1597, %v1571
      %v1599 = vrot.slane %v1571, 4
      %v1600 = vsel %vm332, %v1581, %v1599
      %v1602 = vunpack.c.l.s4 1983009808
      %v1603 = vunpack.c.0.s8 %v1602
      %v1604 = vperm.slane %v1598, %v1603
      %v1606 = vunpack.c.l.s4 1983009808
      %v1607 = vunpack.c.0.s8 %v1606
      %v1608 = vperm.slane %v1600, %v1607
      %v1609 = vrot.slane %v1586, 4
      %v1610 = vsel %vm332, %v1609, %v1576
      %v1611 = vrot.slane %v1576, 4
      %v1612 = vsel %vm332, %v1586, %v1611
      %v1614 = vunpack.c.l.s4 1983009808
      %v1615 = vunpack.c.0.s8 %v1614
      %v1616 = vperm.slane %v1610, %v1615
      %v1618 = vunpack.c.l.s4 1983009808
      %v1619 = vunpack.c.0.s8 %v1618
      %v1620 = vperm.slane %v1612, %v1619
      %v1621 = vrot.slane %v1616, 4
      %v1622 = vsel %vm332, %v1621, %v1604
      %v1623 = vrot.slane %v1604, 4
      %v1624 = vsel %vm332, %v1616, %v1623
      %v1626 = vunpack.c.l.s4 1934713408
      %v1627 = vunpack.c.0.s8 %v1626
      %v1628 = vperm.slane %v1622, %v1627
      %v1630 = vunpack.c.l.s4 1934713408
      %v1631 = vunpack.c.0.s8 %v1630
      %v1632 = vperm.slane %v1624, %v1631
      %v1633 = vrot.slane %v1620, 4
      %v1634 = vsel %vm332, %v1633, %v1608
      %v1635 = vrot.slane %v1608, 4
      %v1636 = vsel %vm332, %v1620, %v1635
      %v1638 = vunpack.c.l.s4 1934713408
      %v1639 = vunpack.c.0.s8 %v1638
      %v1640 = vperm.slane %v1634, %v1639
      %v1642 = vunpack.c.l.s4 1934713408
      %v1643 = vunpack.c.0.s8 %v1642
      %v1644 = vperm.slane %v1636, %v1643
      %v1645 = vrot.slane %v1628, 4
      %v1646 = vsel %vm332, 0.0, %v1645
      %v1647 = vrot.slane %v1632, 4
      %v1648 = vsel %vm332, 0.0, %v1647
      %v1649 = vrot.slane %v1640, 4
      %v1650 = vsel %vm332, 0.0, %v1649
      %v1651 = vrot.slane %v1644, 4
      %v1652 = vsel %vm332, 0.0, %v1651
      %v1653 = vrot.slane %v1583, 4
      %v1654 = vsel %vm332, %v1653, %v1573
      %v1655 = vrot.slane %v1573, 4
      %v1656 = vsel %vm332, %v1583, %v1655
      %v1658 = vunpack.c.l.s4 1983009808
      %v1659 = vunpack.c.0.s8 %v1658
      %v1660 = vperm.slane %v1654, %v1659
      %v1662 = vunpack.c.l.s4 1983009808
      %v1663 = vunpack.c.0.s8 %v1662
      %v1664 = vperm.slane %v1656, %v1663
      %v1665 = vrot.slane %v1588, 4
      %v1666 = vsel %vm332, %v1665, %v1578
      %v1667 = vrot.slane %v1578, 4
      %v1668 = vsel %vm332, %v1588, %v1667
      %v1670 = vunpack.c.l.s4 1983009808
      %v1671 = vunpack.c.0.s8 %v1670
      %v1672 = vperm.slane %v1666, %v1671
      %v1674 = vunpack.c.l.s4 1983009808
      %v1675 = vunpack.c.0.s8 %v1674
      %v1676 = vperm.slane %v1668, %v1675
      %v1677 = vrot.slane %v1672, 4
      %v1678 = vsel %vm332, %v1677, %v1660
      %v1679 = vrot.slane %v1660, 4
      %v1680 = vsel %vm332, %v1672, %v1679
      %v1682 = vunpack.c.l.s4 1934713408
      %v1683 = vunpack.c.0.s8 %v1682
      %v1684 = vperm.slane %v1678, %v1683
      %v1686 = vunpack.c.l.s4 1934713408
      %v1687 = vunpack.c.0.s8 %v1686
      %v1688 = vperm.slane %v1680, %v1687
      %v1689 = vrot.slane %v1676, 4
      %v1690 = vsel %vm332, %v1689, %v1664
      %v1691 = vrot.slane %v1664, 4
      %v1692 = vsel %vm332, %v1676, %v1691
      %v1694 = vunpack.c.l.s4 1934713408
      %v1695 = vunpack.c.0.s8 %v1694
      %v1696 = vperm.slane %v1690, %v1695
      %v1698 = vunpack.c.l.s4 1934713408
      %v1699 = vunpack.c.0.s8 %v1698
      %v1700 = vperm.slane %v1692, %v1699
      %v1701 = vrot.slane %v1684, 4
      %v1702 = vsel %vm332, 0.0, %v1701
      %v1703 = vrot.slane %v1688, 4
      %v1704 = vsel %vm332, 0.0, %v1703
      %v1705 = vrot.slane %v1696, 4
      %v1706 = vsel %vm332, 0.0, %v1705
      %v1707 = vrot.slane %v1700, 4
      %v1708 = vsel %vm332, 0.0, %v1707
      %1710 = vrot.lane.b32.xlu0 %v1646, 16
      %v1711 = vpop.permute.xlu0 %1710
      %1714 = vrot.lane.b32.xlu0 %v1632, 32
      %v1715 = vpop.permute.xlu0 %1714
      %1718 = vrot.lane.b32.xlu0 %v1648, 48
      %v1719 = vpop.permute.xlu0 %1718
      %1722 = vrot.lane.b32.xlu0 %v1640, 64
      %v1723 = vpop.permute.xlu0 %1722
      %1726 = vrot.lane.b32.xlu0 %v1650, 80
      %v1727 = vpop.permute.xlu0 %1726
      %1730 = vrot.lane.b32.xlu0 %v1644, 96
      %v1731 = vpop.permute.xlu0 %1730
      %1734 = vrot.lane.b32.xlu0 %v1652, 112
      %v1735 = vpop.permute.xlu0 %1734
      %1738 = vrot.lane.b32.xlu0 %v1702, 16
      %v1739 = vpop.permute.xlu0 %1738
      %1742 = vrot.lane.b32.xlu0 %v1688, 32
      %v1743 = vpop.permute.xlu0 %1742
      %1746 = vrot.lane.b32.xlu0 %v1704, 48
      %v1747 = vpop.permute.xlu0 %1746
      %1750 = vrot.lane.b32.xlu0 %v1696, 64
      %v1751 = vpop.permute.xlu0 %1750
      %1754 = vrot.lane.b32.xlu0 %v1706, 80
      %v1755 = vpop.permute.xlu0 %1754
      %1758 = vrot.lane.b32.xlu0 %v1700, 96
      %v1759 = vpop.permute.xlu0 %1758
      %1762 = vrot.lane.b32.xlu0 %v1708, 112
      %v1763 = vpop.permute.xlu0 %1762
      %v1765 = vsel %vm500, %v1628, %v1711
      %v1766 = vsel %vm502, %v1765, %v1715
      %v1767 = vsel %vm504, %v1766, %v1719
      %v1768 = vsel %vm506, %v1767, %v1723
      %v1769 = vsel %vm508, %v1768, %v1727
      %v1770 = vsel %vm510, %v1769, %v1731
      %v1771 = vsel %vm512, %v1770, %v1735
      %v1772 = vsel %vm500, %v1684, %v1739
      %v1773 = vsel %vm502, %v1772, %v1743
      %v1774 = vsel %vm504, %v1773, %v1747
      %v1775 = vsel %vm506, %v1774, %v1751
      %v1776 = vsel %vm508, %v1775, %v1755
      %v1777 = vsel %vm510, %v1776, %v1759
      %v1778 = vsel %vm512, %v1777, %v1763
      %1779 = vrot.lane.b32.xlu0 %v1571, 127
      %v1780 = vpop.permute.xlu0 %1779
      %1781 = vrot.lane.b32.xlu0 %v1573, 127
      %v1782 = vpop.permute.xlu0 %1781
      %1783 = vrot.lane.b32.xlu0 %v1576, 127
      %v1784 = vpop.permute.xlu0 %1783
      %1785 = vrot.lane.b32.xlu0 %v1578, 127
      %v1786 = vpop.permute.xlu0 %1785
      %1787 = vrot.lane.b32.xlu0 %v1581, 127
      %v1788 = vpop.permute.xlu0 %1787
      %1789 = vrot.lane.b32.xlu0 %v1583, 127
      %v1790 = vpop.permute.xlu0 %1789
      %1791 = vrot.lane.b32.xlu0 %v1586, 127
      %v1792 = vpop.permute.xlu0 %1791
      %1793 = vrot.lane.b32.xlu0 %v1588, 127
      %v1794 = vpop.permute.xlu0 %1793
      %v1803 = vrot.slane %v1788, 4
      %v1804 = vsel %vm332, %v1803, %v1780
      %v1805 = vrot.slane %v1780, 4
      %v1806 = vsel %vm332, %v1788, %v1805
      %v1808 = vunpack.c.l.s4 1983009808
      %v1809 = vunpack.c.0.s8 %v1808
      %v1810 = vperm.slane %v1804, %v1809
      %v1812 = vunpack.c.l.s4 1983009808
      %v1813 = vunpack.c.0.s8 %v1812
      %v1814 = vperm.slane %v1806, %v1813
      %v1815 = vrot.slane %v1792, 4
      %v1816 = vsel %vm332, %v1815, %v1784
      %v1817 = vrot.slane %v1784, 4
      %v1818 = vsel %vm332, %v1792, %v1817
      %v1820 = vunpack.c.l.s4 1983009808
      %v1821 = vunpack.c.0.s8 %v1820
      %v1822 = vperm.slane %v1816, %v1821
      %v1824 = vunpack.c.l.s4 1983009808
      %v1825 = vunpack.c.0.s8 %v1824
      %v1826 = vperm.slane %v1818, %v1825
      %v1827 = vrot.slane %v1822, 4
      %v1828 = vsel %vm332, %v1827, %v1810
      %v1829 = vrot.slane %v1810, 4
      %v1830 = vsel %vm332, %v1822, %v1829
      %v1832 = vunpack.c.l.s4 1934713408
      %v1833 = vunpack.c.0.s8 %v1832
      %v1834 = vperm.slane %v1828, %v1833
      %v1836 = vunpack.c.l.s4 1934713408
      %v1837 = vunpack.c.0.s8 %v1836
      %v1838 = vperm.slane %v1830, %v1837
      %v1839 = vrot.slane %v1826, 4
      %v1840 = vsel %vm332, %v1839, %v1814
      %v1841 = vrot.slane %v1814, 4
      %v1842 = vsel %vm332, %v1826, %v1841
      %v1844 = vunpack.c.l.s4 1934713408
      %v1845 = vunpack.c.0.s8 %v1844
      %v1846 = vperm.slane %v1840, %v1845
      %v1848 = vunpack.c.l.s4 1934713408
      %v1849 = vunpack.c.0.s8 %v1848
      %v1850 = vperm.slane %v1842, %v1849
      %v1851 = vrot.slane %v1834, 4
      %v1852 = vsel %vm332, 0.0, %v1851
      %v1853 = vrot.slane %v1838, 4
      %v1854 = vsel %vm332, 0.0, %v1853
      %v1855 = vrot.slane %v1846, 4
      %v1856 = vsel %vm332, 0.0, %v1855
      %v1857 = vrot.slane %v1850, 4
      %v1858 = vsel %vm332, 0.0, %v1857
      %v1859 = vrot.slane %v1790, 4
      %v1860 = vsel %vm332, %v1859, %v1782
      %v1861 = vrot.slane %v1782, 4
      %v1862 = vsel %vm332, %v1790, %v1861
      %v1864 = vunpack.c.l.s4 1983009808
      %v1865 = vunpack.c.0.s8 %v1864
      %v1866 = vperm.slane %v1860, %v1865
      %v1868 = vunpack.c.l.s4 1983009808
      %v1869 = vunpack.c.0.s8 %v1868
      %v1870 = vperm.slane %v1862, %v1869
      %v1871 = vrot.slane %v1794, 4
      %v1872 = vsel %vm332, %v1871, %v1786
      %v1873 = vrot.slane %v1786, 4
      %v1874 = vsel %vm332, %v1794, %v1873
      %v1876 = vunpack.c.l.s4 1983009808
      %v1877 = vunpack.c.0.s8 %v1876
      %v1878 = vperm.slane %v1872, %v1877
      %v1880 = vunpack.c.l.s4 1983009808
      %v1881 = vunpack.c.0.s8 %v1880
      %v1882 = vperm.slane %v1874, %v1881
      %v1883 = vrot.slane %v1878, 4
      %v1884 = vsel %vm332, %v1883, %v1866
      %v1885 = vrot.slane %v1866, 4
      %v1886 = vsel %vm332, %v1878, %v1885
      %v1888 = vunpack.c.l.s4 1934713408
      %v1889 = vunpack.c.0.s8 %v1888
      %v1890 = vperm.slane %v1884, %v1889
      %v1892 = vunpack.c.l.s4 1934713408
      %v1893 = vunpack.c.0.s8 %v1892
      %v1894 = vperm.slane %v1886, %v1893
      %v1895 = vrot.slane %v1882, 4
      %v1896 = vsel %vm332, %v1895, %v1870
      %v1897 = vrot.slane %v1870, 4
      %v1898 = vsel %vm332, %v1882, %v1897
      %v1900 = vunpack.c.l.s4 1934713408
      %v1901 = vunpack.c.0.s8 %v1900
      %v1902 = vperm.slane %v1896, %v1901
      %v1904 = vunpack.c.l.s4 1934713408
      %v1905 = vunpack.c.0.s8 %v1904
      %v1906 = vperm.slane %v1898, %v1905
      %v1907 = vrot.slane %v1890, 4
      %v1908 = vsel %vm332, 0.0, %v1907
      %v1909 = vrot.slane %v1894, 4
      %v1910 = vsel %vm332, 0.0, %v1909
      %v1911 = vrot.slane %v1902, 4
      %v1912 = vsel %vm332, 0.0, %v1911
      %v1913 = vrot.slane %v1906, 4
      %v1914 = vsel %vm332, 0.0, %v1913
      %1916 = vrot.lane.b32.xlu0 %v1852, 16
      %v1917 = vpop.permute.xlu0 %1916
      %1920 = vrot.lane.b32.xlu0 %v1838, 32
      %v1921 = vpop.permute.xlu0 %1920
      %1924 = vrot.lane.b32.xlu0 %v1854, 48
      %v1925 = vpop.permute.xlu0 %1924
      %1928 = vrot.lane.b32.xlu0 %v1846, 64
      %v1929 = vpop.permute.xlu0 %1928
      %1932 = vrot.lane.b32.xlu0 %v1856, 80
      %v1933 = vpop.permute.xlu0 %1932
      %1936 = vrot.lane.b32.xlu0 %v1850, 96
      %v1937 = vpop.permute.xlu0 %1936
      %1940 = vrot.lane.b32.xlu0 %v1858, 112
      %v1941 = vpop.permute.xlu0 %1940
      %1944 = vrot.lane.b32.xlu0 %v1908, 16
      %v1945 = vpop.permute.xlu0 %1944
      %1948 = vrot.lane.b32.xlu0 %v1894, 32
      %v1949 = vpop.permute.xlu0 %1948
      %1952 = vrot.lane.b32.xlu0 %v1910, 48
      %v1953 = vpop.permute.xlu0 %1952
      %1956 = vrot.lane.b32.xlu0 %v1902, 64
      %v1957 = vpop.permute.xlu0 %1956
      %1960 = vrot.lane.b32.xlu0 %v1912, 80
      %v1961 = vpop.permute.xlu0 %1960
      %1964 = vrot.lane.b32.xlu0 %v1906, 96
      %v1965 = vpop.permute.xlu0 %1964
      %1968 = vrot.lane.b32.xlu0 %v1914, 112
      %v1969 = vpop.permute.xlu0 %1968
      %v1971 = vsel %vm500, %v1834, %v1917
      %v1972 = vsel %vm502, %v1971, %v1921
      %v1973 = vsel %vm504, %v1972, %v1925
      %v1974 = vsel %vm506, %v1973, %v1929
      %v1975 = vsel %vm508, %v1974, %v1933
      %v1976 = vsel %vm510, %v1975, %v1937
      %v1977 = vsel %vm512, %v1976, %v1941
      %v1978 = vsel %vm500, %v1890, %v1945
      %v1979 = vsel %vm502, %v1978, %v1949
      %v1980 = vsel %vm504, %v1979, %v1953
      %v1981 = vsel %vm506, %v1980, %v1957
      %v1982 = vsel %vm508, %v1981, %v1961
      %v1983 = vsel %vm510, %v1982, %v1965
      %v1984 = vsel %vm512, %v1983, %v1969
      %1985 = vrot.lane.b32.xlu0 %v1571, 126
      %v1986 = vpop.permute.xlu0 %1985
      %1987 = vrot.lane.b32.xlu0 %v1573, 126
      %v1988 = vpop.permute.xlu0 %1987
      %1989 = vrot.lane.b32.xlu0 %v1576, 126
      %v1990 = vpop.permute.xlu0 %1989
      %1991 = vrot.lane.b32.xlu0 %v1578, 126
      %v1992 = vpop.permute.xlu0 %1991
      %1993 = vrot.lane.b32.xlu0 %v1581, 126
      %v1994 = vpop.permute.xlu0 %1993
      %1995 = vrot.lane.b32.xlu0 %v1583, 126
      %v1996 = vpop.permute.xlu0 %1995
      %1997 = vrot.lane.b32.xlu0 %v1586, 126
      %v1998 = vpop.permute.xlu0 %1997
      %1999 = vrot.lane.b32.xlu0 %v1588, 126
      %v2000 = vpop.permute.xlu0 %1999
      %v2009 = vrot.slane %v1994, 4
      %v2010 = vsel %vm332, %v2009, %v1986
      %v2011 = vrot.slane %v1986, 4
      %v2012 = vsel %vm332, %v1994, %v2011
      %v2014 = vunpack.c.l.s4 1983009808
      %v2015 = vunpack.c.0.s8 %v2014
      %v2016 = vperm.slane %v2010, %v2015
      %v2018 = vunpack.c.l.s4 1983009808
      %v2019 = vunpack.c.0.s8 %v2018
      %v2020 = vperm.slane %v2012, %v2019
      %v2021 = vrot.slane %v1998, 4
      %v2022 = vsel %vm332, %v2021, %v1990
      %v2023 = vrot.slane %v1990, 4
      %v2024 = vsel %vm332, %v1998, %v2023
      %v2026 = vunpack.c.l.s4 1983009808
      %v2027 = vunpack.c.0.s8 %v2026
      %v2028 = vperm.slane %v2022, %v2027
      %v2030 = vunpack.c.l.s4 1983009808
      %v2031 = vunpack.c.0.s8 %v2030
      %v2032 = vperm.slane %v2024, %v2031
      %v2033 = vrot.slane %v2028, 4
      %v2034 = vsel %vm332, %v2033, %v2016
      %v2035 = vrot.slane %v2016, 4
      %v2036 = vsel %vm332, %v2028, %v2035
      %v2038 = vunpack.c.l.s4 1934713408
      %v2039 = vunpack.c.0.s8 %v2038
      %v2040 = vperm.slane %v2034, %v2039
      %v2042 = vunpack.c.l.s4 1934713408
      %v2043 = vunpack.c.0.s8 %v2042
      %v2044 = vperm.slane %v2036, %v2043
      %v2045 = vrot.slane %v2032, 4
      %v2046 = vsel %vm332, %v2045, %v2020
      %v2047 = vrot.slane %v2020, 4
      %v2048 = vsel %vm332, %v2032, %v2047
      %v2050 = vunpack.c.l.s4 1934713408
      %v2051 = vunpack.c.0.s8 %v2050
      %v2052 = vperm.slane %v2046, %v2051
      %v2054 = vunpack.c.l.s4 1934713408
      %v2055 = vunpack.c.0.s8 %v2054
      %v2056 = vperm.slane %v2048, %v2055
      %v2057 = vrot.slane %v2040, 4
      %v2058 = vsel %vm332, 0.0, %v2057
      %v2059 = vrot.slane %v2044, 4
      %v2060 = vsel %vm332, 0.0, %v2059
      %v2061 = vrot.slane %v2052, 4
      %v2062 = vsel %vm332, 0.0, %v2061
      %v2063 = vrot.slane %v2056, 4
      %v2064 = vsel %vm332, 0.0, %v2063
      %v2065 = vrot.slane %v1996, 4
      %v2066 = vsel %vm332, %v2065, %v1988
      %v2067 = vrot.slane %v1988, 4
      %v2068 = vsel %vm332, %v1996, %v2067
      %v2070 = vunpack.c.l.s4 1983009808
      %v2071 = vunpack.c.0.s8 %v2070
      %v2072 = vperm.slane %v2066, %v2071
      %v2074 = vunpack.c.l.s4 1983009808
      %v2075 = vunpack.c.0.s8 %v2074
      %v2076 = vperm.slane %v2068, %v2075
      %v2077 = vrot.slane %v2000, 4
      %v2078 = vsel %vm332, %v2077, %v1992
      %v2079 = vrot.slane %v1992, 4
      %v2080 = vsel %vm332, %v2000, %v2079
      %v2082 = vunpack.c.l.s4 1983009808
      %v2083 = vunpack.c.0.s8 %v2082
      %v2084 = vperm.slane %v2078, %v2083
      %v2086 = vunpack.c.l.s4 1983009808
      %v2087 = vunpack.c.0.s8 %v2086
      %v2088 = vperm.slane %v2080, %v2087
      %v2089 = vrot.slane %v2084, 4
      %v2090 = vsel %vm332, %v2089, %v2072
      %v2091 = vrot.slane %v2072, 4
      %v2092 = vsel %vm332, %v2084, %v2091
      %v2094 = vunpack.c.l.s4 1934713408
      %v2095 = vunpack.c.0.s8 %v2094
      %v2096 = vperm.slane %v2090, %v2095
      %v2098 = vunpack.c.l.s4 1934713408
      %v2099 = vunpack.c.0.s8 %v2098
      %v2100 = vperm.slane %v2092, %v2099
      %v2101 = vrot.slane %v2088, 4
      %v2102 = vsel %vm332, %v2101, %v2076
      %v2103 = vrot.slane %v2076, 4
      %v2104 = vsel %vm332, %v2088, %v2103
      %v2106 = vunpack.c.l.s4 1934713408
      %v2107 = vunpack.c.0.s8 %v2106
      %v2108 = vperm.slane %v2102, %v2107
      %v2110 = vunpack.c.l.s4 1934713408
      %v2111 = vunpack.c.0.s8 %v2110
      %v2112 = vperm.slane %v2104, %v2111
      %v2113 = vrot.slane %v2096, 4
      %v2114 = vsel %vm332, 0.0, %v2113
      %v2115 = vrot.slane %v2100, 4
      %v2116 = vsel %vm332, 0.0, %v2115
      %v2117 = vrot.slane %v2108, 4
      %v2118 = vsel %vm332, 0.0, %v2117
      %v2119 = vrot.slane %v2112, 4
      %v2120 = vsel %vm332, 0.0, %v2119
      %2122 = vrot.lane.b32.xlu0 %v2058, 16
      %v2123 = vpop.permute.xlu0 %2122
      %2126 = vrot.lane.b32.xlu0 %v2044, 32
      %v2127 = vpop.permute.xlu0 %2126
      %2130 = vrot.lane.b32.xlu0 %v2060, 48
      %v2131 = vpop.permute.xlu0 %2130
      %2134 = vrot.lane.b32.xlu0 %v2052, 64
      %v2135 = vpop.permute.xlu0 %2134
      %2138 = vrot.lane.b32.xlu0 %v2062, 80
      %v2139 = vpop.permute.xlu0 %2138
      %2142 = vrot.lane.b32.xlu0 %v2056, 96
      %v2143 = vpop.permute.xlu0 %2142
      %2146 = vrot.lane.b32.xlu0 %v2064, 112
      %v2147 = vpop.permute.xlu0 %2146
      %2150 = vrot.lane.b32.xlu0 %v2114, 16
      %v2151 = vpop.permute.xlu0 %2150
      %2154 = vrot.lane.b32.xlu0 %v2100, 32
      %v2155 = vpop.permute.xlu0 %2154
      %2158 = vrot.lane.b32.xlu0 %v2116, 48
      %v2159 = vpop.permute.xlu0 %2158
      %2162 = vrot.lane.b32.xlu0 %v2108, 64
      %v2163 = vpop.permute.xlu0 %2162
      %2166 = vrot.lane.b32.xlu0 %v2118, 80
      %v2167 = vpop.permute.xlu0 %2166
      %2170 = vrot.lane.b32.xlu0 %v2112, 96
      %v2171 = vpop.permute.xlu0 %2170
      %2174 = vrot.lane.b32.xlu0 %v2120, 112
      %v2175 = vpop.permute.xlu0 %2174
      %v2177 = vsel %vm500, %v2040, %v2123
      %v2178 = vsel %vm502, %v2177, %v2127
      %v2179 = vsel %vm504, %v2178, %v2131
      %v2180 = vsel %vm506, %v2179, %v2135
      %v2181 = vsel %vm508, %v2180, %v2139
      %v2182 = vsel %vm510, %v2181, %v2143
      %v2183 = vsel %vm512, %v2182, %v2147
      %v2184 = vsel %vm500, %v2096, %v2151
      %v2185 = vsel %vm502, %v2184, %v2155
      %v2186 = vsel %vm504, %v2185, %v2159
      %v2187 = vsel %vm506, %v2186, %v2163
      %v2188 = vsel %vm508, %v2187, %v2167
      %v2189 = vsel %vm510, %v2188, %v2171
      %v2190 = vsel %vm512, %v2189, %v2175
      %v2193 = vrot.slane %v727, 4
      %v2194 = vrot.slane %v734, 4
      %v2199 = vrot.slane %v1148, 4
      %v2200 = vrot.slane %v1155, 4
      %v2205 = vrot.slane %v1560, 4
      %v2206 = vrot.slane %v1567, 4
      %v2211 = vrot.slane %v1977, 4
      %v2212 = vrot.slane %v1984, 4
      %vm2215 = vcmask 1043456
      %v2216 = vsel %vm2215, %v513, %v2193
      %v2217 = vsel %vm2215, %v520, %v2194
      %v2218 = vsel %vm2215, %v933, %v2199
      %v2219 = vsel %vm2215, %v940, %v2200
      %v2220 = vsel %vm2215, %v1354, %v2205
      %v2221 = vsel %vm2215, %v1361, %v2206
      %v2222 = vsel %vm2215, %v1771, %v2211
      %v2223 = vsel %vm2215, %v1778, %v2212
      %v2224 = vld [vmem:[%s1] sm:$0xf]
      %v2225 = vld [vmem:[%s2] sm:$0xf]
      %2227 = vset.pattern.permute.xlu0 0
      %2228 = vperm.xlu0 %2227, %v2225
      %v2229 = vpop.permute.xlu0 %2228
      %vm2231 = vcmask 293888
      %v2233 = vsel %vm2231, %v2224, 0
      %v2236 = vsel %vm2215, %v2183, 0
      %v2239 = vsel %vm2215, %v2190, 0
      %2241 = vmatpush.msra.mxu0 0.0
      %2242 = vmatpush.msra.mxu0 0.0
      %2243 = vmatpush.msra.mxu0 0.0
      %2244 = vmatpush.msra.mxu0 0.0
      %2245 = vmatpush.msra.mxu0 0.0
      %2246 = vmatpush.msra.mxu0 0.0
      %2247 = vmatpush.msra.mxu0 0.0
      %2248 = vmatpush.msra.mxu0 0.0
      %2249 = vmatpush.msra.mxu0 0.0
      %2250 = vmatpush.msra.mxu0 0.0
      %2251 = vmatpush.msra.mxu0 0.0
      %2252 = vmatpush.msra.mxu0 %v2236
      %2253 = vmatpush.msra.mxu0 %v2222
      %2254 = vmatpush.msra.mxu0 %v2220
      %2255 = vmatpush.msra.mxu0 %v2218
      %2256 = vmatpush.msra.mxu0 %v2216
      %2257 = vmatmul.f32.gmra.mxu0 %v2233
      %v2258 = vpop.f32.mrf.mxu0
      %v2259 = vadd.f32 %v2229, %v2258
      %2260 = vdwg.mxu0
      %2261 = vmatpush.msra.mxu0 0.0
      %2262 = vmatpush.msra.mxu0 0.0
      %2263 = vmatpush.msra.mxu0 0.0
      %2264 = vmatpush.msra.mxu0 0.0
      %2265 = vmatpush.msra.mxu0 0.0
      %2266 = vmatpush.msra.mxu0 0.0
      %2267 = vmatpush.msra.mxu0 0.0
      %2268 = vmatpush.msra.mxu0 0.0
      %2269 = vmatpush.msra.mxu0 0.0
      %2270 = vmatpush.msra.mxu0 0.0
      %2271 = vmatpush.msra.mxu0 0.0
      %2272 = vmatpush.msra.mxu0 %v2239
      %2273 = vmatpush.msra.mxu0 %v2223
      %2274 = vmatpush.msra.mxu0 %v2221
      %2275 = vmatpush.msra.mxu0 %v2219
      %2276 = vmatpush.msra.mxu0 %v2217
      %2277 = vmatmul.f32.gmra.mxu0 %v2233
      %v2278 = vpop.f32.mrf.mxu0
      %v2279 = vadd.f32 %v2229, %v2278
      %2280 = vdwg.mxu0
      %v2281 = vmax.f32 %v2259, 0.0
      %v2282 = vmax.f32 %v2279, 0.0
      %2284 = vrot.lane.b32.xlu0 %v2281, 112
      %v2285 = vpop.permute.xlu0 %2284
      %2287 = vrot.lane.b32.xlu0 %v2281, 96
      %v2288 = vpop.permute.xlu0 %2287
      %2290 = vrot.lane.b32.xlu0 %v2281, 80
      %v2291 = vpop.permute.xlu0 %2290
      %2293 = vrot.lane.b32.xlu0 %v2281, 64
      %v2294 = vpop.permute.xlu0 %2293
      %2296 = vrot.lane.b32.xlu0 %v2281, 48
      %v2297 = vpop.permute.xlu0 %2296
      %2299 = vrot.lane.b32.xlu0 %v2281, 32
      %v2300 = vpop.permute.xlu0 %2299
      %2302 = vrot.lane.b32.xlu0 %v2281, 16
      %v2303 = vpop.permute.xlu0 %2302
      %2306 = vrot.lane.b32.xlu0 %v2282, 112
      %v2307 = vpop.permute.xlu0 %2306
      %2309 = vrot.lane.b32.xlu0 %v2282, 96
      %v2310 = vpop.permute.xlu0 %2309
      %2312 = vrot.lane.b32.xlu0 %v2282, 80
      %v2313 = vpop.permute.xlu0 %2312
      %2315 = vrot.lane.b32.xlu0 %v2282, 64
      %v2316 = vpop.permute.xlu0 %2315
      %2318 = vrot.lane.b32.xlu0 %v2282, 48
      %v2319 = vpop.permute.xlu0 %2318
      %2321 = vrot.lane.b32.xlu0 %v2282, 32
      %v2322 = vpop.permute.xlu0 %2321
      %2324 = vrot.lane.b32.xlu0 %v2282, 16
      %v2325 = vpop.permute.xlu0 %2324
      %v2327 = vrot.slane %v2288, 4
      %v2328 = vsel %vm332, %v2327, %v2281
      %v2330 = vunpack.c.l.s4 1983009808
      %v2331 = vunpack.c.0.s8 %v2330
      %v2332 = vperm.slane %v2328, %v2331
      %v2333 = vrot.slane %v2291, 4
      %v2334 = vsel %vm332, %v2333, %v2285
      %v2336 = vunpack.c.l.s4 1983009808
      %v2337 = vunpack.c.0.s8 %v2336
      %v2338 = vperm.slane %v2334, %v2337
      %v2339 = vrot.slane %v2300, 4
      %v2340 = vsel %vm332, %v2339, %v2294
      %v2342 = vunpack.c.l.s4 1983009808
      %v2343 = vunpack.c.0.s8 %v2342
      %v2344 = vperm.slane %v2340, %v2343
      %v2345 = vrot.slane %v2303, 4
      %v2346 = vsel %vm332, %v2345, %v2297
      %v2348 = vunpack.c.l.s4 1983009808
      %v2349 = vunpack.c.0.s8 %v2348
      %v2350 = vperm.slane %v2346, %v2349
      %v2351 = vrot.slane %v2338, 4
      %v2352 = vsel %vm332, %v2351, %v2332
      %v2353 = vrot.slane %v2332, 4
      %v2354 = vsel %vm332, %v2338, %v2353
      %v2356 = vunpack.c.l.s4 1934713408
      %v2357 = vunpack.c.0.s8 %v2356
      %v2358 = vperm.slane %v2352, %v2357
      %v2360 = vunpack.c.l.s4 1934713408
      %v2361 = vunpack.c.0.s8 %v2360
      %v2362 = vperm.slane %v2354, %v2361
      %v2363 = vrot.slane %v2350, 4
      %v2364 = vsel %vm332, %v2363, %v2344
      %v2365 = vrot.slane %v2344, 4
      %v2366 = vsel %vm332, %v2350, %v2365
      %v2368 = vunpack.c.l.s4 1934713408
      %v2369 = vunpack.c.0.s8 %v2368
      %v2370 = vperm.slane %v2364, %v2369
      %v2372 = vunpack.c.l.s4 1934713408
      %v2373 = vunpack.c.0.s8 %v2372
      %v2374 = vperm.slane %v2366, %v2373
      %v2375 = vrot.slane %v2370, 4
      %v2376 = vsel %vm332, %v2375, %v2358
      %v2377 = vrot.slane %v2358, 4
      %v2378 = vsel %vm332, %v2370, %v2377
      %v2379 = vrot.slane %v2374, 4
      %v2380 = vsel %vm332, %v2379, %v2362
      %v2381 = vrot.slane %v2362, 4
      %v2382 = vsel %vm332, %v2374, %v2381
      %v2383 = vrot.slane %v2310, 4
      %v2384 = vsel %vm332, %v2383, %v2282
      %v2386 = vunpack.c.l.s4 1983009808
      %v2387 = vunpack.c.0.s8 %v2386
      %v2388 = vperm.slane %v2384, %v2387
      %v2389 = vrot.slane %v2313, 4
      %v2390 = vsel %vm332, %v2389, %v2307
      %v2392 = vunpack.c.l.s4 1983009808
      %v2393 = vunpack.c.0.s8 %v2392
      %v2394 = vperm.slane %v2390, %v2393
      %v2395 = vrot.slane %v2322, 4
      %v2396 = vsel %vm332, %v2395, %v2316
      %v2398 = vunpack.c.l.s4 1983009808
      %v2399 = vunpack.c.0.s8 %v2398
      %v2400 = vperm.slane %v2396, %v2399
      %v2401 = vrot.slane %v2325, 4
      %v2402 = vsel %vm332, %v2401, %v2319
      %v2404 = vunpack.c.l.s4 1983009808
      %v2405 = vunpack.c.0.s8 %v2404
      %v2406 = vperm.slane %v2402, %v2405
      %v2407 = vrot.slane %v2394, 4
      %v2408 = vsel %vm332, %v2407, %v2388
      %v2409 = vrot.slane %v2388, 4
      %v2410 = vsel %vm332, %v2394, %v2409
      %v2412 = vunpack.c.l.s4 1934713408
      %v2413 = vunpack.c.0.s8 %v2412
      %v2414 = vperm.slane %v2408, %v2413
      %v2416 = vunpack.c.l.s4 1934713408
      %v2417 = vunpack.c.0.s8 %v2416
      %v2418 = vperm.slane %v2410, %v2417
      %v2419 = vrot.slane %v2406, 4
      %v2420 = vsel %vm332, %v2419, %v2400
      %v2421 = vrot.slane %v2400, 4
      %v2422 = vsel %vm332, %v2406, %v2421
      %v2424 = vunpack.c.l.s4 1934713408
      %v2425 = vunpack.c.0.s8 %v2424
      %v2426 = vperm.slane %v2420, %v2425
      %v2428 = vunpack.c.l.s4 1934713408
      %v2429 = vunpack.c.0.s8 %v2428
      %v2430 = vperm.slane %v2422, %v2429
      %v2431 = vrot.slane %v2426, 4
      %v2432 = vsel %vm332, %v2431, %v2414
      %v2433 = vrot.slane %v2414, 4
      %v2434 = vsel %vm332, %v2426, %v2433
      %v2435 = vrot.slane %v2430, 4
      %v2436 = vsel %vm332, %v2435, %v2418
      %v2437 = vrot.slane %v2418, 4
      %v2438 = vsel %vm332, %v2430, %v2437
      %2447 = vrot.lane.b32.xlu0 %v2376, 1
      %v2448 = vpop.permute.xlu0 %2447
      %2449 = vrot.lane.b32.xlu0 %v2432, 1
      %v2450 = vpop.permute.xlu0 %2449
      %2451 = vrot.lane.b32.xlu0 %v2378, 1
      %v2452 = vpop.permute.xlu0 %2451
      %2453 = vrot.lane.b32.xlu0 %v2434, 1
      %v2454 = vpop.permute.xlu0 %2453
      %2455 = vrot.lane.b32.xlu0 %v2380, 1
      %v2456 = vpop.permute.xlu0 %2455
      %2457 = vrot.lane.b32.xlu0 %v2436, 1
      %v2458 = vpop.permute.xlu0 %2457
      %2459 = vrot.lane.b32.xlu0 %v2382, 1
      %v2460 = vpop.permute.xlu0 %2459
      %2461 = vrot.lane.b32.xlu0 %v2438, 1
      %v2462 = vpop.permute.xlu0 %2461
      %2471 = vst.msk [vmem:[#allocation2 + $0x1] sm:$0xff] %vm310, %v2448
      %2472 = vst.msk [vmem:[#allocation2 + $0x9] sm:$0xff] %vm310, %v2450
      %2473 = vst.msk [vmem:[#allocation2 + $0x19] sm:$0xff] %vm310, %v2452
      %2474 = vst.msk [vmem:[#allocation2 + $0x21] sm:$0xff] %vm310, %v2454
      %2475 = vst.msk [vmem:[#allocation2 + $0x31] sm:$0xff] %vm310, %v2456
      %2476 = vst.msk [vmem:[#allocation2 + $0x39] sm:$0xff] %vm310, %v2458
      %2477 = vst.msk [vmem:[#allocation2 + $0x49] sm:$0xff] %vm310, %v2460
      %2478 = vst.msk [vmem:[#allocation2 + $0x51] sm:$0xff] %vm310, %v2462
      %v2479 = vld [vmem:[#allocation2] sm:$0xff]
      %v2480 = vld [vmem:[#allocation2 + $0x8] sm:$0xff]
      %v2481 = vld [vmem:[#allocation2 + $0x10] sm:$0x3]
      %v2482 = vld [vmem:[#allocation2 + $0x18] sm:$0xff]
      %v2483 = vld [vmem:[#allocation2 + $0x20] sm:$0xff]
      %v2484 = vld [vmem:[#allocation2 + $0x28] sm:$0x3]
      %v2485 = vld [vmem:[#allocation2 + $0x30] sm:$0xff]
      %v2486 = vld [vmem:[#allocation2 + $0x38] sm:$0xff]
      %v2487 = vld [vmem:[#allocation2 + $0x40] sm:$0x3]
      %v2488 = vld [vmem:[#allocation2 + $0x48] sm:$0xff]
      %v2489 = vld [vmem:[#allocation2 + $0x50] sm:$0xff]
      %v2490 = vld [vmem:[#allocation2 + $0x58] sm:$0x3]
      %v2491 = vrot.slane %v2485, 4
      %v2492 = vsel %vm332, %v2491, %v2479
      %v2493 = vrot.slane %v2479, 4
      %v2494 = vsel %vm332, %v2485, %v2493
      %v2496 = vunpack.c.l.s4 1983009808
      %v2497 = vunpack.c.0.s8 %v2496
      %v2498 = vperm.slane %v2492, %v2497
      %v2500 = vunpack.c.l.s4 1983009808
      %v2501 = vunpack.c.0.s8 %v2500
      %v2502 = vperm.slane %v2494, %v2501
      %v2503 = vrot.slane %v2488, 4
      %v2504 = vsel %vm332, %v2503, %v2482
      %v2505 = vrot.slane %v2482, 4
      %v2506 = vsel %vm332, %v2488, %v2505
      %v2508 = vunpack.c.l.s4 1983009808
      %v2509 = vunpack.c.0.s8 %v2508
      %v2510 = vperm.slane %v2504, %v2509
      %v2512 = vunpack.c.l.s4 1983009808
      %v2513 = vunpack.c.0.s8 %v2512
      %v2514 = vperm.slane %v2506, %v2513
      %v2515 = vrot.slane %v2510, 4
      %v2516 = vsel %vm332, %v2515, %v2498
      %v2517 = vrot.slane %v2498, 4
      %v2518 = vsel %vm332, %v2510, %v2517
      %v2520 = vunpack.c.l.s4 1934713408
      %v2521 = vunpack.c.0.s8 %v2520
      %v2522 = vperm.slane %v2516, %v2521
      %v2524 = vunpack.c.l.s4 1934713408
      %v2525 = vunpack.c.0.s8 %v2524
      %v2526 = vperm.slane %v2518, %v2525
      %v2527 = vrot.slane %v2514, 4
      %v2528 = vsel %vm332, %v2527, %v2502
      %v2529 = vrot.slane %v2502, 4
      %v2530 = vsel %vm332, %v2514, %v2529
      %v2532 = vunpack.c.l.s4 1934713408
      %v2533 = vunpack.c.0.s8 %v2532
      %v2534 = vperm.slane %v2528, %v2533
      %v2536 = vunpack.c.l.s4 1934713408
      %v2537 = vunpack.c.0.s8 %v2536
      %v2538 = vperm.slane %v2530, %v2537
      %v2539 = vrot.slane %v2522, 4
      %v2540 = vsel %vm332, 0.0, %v2539
      %v2541 = vrot.slane %v2526, 4
      %v2542 = vsel %vm332, 0.0, %v2541
      %v2543 = vrot.slane %v2534, 4
      %v2544 = vsel %vm332, 0.0, %v2543
      %v2545 = vrot.slane %v2538, 4
      %v2546 = vsel %vm332, 0.0, %v2545
      %v2547 = vrot.slane %v2486, 4
      %v2548 = vsel %vm332, %v2547, %v2480
      %v2549 = vrot.slane %v2480, 4
      %v2550 = vsel %vm332, %v2486, %v2549
      %v2552 = vunpack.c.l.s4 1983009808
      %v2553 = vunpack.c.0.s8 %v2552
      %v2554 = vperm.slane %v2548, %v2553
      %v2556 = vunpack.c.l.s4 1983009808
      %v2557 = vunpack.c.0.s8 %v2556
      %v2558 = vperm.slane %v2550, %v2557
      %v2559 = vrot.slane %v2489, 4
      %v2560 = vsel %vm332, %v2559, %v2483
      %v2561 = vrot.slane %v2483, 4
      %v2562 = vsel %vm332, %v2489, %v2561
      %v2564 = vunpack.c.l.s4 1983009808
      %v2565 = vunpack.c.0.s8 %v2564
      %v2566 = vperm.slane %v2560, %v2565
      %v2568 = vunpack.c.l.s4 1983009808
      %v2569 = vunpack.c.0.s8 %v2568
      %v2570 = vperm.slane %v2562, %v2569
      %v2571 = vrot.slane %v2566, 4
      %v2572 = vsel %vm332, %v2571, %v2554
      %v2573 = vrot.slane %v2554, 4
      %v2574 = vsel %vm332, %v2566, %v2573
      %v2576 = vunpack.c.l.s4 1934713408
      %v2577 = vunpack.c.0.s8 %v2576
      %v2578 = vperm.slane %v2572, %v2577
      %v2580 = vunpack.c.l.s4 1934713408
      %v2581 = vunpack.c.0.s8 %v2580
      %v2582 = vperm.slane %v2574, %v2581
      %v2583 = vrot.slane %v2570, 4
      %v2584 = vsel %vm332, %v2583, %v2558
      %v2585 = vrot.slane %v2558, 4
      %v2586 = vsel %vm332, %v2570, %v2585
      %v2588 = vunpack.c.l.s4 1934713408
      %v2589 = vunpack.c.0.s8 %v2588
      %v2590 = vperm.slane %v2584, %v2589
      %v2592 = vunpack.c.l.s4 1934713408
      %v2593 = vunpack.c.0.s8 %v2592
      %v2594 = vperm.slane %v2586, %v2593
      %v2595 = vrot.slane %v2578, 4
      %v2596 = vsel %vm332, 0.0, %v2595
      %v2597 = vrot.slane %v2582, 4
      %v2598 = vsel %vm332, 0.0, %v2597
      %v2599 = vrot.slane %v2590, 4
      %v2600 = vsel %vm332, 0.0, %v2599
      %v2601 = vrot.slane %v2594, 4
      %v2602 = vsel %vm332, 0.0, %v2601
      %2604 = vrot.lane.b32.xlu0 %v2540, 16
      %v2605 = vpop.permute.xlu0 %2604
      %2608 = vrot.lane.b32.xlu0 %v2526, 32
      %v2609 = vpop.permute.xlu0 %2608
      %2612 = vrot.lane.b32.xlu0 %v2542, 48
      %v2613 = vpop.permute.xlu0 %2612
      %2616 = vrot.lane.b32.xlu0 %v2534, 64
      %v2617 = vpop.permute.xlu0 %2616
      %2620 = vrot.lane.b32.xlu0 %v2544, 80
      %v2621 = vpop.permute.xlu0 %2620
      %2624 = vrot.lane.b32.xlu0 %v2538, 96
      %v2625 = vpop.permute.xlu0 %2624
      %2628 = vrot.lane.b32.xlu0 %v2546, 112
      %v2629 = vpop.permute.xlu0 %2628
      %2632 = vrot.lane.b32.xlu0 %v2596, 16
      %v2633 = vpop.permute.xlu0 %2632
      %2636 = vrot.lane.b32.xlu0 %v2582, 32
      %v2637 = vpop.permute.xlu0 %2636
      %2640 = vrot.lane.b32.xlu0 %v2598, 48
      %v2641 = vpop.permute.xlu0 %2640
      %2644 = vrot.lane.b32.xlu0 %v2590, 64
      %v2645 = vpop.permute.xlu0 %2644
      %2648 = vrot.lane.b32.xlu0 %v2600, 80
      %v2649 = vpop.permute.xlu0 %2648
      %2652 = vrot.lane.b32.xlu0 %v2594, 96
      %v2653 = vpop.permute.xlu0 %2652
      %2656 = vrot.lane.b32.xlu0 %v2602, 112
      %v2657 = vpop.permute.xlu0 %2656
      %v2659 = vsel %vm500, %v2522, %v2605
      %v2660 = vsel %vm502, %v2659, %v2609
      %v2661 = vsel %vm504, %v2660, %v2613
      %v2662 = vsel %vm506, %v2661, %v2617
      %v2663 = vsel %vm508, %v2662, %v2621
      %v2664 = vsel %vm510, %v2663, %v2625
      %v2665 = vsel %vm512, %v2664, %v2629
      %v2666 = vsel %vm500, %v2578, %v2633
      %v2667 = vsel %vm502, %v2666, %v2637
      %v2668 = vsel %vm504, %v2667, %v2641
      %v2669 = vsel %vm506, %v2668, %v2645
      %v2670 = vsel %vm508, %v2669, %v2649
      %v2671 = vsel %vm510, %v2670, %v2653
      %v2672 = vsel %vm512, %v2671, %v2657
      %2681 = vrot.lane.b32.xlu0 %v2479, 127
      %v2682 = vpop.permute.xlu0 %2681
      %2683 = vrot.lane.b32.xlu0 %v2480, 127
      %v2684 = vpop.permute.xlu0 %2683
      %2685 = vrot.lane.b32.xlu0 %v2482, 127
      %v2686 = vpop.permute.xlu0 %2685
      %2687 = vrot.lane.b32.xlu0 %v2483, 127
      %v2688 = vpop.permute.xlu0 %2687
      %2689 = vrot.lane.b32.xlu0 %v2485, 127
      %v2690 = vpop.permute.xlu0 %2689
      %2691 = vrot.lane.b32.xlu0 %v2486, 127
      %v2692 = vpop.permute.xlu0 %2691
      %2693 = vrot.lane.b32.xlu0 %v2488, 127
      %v2694 = vpop.permute.xlu0 %2693
      %2695 = vrot.lane.b32.xlu0 %v2489, 127
      %v2696 = vpop.permute.xlu0 %2695
      %v2705 = vrot.slane %v2690, 4
      %v2706 = vsel %vm332, %v2705, %v2682
      %v2707 = vrot.slane %v2682, 4
      %v2708 = vsel %vm332, %v2690, %v2707
      %v2710 = vunpack.c.l.s4 1983009808
      %v2711 = vunpack.c.0.s8 %v2710
      %v2712 = vperm.slane %v2706, %v2711
      %v2714 = vunpack.c.l.s4 1983009808
      %v2715 = vunpack.c.0.s8 %v2714
      %v2716 = vperm.slane %v2708, %v2715
      %v2717 = vrot.slane %v2694, 4
      %v2718 = vsel %vm332, %v2717, %v2686
      %v2719 = vrot.slane %v2686, 4
      %v2720 = vsel %vm332, %v2694, %v2719
      %v2722 = vunpack.c.l.s4 1983009808
      %v2723 = vunpack.c.0.s8 %v2722
      %v2724 = vperm.slane %v2718, %v2723
      %v2726 = vunpack.c.l.s4 1983009808
      %v2727 = vunpack.c.0.s8 %v2726
      %v2728 = vperm.slane %v2720, %v2727
      %v2729 = vrot.slane %v2724, 4
      %v2730 = vsel %vm332, %v2729, %v2712
      %v2731 = vrot.slane %v2712, 4
      %v2732 = vsel %vm332, %v2724, %v2731
      %v2734 = vunpack.c.l.s4 1934713408
      %v2735 = vunpack.c.0.s8 %v2734
      %v2736 = vperm.slane %v2730, %v2735
      %v2738 = vunpack.c.l.s4 1934713408
      %v2739 = vunpack.c.0.s8 %v2738
      %v2740 = vperm.slane %v2732, %v2739
      %v2741 = vrot.slane %v2728, 4
      %v2742 = vsel %vm332, %v2741, %v2716
      %v2743 = vrot.slane %v2716, 4
      %v2744 = vsel %vm332, %v2728, %v2743
      %v2746 = vunpack.c.l.s4 1934713408
      %v2747 = vunpack.c.0.s8 %v2746
      %v2748 = vperm.slane %v2742, %v2747
      %v2750 = vunpack.c.l.s4 1934713408
      %v2751 = vunpack.c.0.s8 %v2750
      %v2752 = vperm.slane %v2744, %v2751
      %v2753 = vrot.slane %v2736, 4
      %v2754 = vsel %vm332, 0.0, %v2753
      %v2755 = vrot.slane %v2740, 4
      %v2756 = vsel %vm332, 0.0, %v2755
      %v2757 = vrot.slane %v2748, 4
      %v2758 = vsel %vm332, 0.0, %v2757
      %v2759 = vrot.slane %v2752, 4
      %v2760 = vsel %vm332, 0.0, %v2759
      %v2761 = vrot.slane %v2692, 4
      %v2762 = vsel %vm332, %v2761, %v2684
      %v2763 = vrot.slane %v2684, 4
      %v2764 = vsel %vm332, %v2692, %v2763
      %v2766 = vunpack.c.l.s4 1983009808
      %v2767 = vunpack.c.0.s8 %v2766
      %v2768 = vperm.slane %v2762, %v2767
      %v2770 = vunpack.c.l.s4 1983009808
      %v2771 = vunpack.c.0.s8 %v2770
      %v2772 = vperm.slane %v2764, %v2771
      %v2773 = vrot.slane %v2696, 4
      %v2774 = vsel %vm332, %v2773, %v2688
      %v2775 = vrot.slane %v2688, 4
      %v2776 = vsel %vm332, %v2696, %v2775
      %v2778 = vunpack.c.l.s4 1983009808
      %v2779 = vunpack.c.0.s8 %v2778
      %v2780 = vperm.slane %v2774, %v2779
      %v2782 = vunpack.c.l.s4 1983009808
      %v2783 = vunpack.c.0.s8 %v2782
      %v2784 = vperm.slane %v2776, %v2783
      %v2785 = vrot.slane %v2780, 4
      %v2786 = vsel %vm332, %v2785, %v2768
      %v2787 = vrot.slane %v2768, 4
      %v2788 = vsel %vm332, %v2780, %v2787
      %v2790 = vunpack.c.l.s4 1934713408
      %v2791 = vunpack.c.0.s8 %v2790
      %v2792 = vperm.slane %v2786, %v2791
      %v2794 = vunpack.c.l.s4 1934713408
      %v2795 = vunpack.c.0.s8 %v2794
      %v2796 = vperm.slane %v2788, %v2795
      %v2797 = vrot.slane %v2784, 4
      %v2798 = vsel %vm332, %v2797, %v2772
      %v2799 = vrot.slane %v2772, 4
      %v2800 = vsel %vm332, %v2784, %v2799
      %v2802 = vunpack.c.l.s4 1934713408
      %v2803 = vunpack.c.0.s8 %v2802
      %v2804 = vperm.slane %v2798, %v2803
      %v2806 = vunpack.c.l.s4 1934713408
      %v2807 = vunpack.c.0.s8 %v2806
      %v2808 = vperm.slane %v2800, %v2807
      %v2809 = vrot.slane %v2792, 4
      %v2810 = vsel %vm332, 0.0, %v2809
      %v2811 = vrot.slane %v2796, 4
      %v2812 = vsel %vm332, 0.0, %v2811
      %v2813 = vrot.slane %v2804, 4
      %v2814 = vsel %vm332, 0.0, %v2813
      %v2815 = vrot.slane %v2808, 4
      %v2816 = vsel %vm332, 0.0, %v2815
      %2818 = vrot.lane.b32.xlu0 %v2754, 16
      %v2819 = vpop.permute.xlu0 %2818
      %2822 = vrot.lane.b32.xlu0 %v2740, 32
      %v2823 = vpop.permute.xlu0 %2822
      %2826 = vrot.lane.b32.xlu0 %v2756, 48
      %v2827 = vpop.permute.xlu0 %2826
      %2830 = vrot.lane.b32.xlu0 %v2748, 64
      %v2831 = vpop.permute.xlu0 %2830
      %2834 = vrot.lane.b32.xlu0 %v2758, 80
      %v2835 = vpop.permute.xlu0 %2834
      %2838 = vrot.lane.b32.xlu0 %v2752, 96
      %v2839 = vpop.permute.xlu0 %2838
      %2842 = vrot.lane.b32.xlu0 %v2760, 112
      %v2843 = vpop.permute.xlu0 %2842
      %2846 = vrot.lane.b32.xlu0 %v2810, 16
      %v2847 = vpop.permute.xlu0 %2846
      %2850 = vrot.lane.b32.xlu0 %v2796, 32
      %v2851 = vpop.permute.xlu0 %2850
      %2854 = vrot.lane.b32.xlu0 %v2812, 48
      %v2855 = vpop.permute.xlu0 %2854
      %2858 = vrot.lane.b32.xlu0 %v2804, 64
      %v2859 = vpop.permute.xlu0 %2858
      %2862 = vrot.lane.b32.xlu0 %v2814, 80
      %v2863 = vpop.permute.xlu0 %2862
      %2866 = vrot.lane.b32.xlu0 %v2808, 96
      %v2867 = vpop.permute.xlu0 %2866
      %2870 = vrot.lane.b32.xlu0 %v2816, 112
      %v2871 = vpop.permute.xlu0 %2870
      %v2873 = vsel %vm500, %v2736, %v2819
      %v2874 = vsel %vm502, %v2873, %v2823
      %v2875 = vsel %vm504, %v2874, %v2827
      %v2876 = vsel %vm506, %v2875, %v2831
      %v2877 = vsel %vm508, %v2876, %v2835
      %v2878 = vsel %vm510, %v2877, %v2839
      %v2879 = vsel %vm512, %v2878, %v2843
      %v2880 = vsel %vm500, %v2792, %v2847
      %v2881 = vsel %vm502, %v2880, %v2851
      %v2882 = vsel %vm504, %v2881, %v2855
      %v2883 = vsel %vm506, %v2882, %v2859
      %v2884 = vsel %vm508, %v2883, %v2863
      %v2885 = vsel %vm510, %v2884, %v2867
      %v2886 = vsel %vm512, %v2885, %v2871
      %2887 = vrot.lane.b32.xlu0 %v2479, 126
      %v2888 = vpop.permute.xlu0 %2887
      %2889 = vrot.lane.b32.xlu0 %v2480, 126
      %v2890 = vpop.permute.xlu0 %2889
      %2891 = vrot.lane.b32.xlu0 %v2482, 126
      %v2892 = vpop.permute.xlu0 %2891
      %2893 = vrot.lane.b32.xlu0 %v2483, 126
      %v2894 = vpop.permute.xlu0 %2893
      %2895 = vrot.lane.b32.xlu0 %v2485, 126
      %v2896 = vpop.permute.xlu0 %2895
      %2897 = vrot.lane.b32.xlu0 %v2486, 126
      %v2898 = vpop.permute.xlu0 %2897
      %2899 = vrot.lane.b32.xlu0 %v2488, 126
      %v2900 = vpop.permute.xlu0 %2899
      %2901 = vrot.lane.b32.xlu0 %v2489, 126
      %v2902 = vpop.permute.xlu0 %2901
      %v2911 = vrot.slane %v2896, 4
      %v2912 = vsel %vm332, %v2911, %v2888
      %v2913 = vrot.slane %v2888, 4
      %v2914 = vsel %vm332, %v2896, %v2913
      %v2916 = vunpack.c.l.s4 1983009808
      %v2917 = vunpack.c.0.s8 %v2916
      %v2918 = vperm.slane %v2912, %v2917
      %v2920 = vunpack.c.l.s4 1983009808
      %v2921 = vunpack.c.0.s8 %v2920
      %v2922 = vperm.slane %v2914, %v2921
      %v2923 = vrot.slane %v2900, 4
      %v2924 = vsel %vm332, %v2923, %v2892
      %v2925 = vrot.slane %v2892, 4
      %v2926 = vsel %vm332, %v2900, %v2925
      %v2928 = vunpack.c.l.s4 1983009808
      %v2929 = vunpack.c.0.s8 %v2928
      %v2930 = vperm.slane %v2924, %v2929
      %v2932 = vunpack.c.l.s4 1983009808
      %v2933 = vunpack.c.0.s8 %v2932
      %v2934 = vperm.slane %v2926, %v2933
      %v2935 = vrot.slane %v2930, 4
      %v2936 = vsel %vm332, %v2935, %v2918
      %v2937 = vrot.slane %v2918, 4
      %v2938 = vsel %vm332, %v2930, %v2937
      %v2940 = vunpack.c.l.s4 1934713408
      %v2941 = vunpack.c.0.s8 %v2940
      %v2942 = vperm.slane %v2936, %v2941
      %v2944 = vunpack.c.l.s4 1934713408
      %v2945 = vunpack.c.0.s8 %v2944
      %v2946 = vperm.slane %v2938, %v2945
      %v2947 = vrot.slane %v2934, 4
      %v2948 = vsel %vm332, %v2947, %v2922
      %v2949 = vrot.slane %v2922, 4
      %v2950 = vsel %vm332, %v2934, %v2949
      %v2952 = vunpack.c.l.s4 1934713408
      %v2953 = vunpack.c.0.s8 %v2952
      %v2954 = vperm.slane %v2948, %v2953
      %v2956 = vunpack.c.l.s4 1934713408
      %v2957 = vunpack.c.0.s8 %v2956
      %v2958 = vperm.slane %v2950, %v2957
      %v2959 = vrot.slane %v2942, 4
      %v2960 = vsel %vm332, 0.0, %v2959
      %v2961 = vrot.slane %v2946, 4
      %v2962 = vsel %vm332, 0.0, %v2961
      %v2963 = vrot.slane %v2954, 4
      %v2964 = vsel %vm332, 0.0, %v2963
      %v2965 = vrot.slane %v2958, 4
      %v2966 = vsel %vm332, 0.0, %v2965
      %v2967 = vrot.slane %v2898, 4
      %v2968 = vsel %vm332, %v2967, %v2890
      %v2969 = vrot.slane %v2890, 4
      %v2970 = vsel %vm332, %v2898, %v2969
      %v2972 = vunpack.c.l.s4 1983009808
      %v2973 = vunpack.c.0.s8 %v2972
      %v2974 = vperm.slane %v2968, %v2973
      %v2976 = vunpack.c.l.s4 1983009808
      %v2977 = vunpack.c.0.s8 %v2976
      %v2978 = vperm.slane %v2970, %v2977
      %v2979 = vrot.slane %v2902, 4
      %v2980 = vsel %vm332, %v2979, %v2894
      %v2981 = vrot.slane %v2894, 4
      %v2982 = vsel %vm332, %v2902, %v2981
      %v2984 = vunpack.c.l.s4 1983009808
      %v2985 = vunpack.c.0.s8 %v2984
      %v2986 = vperm.slane %v2980, %v2985
      %v2988 = vunpack.c.l.s4 1983009808
      %v2989 = vunpack.c.0.s8 %v2988
      %v2990 = vperm.slane %v2982, %v2989
      %v2991 = vrot.slane %v2986, 4
      %v2992 = vsel %vm332, %v2991, %v2974
      %v2993 = vrot.slane %v2974, 4
      %v2994 = vsel %vm332, %v2986, %v2993
      %v2996 = vunpack.c.l.s4 1934713408
      %v2997 = vunpack.c.0.s8 %v2996
      %v2998 = vperm.slane %v2992, %v2997
      %v3000 = vunpack.c.l.s4 1934713408
      %v3001 = vunpack.c.0.s8 %v3000
      %v3002 = vperm.slane %v2994, %v3001
      %v3003 = vrot.slane %v2990, 4
      %v3004 = vsel %vm332, %v3003, %v2978
      %v3005 = vrot.slane %v2978, 4
      %v3006 = vsel %vm332, %v2990, %v3005
      %v3008 = vunpack.c.l.s4 1934713408
      %v3009 = vunpack.c.0.s8 %v3008
      %v3010 = vperm.slane %v3004, %v3009
      %v3012 = vunpack.c.l.s4 1934713408
      %v3013 = vunpack.c.0.s8 %v3012
      %v3014 = vperm.slane %v3006, %v3013
      %v3015 = vrot.slane %v2998, 4
      %v3016 = vsel %vm332, 0.0, %v3015
      %v3017 = vrot.slane %v3002, 4
      %v3018 = vsel %vm332, 0.0, %v3017
      %v3019 = vrot.slane %v3010, 4
      %v3020 = vsel %vm332, 0.0, %v3019
      %v3021 = vrot.slane %v3014, 4
      %v3022 = vsel %vm332, 0.0, %v3021
      %3024 = vrot.lane.b32.xlu0 %v2960, 16
      %v3025 = vpop.permute.xlu0 %3024
      %3028 = vrot.lane.b32.xlu0 %v2946, 32
      %v3029 = vpop.permute.xlu0 %3028
      %3032 = vrot.lane.b32.xlu0 %v2962, 48
      %v3033 = vpop.permute.xlu0 %3032
      %3036 = vrot.lane.b32.xlu0 %v2954, 64
      %v3037 = vpop.permute.xlu0 %3036
      %3040 = vrot.lane.b32.xlu0 %v2964, 80
      %v3041 = vpop.permute.xlu0 %3040
      %3044 = vrot.lane.b32.xlu0 %v2958, 96
      %v3045 = vpop.permute.xlu0 %3044
      %3048 = vrot.lane.b32.xlu0 %v2966, 112
      %v3049 = vpop.permute.xlu0 %3048
      %3052 = vrot.lane.b32.xlu0 %v3016, 16
      %v3053 = vpop.permute.xlu0 %3052
      %3056 = vrot.lane.b32.xlu0 %v3002, 32
      %v3057 = vpop.permute.xlu0 %3056
      %3060 = vrot.lane.b32.xlu0 %v3018, 48
      %v3061 = vpop.permute.xlu0 %3060
      %3064 = vrot.lane.b32.xlu0 %v3010, 64
      %v3065 = vpop.permute.xlu0 %3064
      %3068 = vrot.lane.b32.xlu0 %v3020, 80
      %v3069 = vpop.permute.xlu0 %3068
      %3072 = vrot.lane.b32.xlu0 %v3014, 96
      %v3073 = vpop.permute.xlu0 %3072
      %3076 = vrot.lane.b32.xlu0 %v3022, 112
      %v3077 = vpop.permute.xlu0 %3076
      %v3079 = vsel %vm500, %v2942, %v3025
      %v3080 = vsel %vm502, %v3079, %v3029
      %v3081 = vsel %vm504, %v3080, %v3033
      %v3082 = vsel %vm506, %v3081, %v3037
      %v3083 = vsel %vm508, %v3082, %v3041
      %v3084 = vsel %vm510, %v3083, %v3045
      %v3085 = vsel %vm512, %v3084, %v3049
      %v3086 = vsel %vm500, %v2998, %v3053
      %v3087 = vsel %vm502, %v3086, %v3057
      %v3088 = vsel %vm504, %v3087, %v3061
      %v3089 = vsel %vm506, %v3088, %v3065
      %v3090 = vsel %vm508, %v3089, %v3069
      %v3091 = vsel %vm510, %v3090, %v3073
      %v3092 = vsel %vm512, %v3091, %v3077
      %v3097 = vrot.slane %v2479, 1
      %v3098 = vrot.slane %v2480, 1
      %v3099 = vsel %vm945, %v3097, %v3098
      %v3100 = vrot.slane %v2481, 1
      %v3101 = vsel %vm945, %v3098, %v3100
      %v3102 = vrot.slane %v2482, 1
      %v3103 = vrot.slane %v2483, 1
      %v3104 = vsel %vm945, %v3102, %v3103
      %v3105 = vrot.slane %v2484, 1
      %v3106 = vsel %vm945, %v3103, %v3105
      %v3107 = vrot.slane %v2485, 1
      %v3108 = vrot.slane %v2486, 1
      %v3109 = vsel %vm945, %v3107, %v3108
      %v3110 = vrot.slane %v2487, 1
      %v3111 = vsel %vm945, %v3108, %v3110
      %v3112 = vrot.slane %v2488, 1
      %v3113 = vrot.slane %v2489, 1
      %v3114 = vsel %vm945, %v3112, %v3113
      %v3115 = vrot.slane %v2490, 1
      %v3116 = vsel %vm945, %v3113, %v3115
      %v3125 = vrot.slane %v3109, 4
      %v3126 = vsel %vm332, %v3125, %v3099
      %v3127 = vrot.slane %v3099, 4
      %v3128 = vsel %vm332, %v3109, %v3127
      %v3130 = vunpack.c.l.s4 1983009808
      %v3131 = vunpack.c.0.s8 %v3130
      %v3132 = vperm.slane %v3126, %v3131
      %v3134 = vunpack.c.l.s4 1983009808
      %v3135 = vunpack.c.0.s8 %v3134
      %v3136 = vperm.slane %v3128, %v3135
      %v3137 = vrot.slane %v3114, 4
      %v3138 = vsel %vm332, %v3137, %v3104
      %v3139 = vrot.slane %v3104, 4
      %v3140 = vsel %vm332, %v3114, %v3139
      %v3142 = vunpack.c.l.s4 1983009808
      %v3143 = vunpack.c.0.s8 %v3142
      %v3144 = vperm.slane %v3138, %v3143
      %v3146 = vunpack.c.l.s4 1983009808
      %v3147 = vunpack.c.0.s8 %v3146
      %v3148 = vperm.slane %v3140, %v3147
      %v3149 = vrot.slane %v3144, 4
      %v3150 = vsel %vm332, %v3149, %v3132
      %v3151 = vrot.slane %v3132, 4
      %v3152 = vsel %vm332, %v3144, %v3151
      %v3154 = vunpack.c.l.s4 1934713408
      %v3155 = vunpack.c.0.s8 %v3154
      %v3156 = vperm.slane %v3150, %v3155
      %v3158 = vunpack.c.l.s4 1934713408
      %v3159 = vunpack.c.0.s8 %v3158
      %v3160 = vperm.slane %v3152, %v3159
      %v3161 = vrot.slane %v3148, 4
      %v3162 = vsel %vm332, %v3161, %v3136
      %v3163 = vrot.slane %v3136, 4
      %v3164 = vsel %vm332, %v3148, %v3163
      %v3166 = vunpack.c.l.s4 1934713408
      %v3167 = vunpack.c.0.s8 %v3166
      %v3168 = vperm.slane %v3162, %v3167
      %v3170 = vunpack.c.l.s4 1934713408
      %v3171 = vunpack.c.0.s8 %v3170
      %v3172 = vperm.slane %v3164, %v3171
      %v3173 = vrot.slane %v3156, 4
      %v3174 = vsel %vm332, 0.0, %v3173
      %v3175 = vrot.slane %v3160, 4
      %v3176 = vsel %vm332, 0.0, %v3175
      %v3177 = vrot.slane %v3168, 4
      %v3178 = vsel %vm332, 0.0, %v3177
      %v3179 = vrot.slane %v3172, 4
      %v3180 = vsel %vm332, 0.0, %v3179
      %v3181 = vrot.slane %v3111, 4
      %v3182 = vsel %vm332, %v3181, %v3101
      %v3183 = vrot.slane %v3101, 4
      %v3184 = vsel %vm332, %v3111, %v3183
      %v3186 = vunpack.c.l.s4 1983009808
      %v3187 = vunpack.c.0.s8 %v3186
      %v3188 = vperm.slane %v3182, %v3187
      %v3190 = vunpack.c.l.s4 1983009808
      %v3191 = vunpack.c.0.s8 %v3190
      %v3192 = vperm.slane %v3184, %v3191
      %v3193 = vrot.slane %v3116, 4
      %v3194 = vsel %vm332, %v3193, %v3106
      %v3195 = vrot.slane %v3106, 4
      %v3196 = vsel %vm332, %v3116, %v3195
      %v3198 = vunpack.c.l.s4 1983009808
      %v3199 = vunpack.c.0.s8 %v3198
      %v3200 = vperm.slane %v3194, %v3199
      %v3202 = vunpack.c.l.s4 1983009808
      %v3203 = vunpack.c.0.s8 %v3202
      %v3204 = vperm.slane %v3196, %v3203
      %v3205 = vrot.slane %v3200, 4
      %v3206 = vsel %vm332, %v3205, %v3188
      %v3207 = vrot.slane %v3188, 4
      %v3208 = vsel %vm332, %v3200, %v3207
      %v3210 = vunpack.c.l.s4 1934713408
      %v3211 = vunpack.c.0.s8 %v3210
      %v3212 = vperm.slane %v3206, %v3211
      %v3214 = vunpack.c.l.s4 1934713408
      %v3215 = vunpack.c.0.s8 %v3214
      %v3216 = vperm.slane %v3208, %v3215
      %v3217 = vrot.slane %v3204, 4
      %v3218 = vsel %vm332, %v3217, %v3192
      %v3219 = vrot.slane %v3192, 4
      %v3220 = vsel %vm332, %v3204, %v3219
      %v3222 = vunpack.c.l.s4 1934713408
      %v3223 = vunpack.c.0.s8 %v3222
      %v3224 = vperm.slane %v3218, %v3223
      %v3226 = vunpack.c.l.s4 1934713408
      %v3227 = vunpack.c.0.s8 %v3226
      %v3228 = vperm.slane %v3220, %v3227
      %v3229 = vrot.slane %v3212, 4
      %v3230 = vsel %vm332, 0.0, %v3229
      %v3231 = vrot.slane %v3216, 4
      %v3232 = vsel %vm332, 0.0, %v3231
      %v3233 = vrot.slane %v3224, 4
      %v3234 = vsel %vm332, 0.0, %v3233
      %v3235 = vrot.slane %v3228, 4
      %v3236 = vsel %vm332, 0.0, %v3235
      %3238 = vrot.lane.b32.xlu0 %v3174, 16
      %v3239 = vpop.permute.xlu0 %3238
      %3242 = vrot.lane.b32.xlu0 %v3160, 32
      %v3243 = vpop.permute.xlu0 %3242
      %3246 = vrot.lane.b32.xlu0 %v3176, 48
      %v3247 = vpop.permute.xlu0 %3246
      %3250 = vrot.lane.b32.xlu0 %v3168, 64
      %v3251 = vpop.permute.xlu0 %3250
      %3254 = vrot.lane.b32.xlu0 %v3178, 80
      %v3255 = vpop.permute.xlu0 %3254
      %3258 = vrot.lane.b32.xlu0 %v3172, 96
      %v3259 = vpop.permute.xlu0 %3258
      %3262 = vrot.lane.b32.xlu0 %v3180, 112
      %v3263 = vpop.permute.xlu0 %3262
      %3266 = vrot.lane.b32.xlu0 %v3230, 16
      %v3267 = vpop.permute.xlu0 %3266
      %3270 = vrot.lane.b32.xlu0 %v3216, 32
      %v3271 = vpop.permute.xlu0 %3270
      %3274 = vrot.lane.b32.xlu0 %v3232, 48
      %v3275 = vpop.permute.xlu0 %3274
      %3278 = vrot.lane.b32.xlu0 %v3224, 64
      %v3279 = vpop.permute.xlu0 %3278
      %3282 = vrot.lane.b32.xlu0 %v3234, 80
      %v3283 = vpop.permute.xlu0 %3282
      %3286 = vrot.lane.b32.xlu0 %v3228, 96
      %v3287 = vpop.permute.xlu0 %3286
      %3290 = vrot.lane.b32.xlu0 %v3236, 112
      %v3291 = vpop.permute.xlu0 %3290
      %v3293 = vsel %vm500, %v3156, %v3239
      %v3294 = vsel %vm502, %v3293, %v3243
      %v3295 = vsel %vm504, %v3294, %v3247
      %v3296 = vsel %vm506, %v3295, %v3251
      %v3297 = vsel %vm508, %v3296, %v3255
      %v3298 = vsel %vm510, %v3297, %v3259
      %v3299 = vsel %vm512, %v3298, %v3263
      %v3300 = vsel %vm500, %v3212, %v3267
      %v3301 = vsel %vm502, %v3300, %v3271
      %v3302 = vsel %vm504, %v3301, %v3275
      %v3303 = vsel %vm506, %v3302, %v3279
      %v3304 = vsel %vm508, %v3303, %v3283
      %v3305 = vsel %vm510, %v3304, %v3287
      %v3306 = vsel %vm512, %v3305, %v3291
      %3307 = vrot.lane.b32.xlu0 %v3099, 127
      %v3308 = vpop.permute.xlu0 %3307
      %3309 = vrot.lane.b32.xlu0 %v3101, 127
      %v3310 = vpop.permute.xlu0 %3309
      %3311 = vrot.lane.b32.xlu0 %v3104, 127
      %v3312 = vpop.permute.xlu0 %3311
      %3313 = vrot.lane.b32.xlu0 %v3106, 127
      %v3314 = vpop.permute.xlu0 %3313
      %3315 = vrot.lane.b32.xlu0 %v3109, 127
      %v3316 = vpop.permute.xlu0 %3315
      %3317 = vrot.lane.b32.xlu0 %v3111, 127
      %v3318 = vpop.permute.xlu0 %3317
      %3319 = vrot.lane.b32.xlu0 %v3114, 127
      %v3320 = vpop.permute.xlu0 %3319
      %3321 = vrot.lane.b32.xlu0 %v3116, 127
      %v3322 = vpop.permute.xlu0 %3321
      %v3331 = vrot.slane %v3316, 4
      %v3332 = vsel %vm332, %v3331, %v3308
      %v3333 = vrot.slane %v3308, 4
      %v3334 = vsel %vm332, %v3316, %v3333
      %v3336 = vunpack.c.l.s4 1983009808
      %v3337 = vunpack.c.0.s8 %v3336
      %v3338 = vperm.slane %v3332, %v3337
      %v3340 = vunpack.c.l.s4 1983009808
      %v3341 = vunpack.c.0.s8 %v3340
      %v3342 = vperm.slane %v3334, %v3341
      %v3343 = vrot.slane %v3320, 4
      %v3344 = vsel %vm332, %v3343, %v3312
      %v3345 = vrot.slane %v3312, 4
      %v3346 = vsel %vm332, %v3320, %v3345
      %v3348 = vunpack.c.l.s4 1983009808
      %v3349 = vunpack.c.0.s8 %v3348
      %v3350 = vperm.slane %v3344, %v3349
      %v3352 = vunpack.c.l.s4 1983009808
      %v3353 = vunpack.c.0.s8 %v3352
      %v3354 = vperm.slane %v3346, %v3353
      %v3355 = vrot.slane %v3350, 4
      %v3356 = vsel %vm332, %v3355, %v3338
      %v3357 = vrot.slane %v3338, 4
      %v3358 = vsel %vm332, %v3350, %v3357
      %v3360 = vunpack.c.l.s4 1934713408
      %v3361 = vunpack.c.0.s8 %v3360
      %v3362 = vperm.slane %v3356, %v3361
      %v3364 = vunpack.c.l.s4 1934713408
      %v3365 = vunpack.c.0.s8 %v3364
      %v3366 = vperm.slane %v3358, %v3365
      %v3367 = vrot.slane %v3354, 4
      %v3368 = vsel %vm332, %v3367, %v3342
      %v3369 = vrot.slane %v3342, 4
      %v3370 = vsel %vm332, %v3354, %v3369
      %v3372 = vunpack.c.l.s4 1934713408
      %v3373 = vunpack.c.0.s8 %v3372
      %v3374 = vperm.slane %v3368, %v3373
      %v3376 = vunpack.c.l.s4 1934713408
      %v3377 = vunpack.c.0.s8 %v3376
      %v3378 = vperm.slane %v3370, %v3377
      %v3379 = vrot.slane %v3362, 4
      %v3380 = vsel %vm332, 0.0, %v3379
      %v3381 = vrot.slane %v3366, 4
      %v3382 = vsel %vm332, 0.0, %v3381
      %v3383 = vrot.slane %v3374, 4
      %v3384 = vsel %vm332, 0.0, %v3383
      %v3385 = vrot.slane %v3378, 4
      %v3386 = vsel %vm332, 0.0, %v3385
      %v3387 = vrot.slane %v3318, 4
      %v3388 = vsel %vm332, %v3387, %v3310
      %v3389 = vrot.slane %v3310, 4
      %v3390 = vsel %vm332, %v3318, %v3389
      %v3392 = vunpack.c.l.s4 1983009808
      %v3393 = vunpack.c.0.s8 %v3392
      %v3394 = vperm.slane %v3388, %v3393
      %v3396 = vunpack.c.l.s4 1983009808
      %v3397 = vunpack.c.0.s8 %v3396
      %v3398 = vperm.slane %v3390, %v3397
      %v3399 = vrot.slane %v3322, 4
      %v3400 = vsel %vm332, %v3399, %v3314
      %v3401 = vrot.slane %v3314, 4
      %v3402 = vsel %vm332, %v3322, %v3401
      %v3404 = vunpack.c.l.s4 1983009808
      %v3405 = vunpack.c.0.s8 %v3404
      %v3406 = vperm.slane %v3400, %v3405
      %v3408 = vunpack.c.l.s4 1983009808
      %v3409 = vunpack.c.0.s8 %v3408
      %v3410 = vperm.slane %v3402, %v3409
      %v3411 = vrot.slane %v3406, 4
      %v3412 = vsel %vm332, %v3411, %v3394
      %v3413 = vrot.slane %v3394, 4
      %v3414 = vsel %vm332, %v3406, %v3413
      %v3416 = vunpack.c.l.s4 1934713408
      %v3417 = vunpack.c.0.s8 %v3416
      %v3418 = vperm.slane %v3412, %v3417
      %v3420 = vunpack.c.l.s4 1934713408
      %v3421 = vunpack.c.0.s8 %v3420
      %v3422 = vperm.slane %v3414, %v3421
      %v3423 = vrot.slane %v3410, 4
      %v3424 = vsel %vm332, %v3423, %v3398
      %v3425 = vrot.slane %v3398, 4
      %v3426 = vsel %vm332, %v3410, %v3425
      %v3428 = vunpack.c.l.s4 1934713408
      %v3429 = vunpack.c.0.s8 %v3428
      %v3430 = vperm.slane %v3424, %v3429
      %v3432 = vunpack.c.l.s4 1934713408
      %v3433 = vunpack.c.0.s8 %v3432
      %v3434 = vperm.slane %v3426, %v3433
      %v3435 = vrot.slane %v3418, 4
      %v3436 = vsel %vm332, 0.0, %v3435
      %v3437 = vrot.slane %v3422, 4
      %v3438 = vsel %vm332, 0.0, %v3437
      %v3439 = vrot.slane %v3430, 4
      %v3440 = vsel %vm332, 0.0, %v3439
      %v3441 = vrot.slane %v3434, 4
      %v3442 = vsel %vm332, 0.0, %v3441
      %3444 = vrot.lane.b32.xlu0 %v3380, 16
      %v3445 = vpop.permute.xlu0 %3444
      %3448 = vrot.lane.b32.xlu0 %v3366, 32
      %v3449 = vpop.permute.xlu0 %3448
      %3452 = vrot.lane.b32.xlu0 %v3382, 48
      %v3453 = vpop.permute.xlu0 %3452
      %3456 = vrot.lane.b32.xlu0 %v3374, 64
      %v3457 = vpop.permute.xlu0 %3456
      %3460 = vrot.lane.b32.xlu0 %v3384, 80
      %v3461 = vpop.permute.xlu0 %3460
      %3464 = vrot.lane.b32.xlu0 %v3378, 96
      %v3465 = vpop.permute.xlu0 %3464
      %3468 = vrot.lane.b32.xlu0 %v3386, 112
      %v3469 = vpop.permute.xlu0 %3468
      %3472 = vrot.lane.b32.xlu0 %v3436, 16
      %v3473 = vpop.permute.xlu0 %3472
      %3476 = vrot.lane.b32.xlu0 %v3422, 32
      %v3477 = vpop.permute.xlu0 %3476
      %3480 = vrot.lane.b32.xlu0 %v3438, 48
      %v3481 = vpop.permute.xlu0 %3480
      %3484 = vrot.lane.b32.xlu0 %v3430, 64
      %v3485 = vpop.permute.xlu0 %3484
      %3488 = vrot.lane.b32.xlu0 %v3440, 80
      %v3489 = vpop.permute.xlu0 %3488
      %3492 = vrot.lane.b32.xlu0 %v3434, 96
      %v3493 = vpop.permute.xlu0 %3492
      %3496 = vrot.lane.b32.xlu0 %v3442, 112
      %v3497 = vpop.permute.xlu0 %3496
      %v3499 = vsel %vm500, %v3362, %v3445
      %v3500 = vsel %vm502, %v3499, %v3449
      %v3501 = vsel %vm504, %v3500, %v3453
      %v3502 = vsel %vm506, %v3501, %v3457
      %v3503 = vsel %vm508, %v3502, %v3461
      %v3504 = vsel %vm510, %v3503, %v3465
      %v3505 = vsel %vm512, %v3504, %v3469
      %v3506 = vsel %vm500, %v3418, %v3473
      %v3507 = vsel %vm502, %v3506, %v3477
      %v3508 = vsel %vm504, %v3507, %v3481
      %v3509 = vsel %vm506, %v3508, %v3485
      %v3510 = vsel %vm508, %v3509, %v3489
      %v3511 = vsel %vm510, %v3510, %v3493
      %v3512 = vsel %vm512, %v3511, %v3497
      %3513 = vrot.lane.b32.xlu0 %v3099, 126
      %v3514 = vpop.permute.xlu0 %3513
      %3515 = vrot.lane.b32.xlu0 %v3101, 126
      %v3516 = vpop.permute.xlu0 %3515
      %3517 = vrot.lane.b32.xlu0 %v3104, 126
      %v3518 = vpop.permute.xlu0 %3517
      %3519 = vrot.lane.b32.xlu0 %v3106, 126
      %v3520 = vpop.permute.xlu0 %3519
      %3521 = vrot.lane.b32.xlu0 %v3109, 126
      %v3522 = vpop.permute.xlu0 %3521
      %3523 = vrot.lane.b32.xlu0 %v3111, 126
      %v3524 = vpop.permute.xlu0 %3523
      %3525 = vrot.lane.b32.xlu0 %v3114, 126
      %v3526 = vpop.permute.xlu0 %3525
      %3527 = vrot.lane.b32.xlu0 %v3116, 126
      %v3528 = vpop.permute.xlu0 %3527
      %v3537 = vrot.slane %v3522, 4
      %v3538 = vsel %vm332, %v3537, %v3514
      %v3539 = vrot.slane %v3514, 4
      %v3540 = vsel %vm332, %v3522, %v3539
      %v3542 = vunpack.c.l.s4 1983009808
      %v3543 = vunpack.c.0.s8 %v3542
      %v3544 = vperm.slane %v3538, %v3543
      %v3546 = vunpack.c.l.s4 1983009808
      %v3547 = vunpack.c.0.s8 %v3546
      %v3548 = vperm.slane %v3540, %v3547
      %v3549 = vrot.slane %v3526, 4
      %v3550 = vsel %vm332, %v3549, %v3518
      %v3551 = vrot.slane %v3518, 4
      %v3552 = vsel %vm332, %v3526, %v3551
      %v3554 = vunpack.c.l.s4 1983009808
      %v3555 = vunpack.c.0.s8 %v3554
      %v3556 = vperm.slane %v3550, %v3555
      %v3558 = vunpack.c.l.s4 1983009808
      %v3559 = vunpack.c.0.s8 %v3558
      %v3560 = vperm.slane %v3552, %v3559
      %v3561 = vrot.slane %v3556, 4
      %v3562 = vsel %vm332, %v3561, %v3544
      %v3563 = vrot.slane %v3544, 4
      %v3564 = vsel %vm332, %v3556, %v3563
      %v3566 = vunpack.c.l.s4 1934713408
      %v3567 = vunpack.c.0.s8 %v3566
      %v3568 = vperm.slane %v3562, %v3567
      %v3570 = vunpack.c.l.s4 1934713408
      %v3571 = vunpack.c.0.s8 %v3570
      %v3572 = vperm.slane %v3564, %v3571
      %v3573 = vrot.slane %v3560, 4
      %v3574 = vsel %vm332, %v3573, %v3548
      %v3575 = vrot.slane %v3548, 4
      %v3576 = vsel %vm332, %v3560, %v3575
      %v3578 = vunpack.c.l.s4 1934713408
      %v3579 = vunpack.c.0.s8 %v3578
      %v3580 = vperm.slane %v3574, %v3579
      %v3582 = vunpack.c.l.s4 1934713408
      %v3583 = vunpack.c.0.s8 %v3582
      %v3584 = vperm.slane %v3576, %v3583
      %v3585 = vrot.slane %v3568, 4
      %v3586 = vsel %vm332, 0.0, %v3585
      %v3587 = vrot.slane %v3572, 4
      %v3588 = vsel %vm332, 0.0, %v3587
      %v3589 = vrot.slane %v3580, 4
      %v3590 = vsel %vm332, 0.0, %v3589
      %v3591 = vrot.slane %v3584, 4
      %v3592 = vsel %vm332, 0.0, %v3591
      %v3593 = vrot.slane %v3524, 4
      %v3594 = vsel %vm332, %v3593, %v3516
      %v3595 = vrot.slane %v3516, 4
      %v3596 = vsel %vm332, %v3524, %v3595
      %v3598 = vunpack.c.l.s4 1983009808
      %v3599 = vunpack.c.0.s8 %v3598
      %v3600 = vperm.slane %v3594, %v3599
      %v3602 = vunpack.c.l.s4 1983009808
      %v3603 = vunpack.c.0.s8 %v3602
      %v3604 = vperm.slane %v3596, %v3603
      %v3605 = vrot.slane %v3528, 4
      %v3606 = vsel %vm332, %v3605, %v3520
      %v3607 = vrot.slane %v3520, 4
      %v3608 = vsel %vm332, %v3528, %v3607
      %v3610 = vunpack.c.l.s4 1983009808
      %v3611 = vunpack.c.0.s8 %v3610
      %v3612 = vperm.slane %v3606, %v3611
      %v3614 = vunpack.c.l.s4 1983009808
      %v3615 = vunpack.c.0.s8 %v3614
      %v3616 = vperm.slane %v3608, %v3615
      %v3617 = vrot.slane %v3612, 4
      %v3618 = vsel %vm332, %v3617, %v3600
      %v3619 = vrot.slane %v3600, 4
      %v3620 = vsel %vm332, %v3612, %v3619
      %v3622 = vunpack.c.l.s4 1934713408
      %v3623 = vunpack.c.0.s8 %v3622
      %v3624 = vperm.slane %v3618, %v3623
      %v3626 = vunpack.c.l.s4 1934713408
      %v3627 = vunpack.c.0.s8 %v3626
      %v3628 = vperm.slane %v3620, %v3627
      %v3629 = vrot.slane %v3616, 4
      %v3630 = vsel %vm332, %v3629, %v3604
      %v3631 = vrot.slane %v3604, 4
      %v3632 = vsel %vm332, %v3616, %v3631
      %v3634 = vunpack.c.l.s4 1934713408
      %v3635 = vunpack.c.0.s8 %v3634
      %v3636 = vperm.slane %v3630, %v3635
      %v3638 = vunpack.c.l.s4 1934713408
      %v3639 = vunpack.c.0.s8 %v3638
      %v3640 = vperm.slane %v3632, %v3639
      %v3641 = vrot.slane %v3624, 4
      %v3642 = vsel %vm332, 0.0, %v3641
      %v3643 = vrot.slane %v3628, 4
      %v3644 = vsel %vm332, 0.0, %v3643
      %v3645 = vrot.slane %v3636, 4
      %v3646 = vsel %vm332, 0.0, %v3645
      %v3647 = vrot.slane %v3640, 4
      %v3648 = vsel %vm332, 0.0, %v3647
      %3650 = vrot.lane.b32.xlu0 %v3586, 16
      %v3651 = vpop.permute.xlu0 %3650
      %3654 = vrot.lane.b32.xlu0 %v3572, 32
      %v3655 = vpop.permute.xlu0 %3654
      %3658 = vrot.lane.b32.xlu0 %v3588, 48
      %v3659 = vpop.permute.xlu0 %3658
      %3662 = vrot.lane.b32.xlu0 %v3580, 64
      %v3663 = vpop.permute.xlu0 %3662
      %3666 = vrot.lane.b32.xlu0 %v3590, 80
      %v3667 = vpop.permute.xlu0 %3666
      %3670 = vrot.lane.b32.xlu0 %v3584, 96
      %v3671 = vpop.permute.xlu0 %3670
      %3674 = vrot.lane.b32.xlu0 %v3592, 112
      %v3675 = vpop.permute.xlu0 %3674
      %3678 = vrot.lane.b32.xlu0 %v3642, 16
      %v3679 = vpop.permute.xlu0 %3678
      %3682 = vrot.lane.b32.xlu0 %v3628, 32
      %v3683 = vpop.permute.xlu0 %3682
      %3686 = vrot.lane.b32.xlu0 %v3644, 48
      %v3687 = vpop.permute.xlu0 %3686
      %3690 = vrot.lane.b32.xlu0 %v3636, 64
      %v3691 = vpop.permute.xlu0 %3690
      %3694 = vrot.lane.b32.xlu0 %v3646, 80
      %v3695 = vpop.permute.xlu0 %3694
      %3698 = vrot.lane.b32.xlu0 %v3640, 96
      %v3699 = vpop.permute.xlu0 %3698
      %3702 = vrot.lane.b32.xlu0 %v3648, 112
      %v3703 = vpop.permute.xlu0 %3702
      %v3705 = vsel %vm500, %v3568, %v3651
      %v3706 = vsel %vm502, %v3705, %v3655
      %v3707 = vsel %vm504, %v3706, %v3659
      %v3708 = vsel %vm506, %v3707, %v3663
      %v3709 = vsel %vm508, %v3708, %v3667
      %v3710 = vsel %vm510, %v3709, %v3671
      %v3711 = vsel %vm512, %v3710, %v3675
      %v3712 = vsel %vm500, %v3624, %v3679
      %v3713 = vsel %vm502, %v3712, %v3683
      %v3714 = vsel %vm504, %v3713, %v3687
      %v3715 = vsel %vm506, %v3714, %v3691
      %v3716 = vsel %vm508, %v3715, %v3695
      %v3717 = vsel %vm510, %v3716, %v3699
      %v3718 = vsel %vm512, %v3717, %v3703
      %v3719 = vrot.slane %v2479, 2
      %v3720 = vrot.slane %v2480, 2
      %v3721 = vsel %vm1568, %v3719, %v3720
      %v3722 = vrot.slane %v2481, 2
      %v3723 = vsel %vm1568, %v3720, %v3722
      %v3724 = vrot.slane %v2482, 2
      %v3725 = vrot.slane %v2483, 2
      %v3726 = vsel %vm1568, %v3724, %v3725
      %v3727 = vrot.slane %v2484, 2
      %v3728 = vsel %vm1568, %v3725, %v3727
      %v3729 = vrot.slane %v2485, 2
      %v3730 = vrot.slane %v2486, 2
      %v3731 = vsel %vm1568, %v3729, %v3730
      %v3732 = vrot.slane %v2487, 2
      %v3733 = vsel %vm1568, %v3730, %v3732
      %v3734 = vrot.slane %v2488, 2
      %v3735 = vrot.slane %v2489, 2
      %v3736 = vsel %vm1568, %v3734, %v3735
      %v3737 = vrot.slane %v2490, 2
      %v3738 = vsel %vm1568, %v3735, %v3737
      %v3747 = vrot.slane %v3731, 4
      %v3748 = vsel %vm332, %v3747, %v3721
      %v3749 = vrot.slane %v3721, 4
      %v3750 = vsel %vm332, %v3731, %v3749
      %v3752 = vunpack.c.l.s4 1983009808
      %v3753 = vunpack.c.0.s8 %v3752
      %v3754 = vperm.slane %v3748, %v3753
      %v3756 = vunpack.c.l.s4 1983009808
      %v3757 = vunpack.c.0.s8 %v3756
      %v3758 = vperm.slane %v3750, %v3757
      %v3759 = vrot.slane %v3736, 4
      %v3760 = vsel %vm332, %v3759, %v3726
      %v3761 = vrot.slane %v3726, 4
      %v3762 = vsel %vm332, %v3736, %v3761
      %v3764 = vunpack.c.l.s4 1983009808
      %v3765 = vunpack.c.0.s8 %v3764
      %v3766 = vperm.slane %v3760, %v3765
      %v3768 = vunpack.c.l.s4 1983009808
      %v3769 = vunpack.c.0.s8 %v3768
      %v3770 = vperm.slane %v3762, %v3769
      %v3771 = vrot.slane %v3766, 4
      %v3772 = vsel %vm332, %v3771, %v3754
      %v3773 = vrot.slane %v3754, 4
      %v3774 = vsel %vm332, %v3766, %v3773
      %v3776 = vunpack.c.l.s4 1934713408
      %v3777 = vunpack.c.0.s8 %v3776
      %v3778 = vperm.slane %v3772, %v3777
      %v3780 = vunpack.c.l.s4 1934713408
      %v3781 = vunpack.c.0.s8 %v3780
      %v3782 = vperm.slane %v3774, %v3781
      %v3783 = vrot.slane %v3770, 4
      %v3784 = vsel %vm332, %v3783, %v3758
      %v3785 = vrot.slane %v3758, 4
      %v3786 = vsel %vm332, %v3770, %v3785
      %v3788 = vunpack.c.l.s4 1934713408
      %v3789 = vunpack.c.0.s8 %v3788
      %v3790 = vperm.slane %v3784, %v3789
      %v3792 = vunpack.c.l.s4 1934713408
      %v3793 = vunpack.c.0.s8 %v3792
      %v3794 = vperm.slane %v3786, %v3793
      %v3795 = vrot.slane %v3778, 4
      %v3796 = vsel %vm332, 0.0, %v3795
      %v3797 = vrot.slane %v3782, 4
      %v3798 = vsel %vm332, 0.0, %v3797
      %v3799 = vrot.slane %v3790, 4
      %v3800 = vsel %vm332, 0.0, %v3799
      %v3801 = vrot.slane %v3794, 4
      %v3802 = vsel %vm332, 0.0, %v3801
      %v3803 = vrot.slane %v3733, 4
      %v3804 = vsel %vm332, %v3803, %v3723
      %v3805 = vrot.slane %v3723, 4
      %v3806 = vsel %vm332, %v3733, %v3805
      %v3808 = vunpack.c.l.s4 1983009808
      %v3809 = vunpack.c.0.s8 %v3808
      %v3810 = vperm.slane %v3804, %v3809
      %v3812 = vunpack.c.l.s4 1983009808
      %v3813 = vunpack.c.0.s8 %v3812
      %v3814 = vperm.slane %v3806, %v3813
      %v3815 = vrot.slane %v3738, 4
      %v3816 = vsel %vm332, %v3815, %v3728
      %v3817 = vrot.slane %v3728, 4
      %v3818 = vsel %vm332, %v3738, %v3817
      %v3820 = vunpack.c.l.s4 1983009808
      %v3821 = vunpack.c.0.s8 %v3820
      %v3822 = vperm.slane %v3816, %v3821
      %v3824 = vunpack.c.l.s4 1983009808
      %v3825 = vunpack.c.0.s8 %v3824
      %v3826 = vperm.slane %v3818, %v3825
      %v3827 = vrot.slane %v3822, 4
      %v3828 = vsel %vm332, %v3827, %v3810
      %v3829 = vrot.slane %v3810, 4
      %v3830 = vsel %vm332, %v3822, %v3829
      %v3832 = vunpack.c.l.s4 1934713408
      %v3833 = vunpack.c.0.s8 %v3832
      %v3834 = vperm.slane %v3828, %v3833
      %v3836 = vunpack.c.l.s4 1934713408
      %v3837 = vunpack.c.0.s8 %v3836
      %v3838 = vperm.slane %v3830, %v3837
      %v3839 = vrot.slane %v3826, 4
      %v3840 = vsel %vm332, %v3839, %v3814
      %v3841 = vrot.slane %v3814, 4
      %v3842 = vsel %vm332, %v3826, %v3841
      %v3844 = vunpack.c.l.s4 1934713408
      %v3845 = vunpack.c.0.s8 %v3844
      %v3846 = vperm.slane %v3840, %v3845
      %v3848 = vunpack.c.l.s4 1934713408
      %v3849 = vunpack.c.0.s8 %v3848
      %v3850 = vperm.slane %v3842, %v3849
      %v3851 = vrot.slane %v3834, 4
      %v3852 = vsel %vm332, 0.0, %v3851
      %v3853 = vrot.slane %v3838, 4
      %v3854 = vsel %vm332, 0.0, %v3853
      %v3855 = vrot.slane %v3846, 4
      %v3856 = vsel %vm332, 0.0, %v3855
      %v3857 = vrot.slane %v3850, 4
      %v3858 = vsel %vm332, 0.0, %v3857
      %3860 = vrot.lane.b32.xlu0 %v3796, 16
      %v3861 = vpop.permute.xlu0 %3860
      %3864 = vrot.lane.b32.xlu0 %v3782, 32
      %v3865 = vpop.permute.xlu0 %3864
      %3868 = vrot.lane.b32.xlu0 %v3798, 48
      %v3869 = vpop.permute.xlu0 %3868
      %3872 = vrot.lane.b32.xlu0 %v3790, 64
      %v3873 = vpop.permute.xlu0 %3872
      %3876 = vrot.lane.b32.xlu0 %v3800, 80
      %v3877 = vpop.permute.xlu0 %3876
      %3880 = vrot.lane.b32.xlu0 %v3794, 96
      %v3881 = vpop.permute.xlu0 %3880
      %3884 = vrot.lane.b32.xlu0 %v3802, 112
      %v3885 = vpop.permute.xlu0 %3884
      %3888 = vrot.lane.b32.xlu0 %v3852, 16
      %v3889 = vpop.permute.xlu0 %3888
      %3892 = vrot.lane.b32.xlu0 %v3838, 32
      %v3893 = vpop.permute.xlu0 %3892
      %3896 = vrot.lane.b32.xlu0 %v3854, 48
      %v3897 = vpop.permute.xlu0 %3896
      %3900 = vrot.lane.b32.xlu0 %v3846, 64
      %v3901 = vpop.permute.xlu0 %3900
      %3904 = vrot.lane.b32.xlu0 %v3856, 80
      %v3905 = vpop.permute.xlu0 %3904
      %3908 = vrot.lane.b32.xlu0 %v3850, 96
      %v3909 = vpop.permute.xlu0 %3908
      %3912 = vrot.lane.b32.xlu0 %v3858, 112
      %v3913 = vpop.permute.xlu0 %3912
      %v3915 = vsel %vm500, %v3778, %v3861
      %v3916 = vsel %vm502, %v3915, %v3865
      %v3917 = vsel %vm504, %v3916, %v3869
      %v3918 = vsel %vm506, %v3917, %v3873
      %v3919 = vsel %vm508, %v3918, %v3877
      %v3920 = vsel %vm510, %v3919, %v3881
      %v3921 = vsel %vm512, %v3920, %v3885
      %v3922 = vsel %vm500, %v3834, %v3889
      %v3923 = vsel %vm502, %v3922, %v3893
      %v3924 = vsel %vm504, %v3923, %v3897
      %v3925 = vsel %vm506, %v3924, %v3901
      %v3926 = vsel %vm508, %v3925, %v3905
      %v3927 = vsel %vm510, %v3926, %v3909
      %v3928 = vsel %vm512, %v3927, %v3913
      %3929 = vrot.lane.b32.xlu0 %v3721, 127
      %v3930 = vpop.permute.xlu0 %3929
      %3931 = vrot.lane.b32.xlu0 %v3723, 127
      %v3932 = vpop.permute.xlu0 %3931
      %3933 = vrot.lane.b32.xlu0 %v3726, 127
      %v3934 = vpop.permute.xlu0 %3933
      %3935 = vrot.lane.b32.xlu0 %v3728, 127
      %v3936 = vpop.permute.xlu0 %3935
      %3937 = vrot.lane.b32.xlu0 %v3731, 127
      %v3938 = vpop.permute.xlu0 %3937
      %3939 = vrot.lane.b32.xlu0 %v3733, 127
      %v3940 = vpop.permute.xlu0 %3939
      %3941 = vrot.lane.b32.xlu0 %v3736, 127
      %v3942 = vpop.permute.xlu0 %3941
      %3943 = vrot.lane.b32.xlu0 %v3738, 127
      %v3944 = vpop.permute.xlu0 %3943
      %v3953 = vrot.slane %v3938, 4
      %v3954 = vsel %vm332, %v3953, %v3930
      %v3955 = vrot.slane %v3930, 4
      %v3956 = vsel %vm332, %v3938, %v3955
      %v3958 = vunpack.c.l.s4 1983009808
      %v3959 = vunpack.c.0.s8 %v3958
      %v3960 = vperm.slane %v3954, %v3959
      %v3962 = vunpack.c.l.s4 1983009808
      %v3963 = vunpack.c.0.s8 %v3962
      %v3964 = vperm.slane %v3956, %v3963
      %v3965 = vrot.slane %v3942, 4
      %v3966 = vsel %vm332, %v3965, %v3934
      %v3967 = vrot.slane %v3934, 4
      %v3968 = vsel %vm332, %v3942, %v3967
      %v3970 = vunpack.c.l.s4 1983009808
      %v3971 = vunpack.c.0.s8 %v3970
      %v3972 = vperm.slane %v3966, %v3971
      %v3974 = vunpack.c.l.s4 1983009808
      %v3975 = vunpack.c.0.s8 %v3974
      %v3976 = vperm.slane %v3968, %v3975
      %v3977 = vrot.slane %v3972, 4
      %v3978 = vsel %vm332, %v3977, %v3960
      %v3979 = vrot.slane %v3960, 4
      %v3980 = vsel %vm332, %v3972, %v3979
      %v3982 = vunpack.c.l.s4 1934713408
      %v3983 = vunpack.c.0.s8 %v3982
      %v3984 = vperm.slane %v3978, %v3983
      %v3986 = vunpack.c.l.s4 1934713408
      %v3987 = vunpack.c.0.s8 %v3986
      %v3988 = vperm.slane %v3980, %v3987
      %v3989 = vrot.slane %v3976, 4
      %v3990 = vsel %vm332, %v3989, %v3964
      %v3991 = vrot.slane %v3964, 4
      %v3992 = vsel %vm332, %v3976, %v3991
      %v3994 = vunpack.c.l.s4 1934713408
      %v3995 = vunpack.c.0.s8 %v3994
      %v3996 = vperm.slane %v3990, %v3995
      %v3998 = vunpack.c.l.s4 1934713408
      %v3999 = vunpack.c.0.s8 %v3998
      %v4000 = vperm.slane %v3992, %v3999
      %v4001 = vrot.slane %v3984, 4
      %v4002 = vsel %vm332, 0.0, %v4001
      %v4003 = vrot.slane %v3988, 4
      %v4004 = vsel %vm332, 0.0, %v4003
      %v4005 = vrot.slane %v3996, 4
      %v4006 = vsel %vm332, 0.0, %v4005
      %v4007 = vrot.slane %v4000, 4
      %v4008 = vsel %vm332, 0.0, %v4007
      %v4009 = vrot.slane %v3940, 4
      %v4010 = vsel %vm332, %v4009, %v3932
      %v4011 = vrot.slane %v3932, 4
      %v4012 = vsel %vm332, %v3940, %v4011
      %v4014 = vunpack.c.l.s4 1983009808
      %v4015 = vunpack.c.0.s8 %v4014
      %v4016 = vperm.slane %v4010, %v4015
      %v4018 = vunpack.c.l.s4 1983009808
      %v4019 = vunpack.c.0.s8 %v4018
      %v4020 = vperm.slane %v4012, %v4019
      %v4021 = vrot.slane %v3944, 4
      %v4022 = vsel %vm332, %v4021, %v3936
      %v4023 = vrot.slane %v3936, 4
      %v4024 = vsel %vm332, %v3944, %v4023
      %v4026 = vunpack.c.l.s4 1983009808
      %v4027 = vunpack.c.0.s8 %v4026
      %v4028 = vperm.slane %v4022, %v4027
      %v4030 = vunpack.c.l.s4 1983009808
      %v4031 = vunpack.c.0.s8 %v4030
      %v4032 = vperm.slane %v4024, %v4031
      %v4033 = vrot.slane %v4028, 4
      %v4034 = vsel %vm332, %v4033, %v4016
      %v4035 = vrot.slane %v4016, 4
      %v4036 = vsel %vm332, %v4028, %v4035
      %v4038 = vunpack.c.l.s4 1934713408
      %v4039 = vunpack.c.0.s8 %v4038
      %v4040 = vperm.slane %v4034, %v4039
      %v4042 = vunpack.c.l.s4 1934713408
      %v4043 = vunpack.c.0.s8 %v4042
      %v4044 = vperm.slane %v4036, %v4043
      %v4045 = vrot.slane %v4032, 4
      %v4046 = vsel %vm332, %v4045, %v4020
      %v4047 = vrot.slane %v4020, 4
      %v4048 = vsel %vm332, %v4032, %v4047
      %v4050 = vunpack.c.l.s4 1934713408
      %v4051 = vunpack.c.0.s8 %v4050
      %v4052 = vperm.slane %v4046, %v4051
      %v4054 = vunpack.c.l.s4 1934713408
      %v4055 = vunpack.c.0.s8 %v4054
      %v4056 = vperm.slane %v4048, %v4055
      %v4057 = vrot.slane %v4040, 4
      %v4058 = vsel %vm332, 0.0, %v4057
      %v4059 = vrot.slane %v4044, 4
      %v4060 = vsel %vm332, 0.0, %v4059
      %v4061 = vrot.slane %v4052, 4
      %v4062 = vsel %vm332, 0.0, %v4061
      %v4063 = vrot.slane %v4056, 4
      %v4064 = vsel %vm332, 0.0, %v4063
      %4066 = vrot.lane.b32.xlu0 %v4002, 16
      %v4067 = vpop.permute.xlu0 %4066
      %4070 = vrot.lane.b32.xlu0 %v3988, 32
      %v4071 = vpop.permute.xlu0 %4070
      %4074 = vrot.lane.b32.xlu0 %v4004, 48
      %v4075 = vpop.permute.xlu0 %4074
      %4078 = vrot.lane.b32.xlu0 %v3996, 64
      %v4079 = vpop.permute.xlu0 %4078
      %4082 = vrot.lane.b32.xlu0 %v4006, 80
      %v4083 = vpop.permute.xlu0 %4082
      %4086 = vrot.lane.b32.xlu0 %v4000, 96
      %v4087 = vpop.permute.xlu0 %4086
      %4090 = vrot.lane.b32.xlu0 %v4008, 112
      %v4091 = vpop.permute.xlu0 %4090
      %4094 = vrot.lane.b32.xlu0 %v4058, 16
      %v4095 = vpop.permute.xlu0 %4094
      %4098 = vrot.lane.b32.xlu0 %v4044, 32
      %v4099 = vpop.permute.xlu0 %4098
      %4102 = vrot.lane.b32.xlu0 %v4060, 48
      %v4103 = vpop.permute.xlu0 %4102
      %4106 = vrot.lane.b32.xlu0 %v4052, 64
      %v4107 = vpop.permute.xlu0 %4106
      %4110 = vrot.lane.b32.xlu0 %v4062, 80
      %v4111 = vpop.permute.xlu0 %4110
      %4114 = vrot.lane.b32.xlu0 %v4056, 96
      %v4115 = vpop.permute.xlu0 %4114
      %4118 = vrot.lane.b32.xlu0 %v4064, 112
      %v4119 = vpop.permute.xlu0 %4118
      %v4121 = vsel %vm500, %v3984, %v4067
      %v4122 = vsel %vm502, %v4121, %v4071
      %v4123 = vsel %vm504, %v4122, %v4075
      %v4124 = vsel %vm506, %v4123, %v4079
      %v4125 = vsel %vm508, %v4124, %v4083
      %v4126 = vsel %vm510, %v4125, %v4087
      %v4127 = vsel %vm512, %v4126, %v4091
      %v4128 = vsel %vm500, %v4040, %v4095
      %v4129 = vsel %vm502, %v4128, %v4099
      %v4130 = vsel %vm504, %v4129, %v4103
      %v4131 = vsel %vm506, %v4130, %v4107
      %v4132 = vsel %vm508, %v4131, %v4111
      %v4133 = vsel %vm510, %v4132, %v4115
      %v4134 = vsel %vm512, %v4133, %v4119
      %4135 = vrot.lane.b32.xlu0 %v3721, 126
      %v4136 = vpop.permute.xlu0 %4135
      %4137 = vrot.lane.b32.xlu0 %v3723, 126
      %v4138 = vpop.permute.xlu0 %4137
      %4139 = vrot.lane.b32.xlu0 %v3726, 126
      %v4140 = vpop.permute.xlu0 %4139
      %4141 = vrot.lane.b32.xlu0 %v3728, 126
      %v4142 = vpop.permute.xlu0 %4141
      %4143 = vrot.lane.b32.xlu0 %v3731, 126
      %v4144 = vpop.permute.xlu0 %4143
      %4145 = vrot.lane.b32.xlu0 %v3733, 126
      %v4146 = vpop.permute.xlu0 %4145
      %4147 = vrot.lane.b32.xlu0 %v3736, 126
      %v4148 = vpop.permute.xlu0 %4147
      %4149 = vrot.lane.b32.xlu0 %v3738, 126
      %v4150 = vpop.permute.xlu0 %4149
      %v4159 = vrot.slane %v4144, 4
      %v4160 = vsel %vm332, %v4159, %v4136
      %v4161 = vrot.slane %v4136, 4
      %v4162 = vsel %vm332, %v4144, %v4161
      %v4164 = vunpack.c.l.s4 1983009808
      %v4165 = vunpack.c.0.s8 %v4164
      %v4166 = vperm.slane %v4160, %v4165
      %v4168 = vunpack.c.l.s4 1983009808
      %v4169 = vunpack.c.0.s8 %v4168
      %v4170 = vperm.slane %v4162, %v4169
      %v4171 = vrot.slane %v4148, 4
      %v4172 = vsel %vm332, %v4171, %v4140
      %v4173 = vrot.slane %v4140, 4
      %v4174 = vsel %vm332, %v4148, %v4173
      %v4176 = vunpack.c.l.s4 1983009808
      %v4177 = vunpack.c.0.s8 %v4176
      %v4178 = vperm.slane %v4172, %v4177
      %v4180 = vunpack.c.l.s4 1983009808
      %v4181 = vunpack.c.0.s8 %v4180
      %v4182 = vperm.slane %v4174, %v4181
      %v4183 = vrot.slane %v4178, 4
      %v4184 = vsel %vm332, %v4183, %v4166
      %v4185 = vrot.slane %v4166, 4
      %v4186 = vsel %vm332, %v4178, %v4185
      %v4188 = vunpack.c.l.s4 1934713408
      %v4189 = vunpack.c.0.s8 %v4188
      %v4190 = vperm.slane %v4184, %v4189
      %v4192 = vunpack.c.l.s4 1934713408
      %v4193 = vunpack.c.0.s8 %v4192
      %v4194 = vperm.slane %v4186, %v4193
      %v4195 = vrot.slane %v4182, 4
      %v4196 = vsel %vm332, %v4195, %v4170
      %v4197 = vrot.slane %v4170, 4
      %v4198 = vsel %vm332, %v4182, %v4197
      %v4200 = vunpack.c.l.s4 1934713408
      %v4201 = vunpack.c.0.s8 %v4200
      %v4202 = vperm.slane %v4196, %v4201
      %v4204 = vunpack.c.l.s4 1934713408
      %v4205 = vunpack.c.0.s8 %v4204
      %v4206 = vperm.slane %v4198, %v4205
      %v4207 = vrot.slane %v4190, 4
      %v4208 = vsel %vm332, 0.0, %v4207
      %v4209 = vrot.slane %v4194, 4
      %v4210 = vsel %vm332, 0.0, %v4209
      %v4211 = vrot.slane %v4202, 4
      %v4212 = vsel %vm332, 0.0, %v4211
      %v4213 = vrot.slane %v4206, 4
      %v4214 = vsel %vm332, 0.0, %v4213
      %v4215 = vrot.slane %v4146, 4
      %v4216 = vsel %vm332, %v4215, %v4138
      %v4217 = vrot.slane %v4138, 4
      %v4218 = vsel %vm332, %v4146, %v4217
      %v4220 = vunpack.c.l.s4 1983009808
      %v4221 = vunpack.c.0.s8 %v4220
      %v4222 = vperm.slane %v4216, %v4221
      %v4224 = vunpack.c.l.s4 1983009808
      %v4225 = vunpack.c.0.s8 %v4224
      %v4226 = vperm.slane %v4218, %v4225
      %v4227 = vrot.slane %v4150, 4
      %v4228 = vsel %vm332, %v4227, %v4142
      %v4229 = vrot.slane %v4142, 4
      %v4230 = vsel %vm332, %v4150, %v4229
      %v4232 = vunpack.c.l.s4 1983009808
      %v4233 = vunpack.c.0.s8 %v4232
      %v4234 = vperm.slane %v4228, %v4233
      %v4236 = vunpack.c.l.s4 1983009808
      %v4237 = vunpack.c.0.s8 %v4236
      %v4238 = vperm.slane %v4230, %v4237
      %v4239 = vrot.slane %v4234, 4
      %v4240 = vsel %vm332, %v4239, %v4222
      %v4241 = vrot.slane %v4222, 4
      %v4242 = vsel %vm332, %v4234, %v4241
      %v4244 = vunpack.c.l.s4 1934713408
      %v4245 = vunpack.c.0.s8 %v4244
      %v4246 = vperm.slane %v4240, %v4245
      %v4248 = vunpack.c.l.s4 1934713408
      %v4249 = vunpack.c.0.s8 %v4248
      %v4250 = vperm.slane %v4242, %v4249
      %v4251 = vrot.slane %v4238, 4
      %v4252 = vsel %vm332, %v4251, %v4226
      %v4253 = vrot.slane %v4226, 4
      %v4254 = vsel %vm332, %v4238, %v4253
      %v4256 = vunpack.c.l.s4 1934713408
      %v4257 = vunpack.c.0.s8 %v4256
      %v4258 = vperm.slane %v4252, %v4257
      %v4260 = vunpack.c.l.s4 1934713408
      %v4261 = vunpack.c.0.s8 %v4260
      %v4262 = vperm.slane %v4254, %v4261
      %v4263 = vrot.slane %v4246, 4
      %v4264 = vsel %vm332, 0.0, %v4263
      %v4265 = vrot.slane %v4250, 4
      %v4266 = vsel %vm332, 0.0, %v4265
      %v4267 = vrot.slane %v4258, 4
      %v4268 = vsel %vm332, 0.0, %v4267
      %v4269 = vrot.slane %v4262, 4
      %v4270 = vsel %vm332, 0.0, %v4269
      %4272 = vrot.lane.b32.xlu0 %v4208, 16
      %v4273 = vpop.permute.xlu0 %4272
      %4276 = vrot.lane.b32.xlu0 %v4194, 32
      %v4277 = vpop.permute.xlu0 %4276
      %4280 = vrot.lane.b32.xlu0 %v4210, 48
      %v4281 = vpop.permute.xlu0 %4280
      %4284 = vrot.lane.b32.xlu0 %v4202, 64
      %v4285 = vpop.permute.xlu0 %4284
      %4288 = vrot.lane.b32.xlu0 %v4212, 80
      %v4289 = vpop.permute.xlu0 %4288
      %4292 = vrot.lane.b32.xlu0 %v4206, 96
      %v4293 = vpop.permute.xlu0 %4292
      %4296 = vrot.lane.b32.xlu0 %v4214, 112
      %v4297 = vpop.permute.xlu0 %4296
      %4300 = vrot.lane.b32.xlu0 %v4264, 16
      %v4301 = vpop.permute.xlu0 %4300
      %4304 = vrot.lane.b32.xlu0 %v4250, 32
      %v4305 = vpop.permute.xlu0 %4304
      %4308 = vrot.lane.b32.xlu0 %v4266, 48
      %v4309 = vpop.permute.xlu0 %4308
      %4312 = vrot.lane.b32.xlu0 %v4258, 64
      %v4313 = vpop.permute.xlu0 %4312
      %4316 = vrot.lane.b32.xlu0 %v4268, 80
      %v4317 = vpop.permute.xlu0 %4316
      %4320 = vrot.lane.b32.xlu0 %v4262, 96
      %v4321 = vpop.permute.xlu0 %4320
      %4324 = vrot.lane.b32.xlu0 %v4270, 112
      %v4325 = vpop.permute.xlu0 %4324
      %v4327 = vsel %vm500, %v4190, %v4273
      %v4328 = vsel %vm502, %v4327, %v4277
      %v4329 = vsel %vm504, %v4328, %v4281
      %v4330 = vsel %vm506, %v4329, %v4285
      %v4331 = vsel %vm508, %v4330, %v4289
      %v4332 = vsel %vm510, %v4331, %v4293
      %v4333 = vsel %vm512, %v4332, %v4297
      %v4334 = vsel %vm500, %v4246, %v4301
      %v4335 = vsel %vm502, %v4334, %v4305
      %v4336 = vsel %vm504, %v4335, %v4309
      %v4337 = vsel %vm506, %v4336, %v4313
      %v4338 = vsel %vm508, %v4337, %v4317
      %v4339 = vsel %vm510, %v4338, %v4321
      %v4340 = vsel %vm512, %v4339, %v4325
      %v4343 = vrot.slane %v2879, 4
      %v4344 = vrot.slane %v2886, 4
      %v4349 = vrot.slane %v3299, 4
      %v4350 = vrot.slane %v3306, 4
      %v4355 = vrot.slane %v3711, 4
      %v4356 = vrot.slane %v3718, 4
      %v4361 = vrot.slane %v4127, 4
      %v4362 = vrot.slane %v4134, 4
      %v4365 = vsel %vm2215, %v2665, %v4343
      %v4366 = vsel %vm2215, %v2672, %v4344
      %v4367 = vsel %vm2215, %v3085, %v4349
      %v4368 = vsel %vm2215, %v3092, %v4350
      %v4369 = vsel %vm2215, %v3505, %v4355
      %v4370 = vsel %vm2215, %v3512, %v4356
      %v4371 = vsel %vm2215, %v3921, %v4361
      %v4372 = vsel %vm2215, %v3928, %v4362
      %v4373 = vld [vmem:[%s3] sm:$0xf]
      %v4374 = vld [vmem:[%s4] sm:$0xf]
      %4376 = vset.pattern.permute.xlu0 0
      %4377 = vperm.xlu0 %4376, %v4374
      %v4378 = vpop.permute.xlu0 %4377
      %v4381 = vsel %vm2231, %v4373, 0
      %v4384 = vsel %vm2215, %v4333, 0
      %v4387 = vsel %vm2215, %v4340, 0
      %4389 = vmatpush.msra.mxu0 0.0
      %4390 = vmatpush.msra.mxu0 0.0
      %4391 = vmatpush.msra.mxu0 0.0
      %4392 = vmatpush.msra.mxu0 0.0
      %4393 = vmatpush.msra.mxu0 0.0
      %4394 = vmatpush.msra.mxu0 0.0
      %4395 = vmatpush.msra.mxu0 0.0
      %4396 = vmatpush.msra.mxu0 0.0
      %4397 = vmatpush.msra.mxu0 0.0
      %4398 = vmatpush.msra.mxu0 0.0
      %4399 = vmatpush.msra.mxu0 0.0
      %4400 = vmatpush.msra.mxu0 %v4384
      %4401 = vmatpush.msra.mxu0 %v4371
      %4402 = vmatpush.msra.mxu0 %v4369
      %4403 = vmatpush.msra.mxu0 %v4367
      %4404 = vmatpush.msra.mxu0 %v4365
      %4405 = vmatmul.f32.gmra.mxu0 %v4381
      %v4406 = vpop.f32.mrf.mxu0
      %v4407 = vadd.f32 %v4378, %v4406
      %4408 = vdwg.mxu0
      %4409 = vmatpush.msra.mxu0 0.0
      %4410 = vmatpush.msra.mxu0 0.0
      %4411 = vmatpush.msra.mxu0 0.0
      %4412 = vmatpush.msra.mxu0 0.0
      %4413 = vmatpush.msra.mxu0 0.0
      %4414 = vmatpush.msra.mxu0 0.0
      %4415 = vmatpush.msra.mxu0 0.0
      %4416 = vmatpush.msra.mxu0 0.0
      %4417 = vmatpush.msra.mxu0 0.0
      %4418 = vmatpush.msra.mxu0 0.0
      %4419 = vmatpush.msra.mxu0 0.0
      %4420 = vmatpush.msra.mxu0 %v4387
      %4421 = vmatpush.msra.mxu0 %v4372
      %4422 = vmatpush.msra.mxu0 %v4370
      %4423 = vmatpush.msra.mxu0 %v4368
      %4424 = vmatpush.msra.mxu0 %v4366
      %4425 = vmatmul.f32.gmra.mxu0 %v4381
      %v4426 = vpop.f32.mrf.mxu0
      %v4427 = vadd.f32 %v4378, %v4426
      %4428 = vdwg.mxu0
      %v4429 = vrot.slane %v266, 4
      %v4430 = vsel %vm332, %v4429, %v262
      %v4431 = vrot.slane %v262, 4
      %v4432 = vsel %vm332, %v266, %v4431
      %v4434 = vunpack.c.l.s4 1983009808
      %v4435 = vunpack.c.0.s8 %v4434
      %v4436 = vperm.slane %v4430, %v4435
      %v4438 = vunpack.c.l.s4 1983009808
      %v4439 = vunpack.c.0.s8 %v4438
      %v4440 = vperm.slane %v4432, %v4439
      %v4441 = vrot.slane %v268, 4
      %v4442 = vsel %vm332, %v4441, %v264
      %v4443 = vrot.slane %v264, 4
      %v4444 = vsel %vm332, %v268, %v4443
      %v4446 = vunpack.c.l.s4 1983009808
      %v4447 = vunpack.c.0.s8 %v4446
      %v4448 = vperm.slane %v4442, %v4447
      %v4450 = vunpack.c.l.s4 1983009808
      %v4451 = vunpack.c.0.s8 %v4450
      %v4452 = vperm.slane %v4444, %v4451
      %v4453 = vrot.slane %v4448, 4
      %v4454 = vsel %vm332, %v4453, %v4436
      %v4455 = vrot.slane %v4436, 4
      %v4456 = vsel %vm332, %v4448, %v4455
      %v4458 = vunpack.c.l.s4 1934713408
      %v4459 = vunpack.c.0.s8 %v4458
      %v4460 = vperm.slane %v4454, %v4459
      %v4462 = vunpack.c.l.s4 1934713408
      %v4463 = vunpack.c.0.s8 %v4462
      %v4464 = vperm.slane %v4456, %v4463
      %v4465 = vrot.slane %v4452, 4
      %v4466 = vsel %vm332, %v4465, %v4440
      %v4467 = vrot.slane %v4440, 4
      %v4468 = vsel %vm332, %v4452, %v4467
      %v4470 = vunpack.c.l.s4 1934713408
      %v4471 = vunpack.c.0.s8 %v4470
      %v4472 = vperm.slane %v4466, %v4471
      %v4474 = vunpack.c.l.s4 1934713408
      %v4475 = vunpack.c.0.s8 %v4474
      %v4476 = vperm.slane %v4468, %v4475
      %v4477 = vrot.slane %v4460, 4
      %v4478 = vsel %vm332, 0.0, %v4477
      %v4479 = vrot.slane %v4464, 4
      %v4480 = vsel %vm332, 0.0, %v4479
      %v4481 = vrot.slane %v4472, 4
      %v4482 = vsel %vm332, 0.0, %v4481
      %v4483 = vrot.slane %v4476, 4
      %v4484 = vsel %vm332, 0.0, %v4483
      %v4485 = vrot.slane %v267, 4
      %v4486 = vsel %vm332, %v4485, %v263
      %v4487 = vrot.slane %v263, 4
      %v4488 = vsel %vm332, %v267, %v4487
      %v4490 = vunpack.c.l.s4 1983009808
      %v4491 = vunpack.c.0.s8 %v4490
      %v4492 = vperm.slane %v4486, %v4491
      %v4494 = vunpack.c.l.s4 1983009808
      %v4495 = vunpack.c.0.s8 %v4494
      %v4496 = vperm.slane %v4488, %v4495
      %v4497 = vrot.slane %v269, 4
      %v4498 = vsel %vm332, %v4497, %v265
      %v4499 = vrot.slane %v265, 4
      %v4500 = vsel %vm332, %v269, %v4499
      %v4502 = vunpack.c.l.s4 1983009808
      %v4503 = vunpack.c.0.s8 %v4502
      %v4504 = vperm.slane %v4498, %v4503
      %v4506 = vunpack.c.l.s4 1983009808
      %v4507 = vunpack.c.0.s8 %v4506
      %v4508 = vperm.slane %v4500, %v4507
      %v4509 = vrot.slane %v4504, 4
      %v4510 = vsel %vm332, %v4509, %v4492
      %v4511 = vrot.slane %v4492, 4
      %v4512 = vsel %vm332, %v4504, %v4511
      %v4514 = vunpack.c.l.s4 1934713408
      %v4515 = vunpack.c.0.s8 %v4514
      %v4516 = vperm.slane %v4510, %v4515
      %v4518 = vunpack.c.l.s4 1934713408
      %v4519 = vunpack.c.0.s8 %v4518
      %v4520 = vperm.slane %v4512, %v4519
      %v4521 = vrot.slane %v4508, 4
      %v4522 = vsel %vm332, %v4521, %v4496
      %v4523 = vrot.slane %v4496, 4
      %v4524 = vsel %vm332, %v4508, %v4523
      %v4526 = vunpack.c.l.s4 1934713408
      %v4527 = vunpack.c.0.s8 %v4526
      %v4528 = vperm.slane %v4522, %v4527
      %v4530 = vunpack.c.l.s4 1934713408
      %v4531 = vunpack.c.0.s8 %v4530
      %v4532 = vperm.slane %v4524, %v4531
      %v4533 = vrot.slane %v4516, 4
      %v4534 = vsel %vm332, 0.0, %v4533
      %v4535 = vrot.slane %v4520, 4
      %v4536 = vsel %vm332, 0.0, %v4535
      %v4537 = vrot.slane %v4528, 4
      %v4538 = vsel %vm332, 0.0, %v4537
      %v4539 = vrot.slane %v4532, 4
      %v4540 = vsel %vm332, 0.0, %v4539
      %4542 = vrot.lane.b32.xlu0 %v4478, 16
      %v4543 = vpop.permute.xlu0 %4542
      %4546 = vrot.lane.b32.xlu0 %v4464, 32
      %v4547 = vpop.permute.xlu0 %4546
      %4550 = vrot.lane.b32.xlu0 %v4480, 48
      %v4551 = vpop.permute.xlu0 %4550
      %4554 = vrot.lane.b32.xlu0 %v4472, 64
      %v4555 = vpop.permute.xlu0 %4554
      %4558 = vrot.lane.b32.xlu0 %v4482, 80
      %v4559 = vpop.permute.xlu0 %4558
      %4562 = vrot.lane.b32.xlu0 %v4476, 96
      %v4563 = vpop.permute.xlu0 %4562
      %4566 = vrot.lane.b32.xlu0 %v4484, 112
      %v4567 = vpop.permute.xlu0 %4566
      %4570 = vrot.lane.b32.xlu0 %v4534, 16
      %v4571 = vpop.permute.xlu0 %4570
      %4574 = vrot.lane.b32.xlu0 %v4520, 32
      %v4575 = vpop.permute.xlu0 %4574
      %4578 = vrot.lane.b32.xlu0 %v4536, 48
      %v4579 = vpop.permute.xlu0 %4578
      %4582 = vrot.lane.b32.xlu0 %v4528, 64
      %v4583 = vpop.permute.xlu0 %4582
      %4586 = vrot.lane.b32.xlu0 %v4538, 80
      %v4587 = vpop.permute.xlu0 %4586
      %4590 = vrot.lane.b32.xlu0 %v4532, 96
      %v4591 = vpop.permute.xlu0 %4590
      %4594 = vrot.lane.b32.xlu0 %v4540, 112
      %v4595 = vpop.permute.xlu0 %4594
      %v4597 = vsel %vm500, %v4460, %v4543
      %v4598 = vsel %vm502, %v4597, %v4547
      %v4599 = vsel %vm504, %v4598, %v4551
      %v4600 = vsel %vm506, %v4599, %v4555
      %v4601 = vsel %vm508, %v4600, %v4559
      %v4602 = vsel %vm510, %v4601, %v4563
      %v4603 = vsel %vm512, %v4602, %v4567
      %v4604 = vsel %vm500, %v4516, %v4571
      %v4605 = vsel %vm502, %v4604, %v4575
      %v4606 = vsel %vm504, %v4605, %v4579
      %v4607 = vsel %vm506, %v4606, %v4583
      %v4608 = vsel %vm508, %v4607, %v4587
      %v4609 = vsel %vm510, %v4608, %v4591
      %v4610 = vsel %vm512, %v4609, %v4595
      %v4611 = vadd.f32 %v4603, %v4407
      %v4612 = vadd.f32 %v4610, %v4427
      %v4615 = vrot.slane %v4612, 4
      %v4616 = vsel %vm2215, %v4611, %v4615
      %4618 = vst [vmem:[%s224] sm:$0xff] %v4616
      %p4619 = scmp.lt.s32.totalorder %s16, 1
      %s4620 = scalar_select %p4619, %s16, 1
      %s4621 = smul.addr %s4620, 2
      %s4622 = smul.addr %s4621, 4
      %s4623 = scalar_lea.vmem %s5, %s4622
      // Predicated region
      $region41: #{resblock_forward.1} parent=39 // pred_check
        %p4624 = pneg %p144
      $region42: #{resblock_forward.1} parent=39 // pred_check_branch
        %4626 = sbr.rel (%p4624) target = $region44
      $region43: #{resblock_forward.1} parent=39 // pred_region
        _
      $region44: #{resblock_forward.1} parent=39 // pred_fallthru
        _
    $region40: #{resblock_forward.1} parent=5 // pred_fallthru
      _
    %p4627 = scmp.le.s32.totalorder 2, %s11
    // Predicated region
    $region45: #{resblock_forward.1} parent=5 // pred_check
      %p4628 = pneg %p4627
    $region46: #{resblock_forward.1} parent=5 // pred_check_branch
      %4630 = sbr.rel (%p4628) target = $region48
    $region47: #{resblock_forward.1} parent=5 // pred_region
      %s4631 = ssub.s32 %s11, 2
      // Predicated region
      $region49: #{resblock_forward.1} parent=47 // pred_check
        %p4632 = pneg %p150
      $region50: #{resblock_forward.1} parent=47 // pred_check_branch
        %4634 = sbr.rel (%p4632) target = $region52
      $region51: #{resblock_forward.1} parent=47 // pred_region
        %p4635 = scmp.lt.s32.totalorder %s17, 1
        %s4636 = scalar_select %p4635, %s17, 1
        %s4637 = smul.addr %s4636, 2
        %s4638 = smul.addr %s4637, 4
        %s4639 = scalar_lea.vmem %s5, %s4638
      $region52: #{resblock_forward.1} parent=47 // pred_fallthru
        _
    $region48: #{resblock_forward.1} parent=5 // pred_fallthru
      _
  $region6: #{resblock_forward.1} parent=0 // loop_footer
    %s15 = sadd.s32 1, %s11
  $region7: #{resblock_forward.1} parent=0 // loop_footer_branch
    %10 = sbr.rel target = $region3
  $region8: #{resblock_forward.1} parent=0 // loop_exit
    _

</llo_original>
